<compile_context>
chip_gen: v7x
topology: tpu7x:2x2x1
jax: 0.10.0
libtpu: 0.0.40
codegen_flags: <defaults>
</compile_context>

<pallas_src>
import functools
import math

import jax
import jax.numpy as jnp
from jax.experimental import pallas as pl
from jax.experimental.pallas import tpu as pltpu  # noqa: F401  (TPU backend)

LOG2PI = math.log(2.0 * math.pi)

# ----------------------------- config (small, consistent with module) -------
BATCH = 8
C, H, W = 3, 16, 16
INPUT_DIM = C * H * W                     # 768
ENC_HIDDEN = 128
DEC_HIDDEN = (4, 4, 8)                    # prod = 128
DEC_FLAT = DEC_HIDDEN[0] * DEC_HIDDEN[1] * DEC_HIDDEN[2]
LATENT = 32
N_LAYERS = 3                              # 2**N_LAYERS = 8 leaves, 15 tree nodes
N_NODES = 2 ** (N_LAYERS + 1) - 1
KL1_WEIGHT = 1.0
RECON_WEIGHT = 1.0
DKL_MARGIN = 0.0
LOGVAR_INIT_RANGE = -4.0
LN_EPS = 1e-5


def _full_spec(shape):
    nd = len(shape)
    return pl.BlockSpec(shape, lambda i, _nd=nd: (0,) * _nd)


# ----------------------------- kernel 1: fused encoder -----------------------
def _encoder_kernel(x_ref, ew_ref, eb_ref,
                    c1w_ref, c1b_ref, cg_ref, cbe_ref, c2w_ref, c2b_ref,
                    hw_ref, hb_ref, o_ref):
    # encoder: Linear + ReLU  (bf16 MXU, f32 accumulate)
    x16 = x_ref[...].astype(jnp.bfloat16)
    h = jnp.dot(x16, ew_ref[...], preferred_element_type=jnp.float32) + eb_ref[...]
    h = jnp.maximum(h, 0.0)
    h16 = h.astype(jnp.bfloat16)

    # contrastive projection: Linear -> LN -> ReLU -> Linear
    c1 = jnp.dot(h16, c1w_ref[...], preferred_element_type=jnp.float32) + c1b_ref[...]
    m1 = jnp.mean(c1, axis=-1, keepdims=True)
    v1 = jnp.mean((c1 - m1) ** 2, axis=-1, keepdims=True)
    c1n = (c1 - m1) * jax.lax.rsqrt(v1 + LN_EPS) * cg_ref[...] + cbe_ref[...]
    c1n = jnp.maximum(c1n, 0.0)
    z_ctr = jnp.dot(c1n.astype(jnp.bfloat16), c2w_ref[...],
                    preferred_element_type=jnp.float32) + c2b_ref[...]

    # fc_mu / fc_logvar: shared LN statistics; gamma/beta folded into hw/hb
    mh = jnp.mean(h, axis=-1, keepdims=True)
    vh = jnp.mean((h - mh) ** 2, axis=-1, keepdims=True)
    hn = (h - mh) * jax.lax.rsqrt(vh + LN_EPS)
    heads = jnp.dot(hn, hw_ref[...], preferred_element_type=jnp.float32) + hb_ref[...]

    # single lane-dense (B,128) store: [mu | logvar | z_contrastive]
    o_ref[...] = jnp.concatenate([heads, z_ctr], axis=-1)


def pallas_encoder(x_flat, p):
    B = x_flat.shape[0]
    # Fold LayerNorm affine of fc_mu / fc_logvar into the head weights and
    # concatenate the two heads into a single (ENC_HIDDEN, 2*LATENT) matmul.
    hw = jnp.concatenate([p["mu_g"][0][:, None] * p["mu_W"],
                          p["lv_g"][0][:, None] * p["lv_W"]], axis=1)
    hb = jnp.concatenate([p["mu_be"] @ p["mu_W"] + p["mu_b"],
                          p["lv_be"] @ p["lv_W"] + p["lv_b"]], axis=1)
    out = pl.pallas_call(
        _encoder_kernel,
        out_shape=jax.ShapeDtypeStruct((B, 2 * LATENT + 64), jnp.float32),
        grid=(1,),
        in_specs=[_full_spec(x_flat.shape),
                  _full_spec(p["enc_W"].shape), _full_spec(p["enc_b"].shape),
                  _full_spec(p["ctr_W1"].shape), _full_spec(p["ctr_b1"].shape),
                  _full_spec(p["ctr_g"].shape), _full_spec(p["ctr_be"].shape),
                  _full_spec(p["ctr_W2"].shape), _full_spec(p["ctr_b2"].shape),
                  _full_spec(hw.shape), _full_spec(hb.shape)],
        out_specs=_full_spec((B, 2 * LATENT + 64)),
    )(x_flat, p["enc_W"], p["enc_b"], p["ctr_W1"], p["ctr_b1"],
      p["ctr_g"], p["ctr_be"], p["ctr_W2"], p["ctr_b2"], hw, hb)
    mu = out[:, :LATENT]
    logvar = out[:, LATENT:2 * LATENT]
    z_contrastive = out[:, 2 * LATENT:]
    return mu, logvar, z_contrastive


# ----------------------------- kernel 2: fused decoder + recon ---------------
def _decoder_recon_kernel(z_ref, w1_ref, b1_ref, w2_ref, b2_ref, x_ref, sse_ref):
    d1 = jnp.dot(z_ref[...].astype(jnp.bfloat16), w1_ref[...],
                 preferred_element_type=jnp.float32) + b1_ref[...]
    d1 = jnp.maximum(d1, 0.0)
    xr = jnp.dot(d1.astype(jnp.bfloat16), w2_ref[...],
                 preferred_element_type=jnp.float32) + b2_ref[...]
    err = xr - x_ref[...]
    sse_ref[...] = jnp.sum(jnp.sum(err * err, axis=1, keepdims=True),
                           axis=0, keepdims=True)


def pallas_decoder_recon(z, x_flat, p):
    B = z.shape[0]
    sse = pl.pallas_call(
        _decoder_recon_kernel,
        out_shape=jax.ShapeDtypeStruct((1, 1), jnp.float32),
        grid=(1,),
        in_specs=[_full_spec(z.shape),
                  _full_spec(p["dec_W1"].shape), _full_spec(p["dec_b1"].shape),
                  _full_spec(p["dec_W2"].shape), _full_spec(p["dec_b2"].shape),
                  _full_spec(x_flat.shape)],
        out_specs=_full_spec((1, 1)),
    )(z, p["dec_W1"], p["dec_b1"], p["dec_W2"], p["dec_b2"], x_flat)
    mse = sse[0, 0] / (B * INPUT_DIM)
    return mse * INPUT_DIM * RECON_WEIGHT


# ----------------------------- kernel 3: fused GMM stats / softmax / KL ------
def _gmm_head_kernel(zl_ref, mu_ref, lv_ref, muc_ref, lvc_ref, pw_ref, pb_ref,
                     pcx_ref, pcxc_ref, kl1_ref, kl2_ref, *, d_latent, n_nodes, tau):
    zl = zl_ref[...]
    mu = mu_ref[...]
    lv = lv_ref[...]
    muc = muc_ref[...]
    lvc = lvc_ref[...]
    inv_vc = jnp.exp(-lvc)                           # (K, D)
    log_pi = -math.log(n_nodes)                      # uniform pi over tree nodes

    # gaussian_pdf: direct (z - mu_c)^2 / var_c form (exact, no cancellation)
    diff = zl[:, None, :] - muc[None, :, :]          # (B, K, D)
    term = lvc[None, :, :] + diff * diff * inv_vc[None, :, :]
    log_pdf = -0.5 * (d_latent * LOG2PI + jnp.sum(term, axis=-1))      # (B, K)

    # TODO(synk): utils.GumbelSoftmax is external; with noise_strength=0 it is
    # modeled as tempered softmax / log_softmax of logpcpzc.
    logits = (log_pdf + log_pi) / tau
    mmax = jnp.max(logits, axis=-1, keepdims=True)
    e = jnp.exp(logits - mmax)
    logpcx = (logits - mmax) - jnp.log(jnp.sum(e, axis=-1, keepdims=True))
    pcx = jnp.exp(logpcx)

    # qzxlogpzc (direct broadcast form)
    dm = mu[:, None, :] - muc[None, :, :]
    qzx = jnp.sum(lvc[None, :, :] + jnp.exp(lv[:, None, :] - lvc[None, :, :])
                  + dm * dm * inv_vc[None, :, :], axis=-1)             # (B, K)

    e_logpzc = -0.5 * jnp.sum(qzx * pcx, axis=1, keepdims=True)        # (B, 1)
    e_logqzx = -jnp.sum(0.5 * (1.0 + lv), axis=1, keepdims=True)       # (B, 1)
    kl1_ref[...] = jnp.mean(e_logpzc - e_logqzx, axis=0, keepdims=True)
    kl2_ref[...] = jnp.mean(jnp.sum(pcx * (log_pi - logpcx), axis=1, keepdims=True),
                            axis=0, keepdims=True)

    pcx_ref[...] = pcx
    pcxc_ref[...] = jnp.dot(pcx, pw_ref[...],
                            preferred_element_type=jnp.float32) + pb_ref[...]


def pallas_gmm_head(z_l, mu, logvar, mu_c, logvar_c, pcx_W, pcx_b, tau=1.0):
    B, D = z_l.shape
    K = mu_c.shape[0]
    out_dim = pcx_W.shape[1]
    pcx, pcxc, kl1, kl2 = pl.pallas_call(
        functools.partial(_gmm_head_kernel, d_latent=D, n_nodes=K, tau=tau),
        out_shape=(jax.ShapeDtypeStruct((B, K), jnp.float32),
                   jax.ShapeDtypeStruct((B, out_dim), jnp.float32),
                   jax.ShapeDtypeStruct((1, 1), jnp.float32),
                   jax.ShapeDtypeStruct((1, 1), jnp.float32)),
        grid=(1,),
        in_specs=[_full_spec((B, D))] * 3 + [_full_spec((K, D))] * 2
                 + [_full_spec(pcx_W.shape), _full_spec(pcx_b.shape)],
        out_specs=(_full_spec((B, K)), _full_spec((B, out_dim)),
                   _full_spec((1, 1)), _full_spec((1, 1))),
    )(z_l, mu, logvar, mu_c, logvar_c, pcx_W, pcx_b)
    return pcx, pcxc, kl1[0, 0], kl2[0, 0]


# ----------------------------- parameters ------------------------------------
def init_linear(key, fan_in, fan_out):
    k1, k2 = jax.random.split(key)
    bound = 1.0 / math.sqrt(fan_in)
    w = jax.random.uniform(k1, (fan_in, fan_out), jnp.float32, -bound, bound)
    b = jax.random.uniform(k2, (1, fan_out), jnp.float32, -bound, bound)
    return w, b


def init_params(key):
    keys = jax.random.split(key, 10)
    p = {}
    # TODO(synk): MLPEncoder/MLPDecoder classes are not provided; modeled as
    # Linear(+ReLU) encoder and Linear decoder head.
    enc_W, p["enc_b"] = init_linear(keys[0], INPUT_DIM, ENC_HIDDEN)
    p["enc_W"] = enc_W.astype(jnp.bfloat16)           # big matmul weights in bf16
    # fc_mu / fc_logvar : Flatten -> LayerNorm(enc_hidden) -> Linear(enc_hidden, latent)
    p["mu_g"], p["mu_be"] = jnp.ones((1, ENC_HIDDEN)), jnp.zeros((1, ENC_HIDDEN))
    p["mu_W"], p["mu_b"] = init_linear(keys[1], ENC_HIDDEN, LATENT)
    p["lv_g"], p["lv_be"] = jnp.ones((1, ENC_HIDDEN)), jnp.zeros((1, ENC_HIDDEN))
    p["lv_W"], p["lv_b"] = init_linear(keys[2], ENC_HIDDEN, LATENT)
    # contrastive_projection: Linear(enc_hidden,512) -> LN(512) -> ReLU -> Linear(512,64)
    ctr_W1, p["ctr_b1"] = init_linear(keys[3], ENC_HIDDEN, 512)
    p["ctr_W1"] = ctr_W1.astype(jnp.bfloat16)
    p["ctr_g"], p["ctr_be"] = jnp.ones((1, 512)), jnp.zeros((1, 512))
    ctr_W2, p["ctr_b2"] = init_linear(keys[4], 512, 64)
    p["ctr_W2"] = ctr_W2.astype(jnp.bfloat16)
    # decoder: Linear(latent, prod(dec_hidden)) -> ReLU -> decoder_raw(Linear -> input_dim)
    dec_W1, p["dec_b1"] = init_linear(keys[5], LATENT, DEC_FLAT)
    p["dec_W1"] = dec_W1.astype(jnp.bfloat16)
    dec_W2, p["dec_b2"] = init_linear(keys[6], DEC_FLAT, INPUT_DIM)
    p["dec_W2"] = dec_W2.astype(jnp.bfloat16)
    # pcx_projection: Linear(2**(n_layers+1)-1, 64)
    p["pcx_W"], p["pcx_b"] = init_linear(keys[7], N_NODES, 64)
    # GMM leaves
    limit = 1.0 / (2 ** N_LAYERS)
    p["mu_c"] = jax.random.uniform(keys[8], (2 ** N_LAYERS, LATENT), jnp.float32,
                                   -limit, limit)
    p["logvar_c"] = jax.random.uniform(keys[9], (2 ** N_LAYERS, LATENT), jnp.float32,
                                       LOGVAR_INIT_RANGE, LOGVAR_INIT_RANGE + 1.0)
    # TaxonomicLayer cluster weights (zeros, as in nn.Parameter(torch.zeros(n,1)))
    p["cluster_weights"] = [jnp.zeros((2 ** i, 1), jnp.float32)
                            for i in reversed(range(N_LAYERS))]
    # pi_logits exists in the module but is unused in forward(); omitted.
    return p


# ----------------------------- taxonomic tree (tiny -> plain JAX, XLA fuses) --
def gmm_params(p):
    layer_mu = [p["mu_c"]]
    layer_lv = [p["logvar_c"]]
    pi_list, dkl_list = [], []
    m, lv = p["mu_c"], p["logvar_c"]
    for wgt in p["cluster_weights"]:
        K = wgt.shape[0]
        a = jax.nn.sigmoid(wgt)                               # (K, 1)
        m_e = m.reshape(K, 2, LATENT)
        lv_e = lv.reshape(K, 2, LATENT)
        m0, m1 = m_e[:, 0], m_e[:, 1]
        lv0, lv1 = lv_e[:, 0], lv_e[:, 1]
        kl01 = 0.5 * jnp.sum(lv1 - lv0 + (jnp.exp(lv0) + (m0 - m1) ** 2) / jnp.exp(lv1) - 1.0,
                             axis=1, keepdims=True)
        kl10 = 0.5 * jnp.sum(lv0 - lv1 + (jnp.exp(lv1) + (m1 - m0) ** 2) / jnp.exp(lv0) - 1.0,
                             axis=1, keepdims=True)
        skl = kl01 + kl10                                     # sym_kl, (K, 1)
        mr = a * m0 + (1.0 - a) * m1
        vr = a * (jnp.exp(lv0) + (m0 - mr) ** 2) + (1.0 - a) * (jnp.exp(lv1) + (m1 - mr) ** 2)
        lvr = jnp.log(vr + 1e-8)
        layer_mu.append(mr)
        layer_lv.append(lvr)
        pi_list.append(jnp.stack([a[:, 0], 1.0 - a[:, 0]], axis=1).reshape(-1))
        dkl_list.append(skl)
        m, lv = mr, lvr
    alphas = jnp.concatenate(pi_list, axis=0)
    Hlist = [0.5 * jnp.sum(l, axis=1) for l in layer_lv]
    mu_c = jnp.concatenate(layer_mu, axis=0)
    logvar_c = jnp.concatenate(layer_lv, axis=0)
    pi = jnp.full((N_NODES,), 1.0 / N_NODES, jnp.float32)
    return pi, mu_c, logvar_c, Hlist, alphas, dkl_list


# ----------------------------- forward ----------------------------------------
def forward(p, x, key, tau=1.0):
    B = x.shape[0]
    x_flat = x.reshape(B, -1).astype(jnp.float32)

    # fused encoder: mu, logvar, z_contrastive in one launch
    mu, logvar, z_contrastive = pallas_encoder(x_flat, p)

    k1, k2 = jax.random.split(key)
    std = jnp.exp(0.5 * logvar)
    z = mu + jax.random.normal(k1, mu.shape, jnp.float32) * std
    z_l = mu + jax.random.normal(k2, mu.shape, jnp.float32) * std

    # fused decoder + reconstruction loss
    recon_loss = pallas_decoder_recon(z, x_flat, p)

    # taxonomic tree (plain JAX, tiny)
    pi, mu_c, logvar_c, Hlist, alphas, dkl_list = gmm_params(p)

    # fused GMM stats / softmax / KL reductions / pcx projection
    pcx, pcx_contrastive, kl1, kl2 = pallas_gmm_head(
        z_l, mu, logvar, mu_c, logvar_c, p["pcx_W"], p["pcx_b"], tau=tau)
    kl1 = kl1 * KL1_WEIGHT
    kl2 = kl2 * KL1_WEIGHT

    loss = recon_loss - kl1 - kl2

    # non-vade_baseline branch
    alphas_n = alphas / jnp.sum(alphas, axis=0, keepdims=True)
    U = jnp.ones_like(alphas_n) / alphas_n.shape[0]
    kl_alpha = alphas_n * (jnp.log(alphas_n + 1e-10) - jnp.log(U + 1e-10))
    # TODO(synk): utils.convex_weight_decay is external; with lambda=0 modeled as ones.
    kl_alpha_weights = jnp.ones_like(alphas_n)
    loss = loss + jnp.sum(kl_alpha * kl_alpha_weights)

    dkl_flat = jnp.concatenate(dkl_list, axis=0)[:, 0] / 2.0
    # TODO(synk): utils.dkl_weight_warmup is external; with lambda=0 modeled as
    # returning the raw margin scalar.
    margin = jnp.float32(DKL_MARGIN)
    loss = loss + jnp.sum(jnp.maximum(margin - dkl_flat, 0.0))

    return (loss, recon_loss, kl1, kl2, Hlist, pcx, pi, dkl_list,
            z_contrastive, pcx_contrastive)


# ----------------------------- main -------------------------------------------
if __name__ == "__main__":
    root = jax.random.PRNGKey(0)
    k_params, k_data, k_noise = jax.random.split(root, 3)
    params = init_params(k_params)
    x = jax.random.normal(k_data, (BATCH, C, H, W), jnp.float32)

    fwd = jax.jit(forward)
    out = fwd(params, x, k_noise)
    jax.block_until_ready(out[0])

    loss, recon_loss, kl1, kl2, Hlist, pcx, pi, dkl_list, z_c, pcx_c = out
    assert pcx.shape == (BATCH, N_NODES)
    assert z_c.shape == (BATCH, 64) and pcx_c.shape == (BATCH, 64)
    assert bool(jnp.isfinite(loss))
    print("KERNEL_OK")
</pallas_src>

<mosaic_0001>
module attributes {stable_mosaic.version = 11 : i64} {
  func.func @_decoder_recon_kernel(%arg0: i32, %arg1: memref<8x32xf32, #tpu.memory_space<vmem>>, %arg2: memref<32x128xbf16, #tpu.memory_space<vmem>>, %arg3: memref<1x128xf32, #tpu.memory_space<vmem>>, %arg4: memref<128x768xbf16, #tpu.memory_space<vmem>>, %arg5: memref<1x768xf32, #tpu.memory_space<vmem>>, %arg6: memref<8x768xf32, #tpu.memory_space<vmem>>, %arg7: memref<1x1xf32, #tpu.memory_space<vmem>>) attributes {dimension_semantics = [#tpu.dimension_semantics<arbitrary>], iteration_bounds = array<i64: 1>, scalar_prefetch = 0 : i64, scratch_operands = 0 : i64, tpu.core_type = #tpu.core_type<tc>, window_params = [{pipeline_mode = #tpu.pipeline_mode<synchronous>, transform_indices = @transform_0, window_bounds = array<i64: 8, 32>}, {pipeline_mode = #tpu.pipeline_mode<synchronous>, transform_indices = @transform_1, window_bounds = array<i64: 32, 128>}, {pipeline_mode = #tpu.pipeline_mode<synchronous>, transform_indices = @transform_2, window_bounds = array<i64: 1, 128>}, {pipeline_mode = #tpu.pipeline_mode<synchronous>, transform_indices = @transform_3, window_bounds = array<i64: 128, 768>}, {pipeline_mode = #tpu.pipeline_mode<synchronous>, transform_indices = @transform_4, window_bounds = array<i64: 1, 768>}, {pipeline_mode = #tpu.pipeline_mode<synchronous>, transform_indices = @transform_5, window_bounds = array<i64: 8, 768>}, {pipeline_mode = #tpu.pipeline_mode<synchronous>, transform_indices = @transform_6, window_bounds = array<i64: 1, 1>}]} {
    %c0 = arith.constant 0 : index
    %c0_0 = arith.constant 0 : index
    %0 = vector.load %arg1[%c0, %c0_0] : memref<8x32xf32, #tpu.memory_space<vmem>>, vector<8x32xf32>
    %1 = arith.truncf %0 : vector<8x32xf32> to vector<8x32xbf16>
    %c0_1 = arith.constant 0 : index
    %c0_2 = arith.constant 0 : index
    %2 = vector.load %arg2[%c0_1, %c0_2] : memref<32x128xbf16, #tpu.memory_space<vmem>>, vector<32x128xbf16>
    %cst = arith.constant dense<0.000000e+00> : vector<8x128xf32>
    %3 = tpu.matmul %1, %2, %cst {dimension_numbers = #tpu.dot_dimension_numbers<[1], [0], [0], [1], [0, 0, 1, 1], [], []>} : vector<8x32xbf16>, vector<32x128xbf16>, vector<8x128xf32> -> vector<8x128xf32>
    %c0_3 = arith.constant 0 : index
    %c0_4 = arith.constant 0 : index
    %4 = vector.load %arg3[%c0_3, %c0_4] : memref<1x128xf32, #tpu.memory_space<vmem>>, vector<1x128xf32>
    %5 = vector.broadcast %4 : vector<1x128xf32> to vector<8x128xf32>
    %6 = arith.addf %3, %5 : vector<8x128xf32>
    %cst_5 = arith.constant 0.000000e+00 : f32
    %7 = vector.broadcast %cst_5 : f32 to vector<8x128xf32>
    %8 = arith.maximumf %6, %7 : vector<8x128xf32>
    %9 = arith.truncf %8 : vector<8x128xf32> to vector<8x128xbf16>
    %c0_6 = arith.constant 0 : index
    %c0_7 = arith.constant 0 : index
    %10 = vector.load %arg4[%c0_6, %c0_7] : memref<128x768xbf16, #tpu.memory_space<vmem>>, vector<128x768xbf16>
    %cst_8 = arith.constant dense<0.000000e+00> : vector<8x768xf32>
    %11 = tpu.matmul %9, %10, %cst_8 {dimension_numbers = #tpu.dot_dimension_numbers<[1], [0], [0], [1], [0, 0, 1, 1], [], []>} : vector<8x128xbf16>, vector<128x768xbf16>, vector<8x768xf32> -> vector<8x768xf32>
    %c0_9 = arith.constant 0 : index
    %c0_10 = arith.constant 0 : index
    %12 = vector.load %arg5[%c0_9, %c0_10] : memref<1x768xf32, #tpu.memory_space<vmem>>, vector<1x768xf32>
    %13 = vector.broadcast %12 : vector<1x768xf32> to vector<8x768xf32>
    %14 = arith.addf %11, %13 : vector<8x768xf32>
    %c0_11 = arith.constant 0 : index
    %c0_12 = arith.constant 0 : index
    %15 = vector.load %arg6[%c0_11, %c0_12] : memref<8x768xf32, #tpu.memory_space<vmem>>, vector<8x768xf32>
    %16 = arith.subf %14, %15 : vector<8x768xf32>
    %17 = arith.mulf %16, %16 : vector<8x768xf32>
    %cst_13 = arith.constant dense<0.000000e+00> : vector<8xf32>
    %18 = vector.multi_reduction <add>, %17, %cst_13 [1] : vector<8x768xf32> to vector<8xf32>
    %19 = vector.shape_cast %18 : vector<8xf32> to vector<8x1xf32>
    %cst_14 = arith.constant dense<0.000000e+00> : vector<1xf32>
    %20 = vector.multi_reduction <add>, %19, %cst_14 [0] : vector<8x1xf32> to vector<1xf32>
    %21 = vector.shape_cast %20 : vector<1xf32> to vector<1x1xf32>
    %c0_15 = arith.constant 0 : index
    %c0_16 = arith.constant 0 : index
    %22 = vector.load %arg7[%c0_15, %c0_16] : memref<1x1xf32, #tpu.memory_space<vmem>>, vector<1x1xf32>
    tpu.vector_store %arg7[%c0_15, %c0_16], %21 {strides = array<i32>} : memref<1x1xf32, #tpu.memory_space<vmem>>, vector<1x1xf32>,
    return
  }
  func.func @transform_0(%arg0: i32) -> (i32, i32) {
    %c0_i32 = arith.constant 0 : i32
    %c0_i32_0 = arith.constant 0 : i32
    %c0_i32_1 = arith.constant 0 : i32
    return %c0_i32, %c0_i32_0 : i32, i32
  }
  func.func @transform_1(%arg0: i32) -> (i32, i32) {
    %c0_i32 = arith.constant 0 : i32
    %c0_i32_0 = arith.constant 0 : i32
    %c0_i32_1 = arith.constant 0 : i32
    return %c0_i32, %c0_i32_0 : i32, i32
  }
  func.func @transform_2(%arg0: i32) -> (i32, i32) {
    %c0_i32 = arith.constant 0 : i32
    %c0_i32_0 = arith.constant 0 : i32
    %c0_i32_1 = arith.constant 0 : i32
    return %c0_i32, %c0_i32_0 : i32, i32
  }
  func.func @transform_3(%arg0: i32) -> (i32, i32) {
    %c0_i32 = arith.constant 0 : i32
    %c0_i32_0 = arith.constant 0 : i32
    %c0_i32_1 = arith.constant 0 : i32
    return %c0_i32, %c0_i32_0 : i32, i32
  }
  func.func @transform_4(%arg0: i32) -> (i32, i32) {
    %c0_i32 = arith.constant 0 : i32
    %c0_i32_0 = arith.constant 0 : i32
    %c0_i32_1 = arith.constant 0 : i32
    return %c0_i32, %c0_i32_0 : i32, i32
  }
  func.func @transform_5(%arg0: i32) -> (i32, i32) {
    %c0_i32 = arith.constant 0 : i32
    %c0_i32_0 = arith.constant 0 : i32
    %c0_i32_1 = arith.constant 0 : i32
    return %c0_i32, %c0_i32_0 : i32, i32
  }
  func.func @transform_6(%arg0: i32) -> (i32, i32) {
    %c0_i32 = arith.constant 0 : i32
    %c0_i32_0 = arith.constant 0 : i32
    %c0_i32_1 = arith.constant 0 : i32
    return %c0_i32, %c0_i32_0 : i32, i32
  }
}

module attributes {stable_mosaic.version = 11 : i64} {
  func.func @_encoder_kernel(%arg0: i32, %arg1: memref<8x768xf32, #tpu.memory_space<vmem>>, %arg2: memref<768x128xbf16, #tpu.memory_space<vmem>>, %arg3: memref<1x128xf32, #tpu.memory_space<vmem>>, %arg4: memref<128x512xbf16, #tpu.memory_space<vmem>>, %arg5: memref<1x512xf32, #tpu.memory_space<vmem>>, %arg6: memref<1x512xf32, #tpu.memory_space<vmem>>, %arg7: memref<1x512xf32, #tpu.memory_space<vmem>>, %arg8: memref<512x64xbf16, #tpu.memory_space<vmem>>, %arg9: memref<1x64xf32, #tpu.memory_space<vmem>>, %arg10: memref<128x64xf32, #tpu.memory_space<vmem>>, %arg11: memref<1x64xf32, #tpu.memory_space<vmem>>, %arg12: memref<8x128xf32, #tpu.memory_space<vmem>>) attributes {dimension_semantics = [#tpu.dimension_semantics<arbitrary>], iteration_bounds = array<i64: 1>, scalar_prefetch = 0 : i64, scratch_operands = 0 : i64, tpu.core_type = #tpu.core_type<tc>, window_params = [{pipeline_mode = #tpu.pipeline_mode<synchronous>, transform_indices = @transform_0, window_bounds = array<i64: 8, 768>}, {pipeline_mode = #tpu.pipeline_mode<synchronous>, transform_indices = @transform_1, window_bounds = array<i64: 768, 128>}, {pipeline_mode = #tpu.pipeline_mode<synchronous>, transform_indices = @transform_2, window_bounds = array<i64: 1, 128>}, {pipeline_mode = #tpu.pipeline_mode<synchronous>, transform_indices = @transform_3, window_bounds = array<i64: 128, 512>}, {pipeline_mode = #tpu.pipeline_mode<synchronous>, transform_indices = @transform_4, window_bounds = array<i64: 1, 512>}, {pipeline_mode = #tpu.pipeline_mode<synchronous>, transform_indices = @transform_5, window_bounds = array<i64: 1, 512>}, {pipeline_mode = #tpu.pipeline_mode<synchronous>, transform_indices = @transform_6, window_bounds = array<i64: 1, 512>}, {pipeline_mode = #tpu.pipeline_mode<synchronous>, transform_indices = @transform_7, window_bounds = array<i64: 512, 64>}, {pipeline_mode = #tpu.pipeline_mode<synchronous>, transform_indices = @transform_8, window_bounds = array<i64: 1, 64>}, {pipeline_mode = #tpu.pipeline_mode<synchronous>, transform_indices = @transform_9, window_bounds = array<i64: 128, 64>}, {pipeline_mode = #tpu.pipeline_mode<synchronous>, transform_indices = @transform_10, window_bounds = array<i64: 1, 64>}, {pipeline_mode = #tpu.pipeline_mode<synchronous>, transform_indices = @transform_11, window_bounds = array<i64: 8, 128>}]} {
    %c0 = arith.constant 0 : index
    %c0_0 = arith.constant 0 : index
    %0 = vector.load %arg1[%c0, %c0_0] : memref<8x768xf32, #tpu.memory_space<vmem>>, vector<8x768xf32>
    %1 = arith.truncf %0 : vector<8x768xf32> to vector<8x768xbf16>
    %c0_1 = arith.constant 0 : index
    %c0_2 = arith.constant 0 : index
    %2 = vector.load %arg2[%c0_1, %c0_2] : memref<768x128xbf16, #tpu.memory_space<vmem>>, vector<768x128xbf16>
    %cst = arith.constant dense<0.000000e+00> : vector<8x128xf32>
    %3 = tpu.matmul %1, %2, %cst {dimension_numbers = #tpu.dot_dimension_numbers<[1], [0], [0], [1], [0, 0, 1, 1], [], []>} : vector<8x768xbf16>, vector<768x128xbf16>, vector<8x128xf32> -> vector<8x128xf32>
    %c0_3 = arith.constant 0 : index
    %c0_4 = arith.constant 0 : index
    %4 = vector.load %arg3[%c0_3, %c0_4] : memref<1x128xf32, #tpu.memory_space<vmem>>, vector<1x128xf32>
    %5 = vector.broadcast %4 : vector<1x128xf32> to vector<8x128xf32>
    %6 = arith.addf %3, %5 : vector<8x128xf32>
    %cst_5 = arith.constant 0.000000e+00 : f32
    %7 = vector.broadcast %cst_5 : f32 to vector<8x128xf32>
    %8 = arith.maximumf %6, %7 : vector<8x128xf32>
    %9 = arith.truncf %8 : vector<8x128xf32> to vector<8x128xbf16>
    %c0_6 = arith.constant 0 : index
    %c0_7 = arith.constant 0 : index
    %10 = vector.load %arg4[%c0_6, %c0_7] : memref<128x512xbf16, #tpu.memory_space<vmem>>, vector<128x512xbf16>
    %cst_8 = arith.constant dense<0.000000e+00> : vector<8x512xf32>
    %11 = tpu.matmul %9, %10, %cst_8 {dimension_numbers = #tpu.dot_dimension_numbers<[1], [0], [0], [1], [0, 0, 1, 1], [], []>} : vector<8x128xbf16>, vector<128x512xbf16>, vector<8x512xf32> -> vector<8x512xf32>
    %c0_9 = arith.constant 0 : index
    %c0_10 = arith.constant 0 : index
    %12 = vector.load %arg5[%c0_9, %c0_10] : memref<1x512xf32, #tpu.memory_space<vmem>>, vector<1x512xf32>
    %13 = vector.broadcast %12 : vector<1x512xf32> to vector<8x512xf32>
    %14 = arith.addf %11, %13 : vector<8x512xf32>
    %cst_11 = arith.constant dense<0.000000e+00> : vector<8xf32>
    %15 = vector.multi_reduction <add>, %14, %cst_11 [1] : vector<8x512xf32> to vector<8xf32>
    %16 = vector.shape_cast %15 : vector<8xf32> to vector<8x1xf32>
    %cst_12 = arith.constant 5.120000e+02 : f32
    %17 = vector.broadcast %cst_12 : f32 to vector<8x1xf32>
    %18 = arith.divf %16, %17 : vector<8x1xf32>
    %19 = vector.broadcast %18 : vector<8x1xf32> to vector<8x512xf32>
    %20 = arith.subf %14, %19 : vector<8x512xf32>
    %21 = arith.mulf %20, %20 : vector<8x512xf32>
    %cst_13 = arith.constant dense<0.000000e+00> : vector<8xf32>
    %22 = vector.multi_reduction <add>, %21, %cst_13 [1] : vector<8x512xf32> to vector<8xf32>
    %23 = vector.shape_cast %22 : vector<8xf32> to vector<8x1xf32>
    %cst_14 = arith.constant 5.120000e+02 : f32
    %24 = vector.broadcast %cst_14 : f32 to vector<8x1xf32>
    %25 = arith.divf %23, %24 : vector<8x1xf32>
    %26 = vector.broadcast %18 : vector<8x1xf32> to vector<8x512xf32>
    %27 = arith.subf %14, %26 : vector<8x512xf32>
    %cst_15 = arith.constant 9.99999974E-6 : f32
    %28 = vector.broadcast %cst_15 : f32 to vector<8x1xf32>
    %29 = arith.addf %25, %28 : vector<8x1xf32>
    %30 = math.rsqrt %29 : vector<8x1xf32>
    %31 = vector.broadcast %30 : vector<8x1xf32> to vector<8x512xf32>
    %32 = arith.mulf %27, %31 : vector<8x512xf32>
    %c0_16 = arith.constant 0 : index
    %c0_17 = arith.constant 0 : index
    %33 = vector.load %arg6[%c0_16, %c0_17] : memref<1x512xf32, #tpu.memory_space<vmem>>, vector<1x512xf32>
    %34 = vector.broadcast %33 : vector<1x512xf32> to vector<8x512xf32>
    %35 = arith.mulf %32, %34 : vector<8x512xf32>
    %c0_18 = arith.constant 0 : index
    %c0_19 = arith.constant 0 : index
    %36 = vector.load %arg7[%c0_18, %c0_19] : memref<1x512xf32, #tpu.memory_space<vmem>>, vector<1x512xf32>
    %37 = vector.broadcast %36 : vector<1x512xf32> to vector<8x512xf32>
    %38 = arith.addf %35, %37 : vector<8x512xf32>
    %cst_20 = arith.constant 0.000000e+00 : f32
    %39 = vector.broadcast %cst_20 : f32 to vector<8x512xf32>
    %40 = arith.maximumf %38, %39 : vector<8x512xf32>
    %41 = arith.truncf %40 : vector<8x512xf32> to vector<8x512xbf16>
    %c0_21 = arith.constant 0 : index
    %c0_22 = arith.constant 0 : index
    %42 = vector.load %arg8[%c0_21, %c0_22] : memref<512x64xbf16, #tpu.memory_space<vmem>>, vector<512x64xbf16>
    %cst_23 = arith.constant dense<0.000000e+00> : vector<8x64xf32>
    %43 = tpu.matmul %41, %42, %cst_23 {dimension_numbers = #tpu.dot_dimension_numbers<[1], [0], [0], [1], [0, 0, 1, 1], [], []>} : vector<8x512xbf16>, vector<512x64xbf16>, vector<8x64xf32> -> vector<8x64xf32>
    %c0_24 = arith.constant 0 : index
    %c0_25 = arith.constant 0 : index
    %44 = vector.load %arg9[%c0_24, %c0_25] : memref<1x64xf32, #tpu.memory_space<vmem>>, vector<1x64xf32>
    %45 = vector.broadcast %44 : vector<1x64xf32> to vector<8x64xf32>
    %46 = arith.addf %43, %45 : vector<8x64xf32>
    %cst_26 = arith.constant dense<0.000000e+00> : vector<8xf32>
    %47 = vector.multi_reduction <add>, %8, %cst_26 [1] : vector<8x128xf32> to vector<8xf32>
    %48 = vector.shape_cast %47 : vector<8xf32> to vector<8x1xf32>
    %cst_27 = arith.constant 1.280000e+02 : f32
    %49 = vector.broadcast %cst_27 : f32 to vector<8x1xf32>
    %50 = arith.divf %48, %49 : vector<8x1xf32>
    %51 = vector.broadcast %50 : vector<8x1xf32> to vector<8x128xf32>
    %52 = arith.subf %8, %51 : vector<8x128xf32>
    %53 = arith.mulf %52, %52 : vector<8x128xf32>
    %cst_28 = arith.constant dense<0.000000e+00> : vector<8xf32>
    %54 = vector.multi_reduction <add>, %53, %cst_28 [1] : vector<8x128xf32> to vector<8xf32>
    %55 = vector.shape_cast %54 : vector<8xf32> to vector<8x1xf32>
    %cst_29 = arith.constant 1.280000e+02 : f32
    %56 = vector.broadcast %cst_29 : f32 to vector<8x1xf32>
    %57 = arith.divf %55, %56 : vector<8x1xf32>
    %58 = vector.broadcast %50 : vector<8x1xf32> to vector<8x128xf32>
    %59 = arith.subf %8, %58 : vector<8x128xf32>
    %cst_30 = arith.constant 9.99999974E-6 : f32
    %60 = vector.broadcast %cst_30 : f32 to vector<8x1xf32>
    %61 = arith.addf %57, %60 : vector<8x1xf32>
    %62 = math.rsqrt %61 : vector<8x1xf32>
    %63 = vector.broadcast %62 : vector<8x1xf32> to vector<8x128xf32>
    %64 = arith.mulf %59, %63 : vector<8x128xf32>
    %c0_31 = arith.constant 0 : index
    %c0_32 = arith.constant 0 : index
    %65 = vector.load %arg10[%c0_31, %c0_32] : memref<128x64xf32, #tpu.memory_space<vmem>>, vector<128x64xf32>
    %cst_33 = arith.constant dense<0.000000e+00> : vector<8x64xf32>
    %66 = tpu.matmul %64, %65, %cst_33 {dimension_numbers = #tpu.dot_dimension_numbers<[1], [0], [0], [1], [0, 0, 1, 1], [], []>} : vector<8x128xf32>, vector<128x64xf32>, vector<8x64xf32> -> vector<8x64xf32>
    %c0_34 = arith.constant 0 : index
    %c0_35 = arith.constant 0 : index
    %67 = vector.load %arg11[%c0_34, %c0_35] : memref<1x64xf32, #tpu.memory_space<vmem>>, vector<1x64xf32>
    %68 = vector.broadcast %67 : vector<1x64xf32> to vector<8x64xf32>
    %69 = arith.addf %66, %68 : vector<8x64xf32>
    %70 = tpu.concatenate %69, %46 in 1 : vector<8x64xf32>, vector<8x64xf32> -> vector<8x128xf32>
    %c0_36 = arith.constant 0 : index
    %c0_37 = arith.constant 0 : index
    %71 = vector.load %arg12[%c0_36, %c0_37] : memref<8x128xf32, #tpu.memory_space<vmem>>, vector<8x128xf32>
    tpu.vector_store %arg12[%c0_36, %c0_37], %70 {strides = array<i32>} : memref<8x128xf32, #tpu.memory_space<vmem>>, vector<8x128xf32>,
    return
  }
  func.func @transform_0(%arg0: i32) -> (i32, i32) {
    %c0_i32 = arith.constant 0 : i32
    %c0_i32_0 = arith.constant 0 : i32
    %c0_i32_1 = arith.constant 0 : i32
    return %c0_i32, %c0_i32_0 : i32, i32
  }
  func.func @transform_1(%arg0: i32) -> (i32, i32) {
    %c0_i32 = arith.constant 0 : i32
    %c0_i32_0 = arith.constant 0 : i32
    %c0_i32_1 = arith.constant 0 : i32
    return %c0_i32, %c0_i32_0 : i32, i32
  }
  func.func @transform_2(%arg0: i32) -> (i32, i32) {
    %c0_i32 = arith.constant 0 : i32
    %c0_i32_0 = arith.constant 0 : i32
    %c0_i32_1 = arith.constant 0 : i32
    return %c0_i32, %c0_i32_0 : i32, i32
  }
  func.func @transform_3(%arg0: i32) -> (i32, i32) {
    %c0_i32 = arith.constant 0 : i32
    %c0_i32_0 = arith.constant 0 : i32
    %c0_i32_1 = arith.constant 0 : i32
    return %c0_i32, %c0_i32_0 : i32, i32
  }
  func.func @transform_4(%arg0: i32) -> (i32, i32) {
    %c0_i32 = arith.constant 0 : i32
    %c0_i32_0 = arith.constant 0 : i32
    %c0_i32_1 = arith.constant 0 : i32
    return %c0_i32, %c0_i32_0 : i32, i32
  }
  func.func @transform_5(%arg0: i32) -> (i32, i32) {
    %c0_i32 = arith.constant 0 : i32
    %c0_i32_0 = arith.constant 0 : i32
    %c0_i32_1 = arith.constant 0 : i32
    return %c0_i32, %c0_i32_0 : i32, i32
  }
  func.func @transform_6(%arg0: i32) -> (i32, i32) {
    %c0_i32 = arith.constant 0 : i32
    %c0_i32_0 = arith.constant 0 : i32
    %c0_i32_1 = arith.constant 0 : i32
    return %c0_i32, %c0_i32_0 : i32, i32
  }
  func.func @transform_7(%arg0: i32) -> (i32, i32) {
    %c0_i32 = arith.constant 0 : i32
    %c0_i32_0 = arith.constant 0 : i32
    %c0_i32_1 = arith.constant 0 : i32
    return %c0_i32, %c0_i32_0 : i32, i32
  }
  func.func @transform_8(%arg0: i32) -> (i32, i32) {
    %c0_i32 = arith.constant 0 : i32
    %c0_i32_0 = arith.constant 0 : i32
    %c0_i32_1 = arith.constant 0 : i32
    return %c0_i32, %c0_i32_0 : i32, i32
  }
  func.func @transform_9(%arg0: i32) -> (i32, i32) {
    %c0_i32 = arith.constant 0 : i32
    %c0_i32_0 = arith.constant 0 : i32
    %c0_i32_1 = arith.constant 0 : i32
    return %c0_i32, %c0_i32_0 : i32, i32
  }
  func.func @transform_10(%arg0: i32) -> (i32, i32) {
    %c0_i32 = arith.constant 0 : i32
    %c0_i32_0 = arith.constant 0 : i32
    %c0_i32_1 = arith.constant 0 : i32
    return %c0_i32, %c0_i32_0 : i32, i32
  }
  func.func @transform_11(%arg0: i32) -> (i32, i32) {
    %c0_i32 = arith.constant 0 : i32
    %c0_i32_0 = arith.constant 0 : i32
    %c0_i32_1 = arith.constant 0 : i32
    return %c0_i32, %c0_i32_0 : i32, i32
  }
}

module attributes {stable_mosaic.version = 11 : i64} {
  func.func @_gmm_head_kernel(%arg0: i32, %arg1: memref<8x32xf32, #tpu.memory_space<vmem>>, %arg2: memref<8x32xf32, #tpu.memory_space<vmem>>, %arg3: memref<8x32xf32, #tpu.memory_space<vmem>>, %arg4: memref<15x32xf32, #tpu.memory_space<vmem>>, %arg5: memref<15x32xf32, #tpu.memory_space<vmem>>, %arg6: memref<15x64xf32, #tpu.memory_space<vmem>>, %arg7: memref<1x64xf32, #tpu.memory_space<vmem>>, %arg8: memref<8x15xf32, #tpu.memory_space<vmem>>, %arg9: memref<8x64xf32, #tpu.memory_space<vmem>>, %arg10: memref<1x1xf32, #tpu.memory_space<vmem>>, %arg11: memref<1x1xf32, #tpu.memory_space<vmem>>) attributes {dimension_semantics = [#tpu.dimension_semantics<arbitrary>], iteration_bounds = array<i64: 1>, scalar_prefetch = 0 : i64, scratch_operands = 0 : i64, tpu.core_type = #tpu.core_type<tc>, window_params = [{pipeline_mode = #tpu.pipeline_mode<synchronous>, transform_indices = @transform_0, window_bounds = array<i64: 8, 32>}, {pipeline_mode = #tpu.pipeline_mode<synchronous>, transform_indices = @transform_1, window_bounds = array<i64: 8, 32>}, {pipeline_mode = #tpu.pipeline_mode<synchronous>, transform_indices = @transform_2, window_bounds = array<i64: 8, 32>}, {pipeline_mode = #tpu.pipeline_mode<synchronous>, transform_indices = @transform_3, window_bounds = array<i64: 15, 32>}, {pipeline_mode = #tpu.pipeline_mode<synchronous>, transform_indices = @transform_4, window_bounds = array<i64: 15, 32>}, {pipeline_mode = #tpu.pipeline_mode<synchronous>, transform_indices = @transform_5, window_bounds = array<i64: 15, 64>}, {pipeline_mode = #tpu.pipeline_mode<synchronous>, transform_indices = @transform_6, window_bounds = array<i64: 1, 64>}, {pipeline_mode = #tpu.pipeline_mode<synchronous>, transform_indices = @transform_7, window_bounds = array<i64: 8, 15>}, {pipeline_mode = #tpu.pipeline_mode<synchronous>, transform_indices = @transform_8, window_bounds = array<i64: 8, 64>}, {pipeline_mode = #tpu.pipeline_mode<synchronous>, transform_indices = @transform_9, window_bounds = array<i64: 1, 1>}, {pipeline_mode = #tpu.pipeline_mode<synchronous>, transform_indices = @transform_10, window_bounds = array<i64: 1, 1>}]} {
    %c0 = arith.constant 0 : index
    %c0_0 = arith.constant 0 : index
    %0 = vector.load %arg1[%c0, %c0_0] : memref<8x32xf32, #tpu.memory_space<vmem>>, vector<8x32xf32>
    %c0_1 = arith.constant 0 : index
    %c0_2 = arith.constant 0 : index
    %1 = vector.load %arg2[%c0_1, %c0_2] : memref<8x32xf32, #tpu.memory_space<vmem>>, vector<8x32xf32>
    %c0_3 = arith.constant 0 : index
    %c0_4 = arith.constant 0 : index
    %2 = vector.load %arg3[%c0_3, %c0_4] : memref<8x32xf32, #tpu.memory_space<vmem>>, vector<8x32xf32>
    %c0_5 = arith.constant 0 : index
    %c0_6 = arith.constant 0 : index
    %3 = vector.load %arg4[%c0_5, %c0_6] : memref<15x32xf32, #tpu.memory_space<vmem>>, vector<15x32xf32>
    %c0_7 = arith.constant 0 : index
    %c0_8 = arith.constant 0 : index
    %4 = vector.load %arg5[%c0_7, %c0_8] : memref<15x32xf32, #tpu.memory_space<vmem>>, vector<15x32xf32>
    %cst = arith.constant 0.000000e+00 : f32
    %5 = vector.broadcast %cst : f32 to vector<15x32xf32>
    %6 = arith.subf %5, %4 : vector<15x32xf32>
    %7 = math.exp %6 : vector<15x32xf32>
    %8 = vector.shape_cast %0 : vector<8x32xf32> to vector<8x1x32xf32>
    %9 = vector.shape_cast %3 : vector<15x32xf32> to vector<1x15x32xf32>
    %10 = vector.broadcast %8 : vector<8x1x32xf32> to vector<8x15x32xf32>
    %11 = vector.broadcast %9 : vector<1x15x32xf32> to vector<8x15x32xf32>
    %12 = arith.subf %10, %11 : vector<8x15x32xf32>
    %13 = vector.shape_cast %4 : vector<15x32xf32> to vector<1x15x32xf32>
    %14 = arith.mulf %12, %12 : vector<8x15x32xf32>
    %15 = vector.shape_cast %7 : vector<15x32xf32> to vector<1x15x32xf32>
    %16 = vector.broadcast %15 : vector<1x15x32xf32> to vector<8x15x32xf32>
    %17 = arith.mulf %14, %16 : vector<8x15x32xf32>
    %18 = vector.broadcast %13 : vector<1x15x32xf32> to vector<8x15x32xf32>
    %19 = arith.addf %18, %17 : vector<8x15x32xf32>
    %cst_9 = arith.constant dense<0.000000e+00> : vector<8x15xf32>
    %20 = vector.multi_reduction <add>, %19, %cst_9 [2] : vector<8x15x32xf32> to vector<8x15xf32>
    %cst_10 = arith.constant 58.8120651 : f32
    %21 = vector.broadcast %cst_10 : f32 to vector<8x15xf32>
    %22 = arith.addf %21, %20 : vector<8x15xf32>
    %cst_11 = arith.constant -5.000000e-01 : f32
    %23 = vector.broadcast %cst_11 : f32 to vector<8x15xf32>
    %24 = arith.mulf %23, %22 : vector<8x15xf32>
    %cst_12 = arith.constant -2.70805025 : f32
    %25 = vector.broadcast %cst_12 : f32 to vector<8x15xf32>
    %26 = arith.addf %24, %25 : vector<8x15xf32>
    %cst_13 = arith.constant 1.000000e+00 : f32
    %27 = vector.broadcast %cst_13 : f32 to vector<8x15xf32>
    %28 = arith.divf %26, %27 : vector<8x15xf32>
    %cst_14 = arith.constant dense<0xFF800000> : vector<8xf32>
    %29 = vector.multi_reduction <maximumf>, %28, %cst_14 [1] : vector<8x15xf32> to vector<8xf32>
    %30 = vector.shape_cast %29 : vector<8xf32> to vector<8x1xf32>
    %31 = vector.broadcast %30 : vector<8x1xf32> to vector<8x15xf32>
    %32 = arith.subf %28, %31 : vector<8x15xf32>
    %33 = math.exp %32 : vector<8x15xf32>
    %34 = vector.broadcast %30 : vector<8x1xf32> to vector<8x15xf32>
    %35 = arith.subf %28, %34 : vector<8x15xf32>
    %cst_15 = arith.constant dense<0.000000e+00> : vector<8xf32>
    %36 = vector.multi_reduction <add>, %33, %cst_15 [1] : vector<8x15xf32> to vector<8xf32>
    %37 = vector.shape_cast %36 : vector<8xf32> to vector<8x1xf32>
    %38 = math.log %37 : vector<8x1xf32>
    %39 = vector.broadcast %38 : vector<8x1xf32> to vector<8x15xf32>
    %40 = arith.subf %35, %39 : vector<8x15xf32>
    %41 = math.exp %40 : vector<8x15xf32>
    %42 = vector.shape_cast %1 : vector<8x32xf32> to vector<8x1x32xf32>
    %43 = vector.shape_cast %3 : vector<15x32xf32> to vector<1x15x32xf32>
    %44 = vector.broadcast %42 : vector<8x1x32xf32> to vector<8x15x32xf32>
    %45 = vector.broadcast %43 : vector<1x15x32xf32> to vector<8x15x32xf32>
    %46 = arith.subf %44, %45 : vector<8x15x32xf32>
    %47 = vector.shape_cast %4 : vector<15x32xf32> to vector<1x15x32xf32>
    %48 = vector.shape_cast %2 : vector<8x32xf32> to vector<8x1x32xf32>
    %49 = vector.shape_cast %4 : vector<15x32xf32> to vector<1x15x32xf32>
    %50 = vector.broadcast %48 : vector<8x1x32xf32> to vector<8x15x32xf32>
    %51 = vector.broadcast %49 : vector<1x15x32xf32> to vector<8x15x32xf32>
    %52 = arith.subf %50, %51 : vector<8x15x32xf32>
    %53 = math.exp %52 : vector<8x15x32xf32>
    %54 = vector.broadcast %47 : vector<1x15x32xf32> to vector<8x15x32xf32>
    %55 = arith.addf %54, %53 : vector<8x15x32xf32>
    %56 = arith.mulf %46, %46 : vector<8x15x32xf32>
    %57 = vector.shape_cast %7 : vector<15x32xf32> to vector<1x15x32xf32>
    %58 = vector.broadcast %57 : vector<1x15x32xf32> to vector<8x15x32xf32>
    %59 = arith.mulf %56, %58 : vector<8x15x32xf32>
    %60 = arith.addf %55, %59 : vector<8x15x32xf32>
    %cst_16 = arith.constant dense<0.000000e+00> : vector<8x15xf32>
    %61 = vector.multi_reduction <add>, %60, %cst_16 [2] : vector<8x15x32xf32> to vector<8x15xf32>
    %62 = arith.mulf %61, %41 : vector<8x15xf32>
    %cst_17 = arith.constant dense<0.000000e+00> : vector<8xf32>
    %63 = vector.multi_reduction <add>, %62, %cst_17 [1] : vector<8x15xf32> to vector<8xf32>
    %64 = vector.shape_cast %63 : vector<8xf32> to vector<8x1xf32>
    %cst_18 = arith.constant -5.000000e-01 : f32
    %65 = vector.broadcast %cst_18 : f32 to vector<8x1xf32>
    %66 = arith.mulf %65, %64 : vector<8x1xf32>
    %cst_19 = arith.constant 1.000000e+00 : f32
    %67 = vector.broadcast %cst_19 : f32 to vector<8x32xf32>
    %68 = arith.addf %67, %2 : vector<8x32xf32>
    %cst_20 = arith.constant 5.000000e-01 : f32
    %69 = vector.broadcast %cst_20 : f32 to vector<8x32xf32>
    %70 = arith.mulf %69, %68 : vector<8x32xf32>
    %cst_21 = arith.constant dense<0.000000e+00> : vector<8xf32>
    %71 = vector.multi_reduction <add>, %70, %cst_21 [1] : vector<8x32xf32> to vector<8xf32>
    %72 = vector.shape_cast %71 : vector<8xf32> to vector<8x1xf32>
    %cst_22 = arith.constant 0.000000e+00 : f32
    %73 = vector.broadcast %cst_22 : f32 to vector<8x1xf32>
    %74 = arith.subf %73, %72 : vector<8x1xf32>
    %75 = arith.subf %66, %74 : vector<8x1xf32>
    %cst_23 = arith.constant dense<0.000000e+00> : vector<1xf32>
    %76 = vector.multi_reduction <add>, %75, %cst_23 [0] : vector<8x1xf32> to vector<1xf32>
    %77 = vector.shape_cast %76 : vector<1xf32> to vector<1x1xf32>
    %cst_24 = arith.constant 8.000000e+00 : f32
    %78 = vector.broadcast %cst_24 : f32 to vector<1x1xf32>
    %79 = arith.divf %77, %78 : vector<1x1xf32>
    %c0_25 = arith.constant 0 : index
    %c0_26 = arith.constant 0 : index
    %80 = vector.load %arg10[%c0_25, %c0_26] : memref<1x1xf32, #tpu.memory_space<vmem>>, vector<1x1xf32>
    tpu.vector_store %arg10[%c0_25, %c0_26], %79 {strides = array<i32>} : memref<1x1xf32, #tpu.memory_space<vmem>>, vector<1x1xf32>,
    %cst_27 = arith.constant -2.70805025 : f32
    %81 = vector.broadcast %cst_27 : f32 to vector<8x15xf32>
    %82 = arith.subf %81, %40 : vector<8x15xf32>
    %83 = arith.mulf %41, %82 : vector<8x15xf32>
    %cst_28 = arith.constant dense<0.000000e+00> : vector<8xf32>
    %84 = vector.multi_reduction <add>, %83, %cst_28 [1] : vector<8x15xf32> to vector<8xf32>
    %85 = vector.shape_cast %84 : vector<8xf32> to vector<8x1xf32>
    %cst_29 = arith.constant dense<0.000000e+00> : vector<1xf32>
    %86 = vector.multi_reduction <add>, %85, %cst_29 [0] : vector<8x1xf32> to vector<1xf32>
    %87 = vector.shape_cast %86 : vector<1xf32> to vector<1x1xf32>
    %cst_30 = arith.constant 8.000000e+00 : f32
    %88 = vector.broadcast %cst_30 : f32 to vector<1x1xf32>
    %89 = arith.divf %87, %88 : vector<1x1xf32>
    %c0_31 = arith.constant 0 : index
    %c0_32 = arith.constant 0 : index
    %90 = vector.load %arg11[%c0_31, %c0_32] : memref<1x1xf32, #tpu.memory_space<vmem>>, vector<1x1xf32>
    tpu.vector_store %arg11[%c0_31, %c0_32], %89 {strides = array<i32>} : memref<1x1xf32, #tpu.memory_space<vmem>>, vector<1x1xf32>,
    %c0_33 = arith.constant 0 : index
    %c0_34 = arith.constant 0 : index
    %91 = vector.load %arg8[%c0_33, %c0_34] : memref<8x15xf32, #tpu.memory_space<vmem>>, vector<8x15xf32>
    tpu.vector_store %arg8[%c0_33, %c0_34], %41 {strides = array<i32>} : memref<8x15xf32, #tpu.memory_space<vmem>>, vector<8x15xf32>,
    %c0_35 = arith.constant 0 : index
    %c0_36 = arith.constant 0 : index
    %92 = vector.load %arg6[%c0_35, %c0_36] : memref<15x64xf32, #tpu.memory_space<vmem>>, vector<15x64xf32>
    %cst_37 = arith.constant dense<0.000000e+00> : vector<8x64xf32>
    %93 = tpu.matmul %41, %92, %cst_37 {dimension_numbers = #tpu.dot_dimension_numbers<[1], [0], [0], [1], [0, 0, 1, 1], [], []>} : vector<8x15xf32>, vector<15x64xf32>, vector<8x64xf32> -> vector<8x64xf32>
    %c0_38 = arith.constant 0 : index
    %c0_39 = arith.constant 0 : index
    %94 = vector.load %arg7[%c0_38, %c0_39] : memref<1x64xf32, #tpu.memory_space<vmem>>, vector<1x64xf32>
    %95 = vector.broadcast %94 : vector<1x64xf32> to vector<8x64xf32>
    %96 = arith.addf %93, %95 : vector<8x64xf32>
    %c0_40 = arith.constant 0 : index
    %c0_41 = arith.constant 0 : index
    %97 = vector.load %arg9[%c0_40, %c0_41] : memref<8x64xf32, #tpu.memory_space<vmem>>, vector<8x64xf32>
    tpu.vector_store %arg9[%c0_40, %c0_41], %96 {strides = array<i32>} : memref<8x64xf32, #tpu.memory_space<vmem>>, vector<8x64xf32>,
    return
  }
  func.func @transform_0(%arg0: i32) -> (i32, i32) {
    %c0_i32 = arith.constant 0 : i32
    %c0_i32_0 = arith.constant 0 : i32
    %c0_i32_1 = arith.constant 0 : i32
    return %c0_i32, %c0_i32_0 : i32, i32
  }
  func.func @transform_1(%arg0: i32) -> (i32, i32) {
    %c0_i32 = arith.constant 0 : i32
    %c0_i32_0 = arith.constant 0 : i32
    %c0_i32_1 = arith.constant 0 : i32
    return %c0_i32, %c0_i32_0 : i32, i32
  }
  func.func @transform_2(%arg0: i32) -> (i32, i32) {
    %c0_i32 = arith.constant 0 : i32
    %c0_i32_0 = arith.constant 0 : i32
    %c0_i32_1 = arith.constant 0 : i32
    return %c0_i32, %c0_i32_0 : i32, i32
  }
  func.func @transform_3(%arg0: i32) -> (i32, i32) {
    %c0_i32 = arith.constant 0 : i32
    %c0_i32_0 = arith.constant 0 : i32
    %c0_i32_1 = arith.constant 0 : i32
    return %c0_i32, %c0_i32_0 : i32, i32
  }
  func.func @transform_4(%arg0: i32) -> (i32, i32) {
    %c0_i32 = arith.constant 0 : i32
    %c0_i32_0 = arith.constant 0 : i32
    %c0_i32_1 = arith.constant 0 : i32
    return %c0_i32, %c0_i32_0 : i32, i32
  }
  func.func @transform_5(%arg0: i32) -> (i32, i32) {
    %c0_i32 = arith.constant 0 : i32
    %c0_i32_0 = arith.constant 0 : i32
    %c0_i32_1 = arith.constant 0 : i32
    return %c0_i32, %c0_i32_0 : i32, i32
  }
  func.func @transform_6(%arg0: i32) -> (i32, i32) {
    %c0_i32 = arith.constant 0 : i32
    %c0_i32_0 = arith.constant 0 : i32
    %c0_i32_1 = arith.constant 0 : i32
    return %c0_i32, %c0_i32_0 : i32, i32
  }
  func.func @transform_7(%arg0: i32) -> (i32, i32) {
    %c0_i32 = arith.constant 0 : i32
    %c0_i32_0 = arith.constant 0 : i32
    %c0_i32_1 = arith.constant 0 : i32
    return %c0_i32, %c0_i32_0 : i32, i32
  }
  func.func @transform_8(%arg0: i32) -> (i32, i32) {
    %c0_i32 = arith.constant 0 : i32
    %c0_i32_0 = arith.constant 0 : i32
    %c0_i32_1 = arith.constant 0 : i32
    return %c0_i32, %c0_i32_0 : i32, i32
  }
  func.func @transform_9(%arg0: i32) -> (i32, i32) {
    %c0_i32 = arith.constant 0 : i32
    %c0_i32_0 = arith.constant 0 : i32
    %c0_i32_1 = arith.constant 0 : i32
    return %c0_i32, %c0_i32_0 : i32, i32
  }
  func.func @transform_10(%arg0: i32) -> (i32, i32) {
    %c0_i32 = arith.constant 0 : i32
    %c0_i32_0 = arith.constant 0 : i32
    %c0_i32_1 = arith.constant 0 : i32
    return %c0_i32, %c0_i32_0 : i32, i32
  }
}

</mosaic_0001>

<llo_original>
// kernel: forward.6
$region0: #{forward.6}
  #allocation0 [shape = 'u32[]', space=smem, size = 0x4, offset = 0x4, fixed_abs, tag = 'smem constant byte address 0x4 - core index']
  #allocation1 [shape = 'u32[144,128]{1,0:T(1,128)}', space=vmem, size = 0x12000, scoped, tag = 'internal scratch']
  %s0 = inlined_call_operand.vmem [shape: f32[8,32], index: 0, kind: input, shape index: {}]
  %s1 = inlined_call_operand.vmem [shape: bf16[32,128], index: 1, kind: input, shape index: {}]
  %s2 = inlined_call_operand.vmem [shape: f32[1,128], index: 2, kind: input, shape index: {}]
  %s3 = inlined_call_operand.vmem [shape: bf16[128,768], index: 3, kind: input, shape index: {}]
  %s4 = inlined_call_operand.vmem [shape: f32[1,768], index: 4, kind: input, shape index: {}]
  %s5 = inlined_call_operand.vmem [shape: f32[8,768], index: 5, kind: input, shape index: {}]
  %s6 = inlined_call_operand.hbm [shape: f32[1,1], index: 6, kind: output, shape index: {}]
  %s7 = sld [smem:[#allocation0]]
  $region34: #{forward.6} parent=0
    _
  %s9 = ssub.s32 1, %s7
  %s10 = scalar_select 0, %s9, %s7
  $region1: #{forward.6} parent=0
    #allocation2 [shape = 'u8[512]{0}', space=vmem, size = 0x400, scoped, tag = 'output window, operand 0, single buffered']
    #allocation3 [shape = 's32[1]{0}', space=sflag, size = 0x4, scoped, tag = 'scoped memory for forward.6']
    %11 = vsyncpa [#allocation3], 0
    // Predicated region
    $region2: #{forward.6} parent=1 // pred_check
      _
    $region3: #{forward.6} parent=1 // pred_check_branch
      %13 = sbr.rel (0) target = $region5
    $region4: #{forward.6} parent=1 // pred_region
      _
    $region5: #{forward.6} parent=1 // pred_fallthru
      _
    // Predicated region
    $region6: #{forward.6} parent=1 // pred_check
      _
    $region7: #{forward.6} parent=1 // pred_check_branch
      %15 = sbr.rel (0) target = $region9
    $region8: #{forward.6} parent=1 // pred_region
      _
    $region9: #{forward.6} parent=1 // pred_fallthru
      _
    // Predicated region
    $region10: #{forward.6} parent=1 // pred_check
      _
    $region11: #{forward.6} parent=1 // pred_check_branch
      %17 = sbr.rel (0) target = $region13
    $region12: #{forward.6} parent=1 // pred_region
      _
    $region13: #{forward.6} parent=1 // pred_fallthru
      _
    // Predicated region
    $region14: #{forward.6} parent=1 // pred_check
      _
    $region15: #{forward.6} parent=1 // pred_check_branch
      %19 = sbr.rel (0) target = $region17
    $region16: #{forward.6} parent=1 // pred_region
      _
    $region17: #{forward.6} parent=1 // pred_fallthru
      _
    // Predicated region
    $region18: #{forward.6} parent=1 // pred_check
      _
    $region19: #{forward.6} parent=1 // pred_check_branch
      %21 = sbr.rel (0) target = $region21
    $region20: #{forward.6} parent=1 // pred_region
      _
    $region21: #{forward.6} parent=1 // pred_fallthru
      _
    // Predicated region
    $region22: #{forward.6} parent=1 // pred_check
      _
    $region23: #{forward.6} parent=1 // pred_check_branch
      %23 = sbr.rel (0) target = $region25
    $region24: #{forward.6} parent=1 // pred_region
      _
    $region25: #{forward.6} parent=1 // pred_fallthru
      _
    %v25 = vld [vmem:[%s0] sm:$0xff]
    %v26 = vpack.c.bf16 %v25, %v25
    %v27 = vld [vmem:[%s1] sm:$0xf]
    %v28 = vld [vmem:[%s1 + $0x4] sm:$0xf]
    %v29 = vld [vmem:[%s1 + $0x8] sm:$0xf]
    %v30 = vld [vmem:[%s1 + $0xc] sm:$0xf]
    %v31 = vld [vmem:[%s2] sm:$0x1]
    %v33 = vlaneseq
    %v34 = vshrl.u32 %v33, 7
    %v35 = vsub.s32 0, %v34
    %v36 = vrot.slane %v31, %v35
    %v42 = vunpack.c.l.b16 %v27
    %v43 = vunpack.c.l.b16 %v28
    %v44 = vunpack.c.l.b16 %v29
    %v45 = vunpack.c.l.b16 %v30
    %v46 = vpack.c.b16 %v43, %v42
    %v47 = vpack.c.b16 %v45, %v44
    %vm50 = vcmask 261120
    %v52 = vsel %vm50, %v26, 0
    %54 = vmatprep.subr.bf16.mxu0 0
    %55 = vmatpush1.bf16.msra.mxu0 %v46
    %56 = vmatprep.subr.bf16.mxu0 0
    %57 = vmatpush1.bf16.msra.mxu0 %v47
    %58 = vmatprep.subr.bf16.mxu0 0
    %59 = vmatpush1.bf16.msra.mxu0 0
    %60 = vmatprep.subr.bf16.mxu0 0
    %61 = vmatpush1.bf16.msra.mxu0 0
    %62 = vmatprep.subr.bf16.mxu0 0
    %63 = vmatpush1.bf16.msra.mxu0 0
    %64 = vmatprep.subr.bf16.mxu0 0
    %65 = vmatpush1.bf16.msra.mxu0 0
    %66 = vmatprep.subr.bf16.mxu0 0
    %67 = vmatpush1.bf16.msra.mxu0 0
    %68 = vmatprep.subr.bf16.mxu0 0
    %69 = vmatpush1.bf16.msra.mxu0 0
    %70 = vmatprep.subr.bf16.mxu0 0
    %71 = vmatpush1.bf16.msra.mxu0 0
    %72 = vmatprep.subr.bf16.mxu0 0
    %73 = vmatpush1.bf16.msra.mxu0 0
    %74 = vmatprep.subr.bf16.mxu0 0
    %75 = vmatpush1.bf16.msra.mxu0 0
    %76 = vmatprep.subr.bf16.mxu0 0
    %77 = vmatpush1.bf16.msra.mxu0 0
    %78 = vmatprep.subr.bf16.mxu0 0
    %79 = vmatpush1.bf16.msra.mxu0 0
    %80 = vmatprep.subr.bf16.mxu0 0
    %81 = vmatpush1.bf16.msra.mxu0 0
    %82 = vmatprep.subr.bf16.mxu0 0
    %83 = vmatpush1.bf16.msra.mxu0 0
    %84 = vmatprep.subr.bf16.mxu0 0
    %85 = vmatpush1.bf16.msra.mxu0 0
    %86 = vmatprep.mubr.bf16.mxu0 0
    %87 = vmatmul.mubr.bf16.gmra.mrb[0].mxu0 %v52
    %v88 = vpop.f32.mrb[0].mxu0
    %v89 = vadd.f32 %v36, %v88
    %v90 = vpop.f32.mrb[0].mxu0
    %v91 = vpop.f32.mrb[0].mxu0
    %v92 = vpop.f32.mrb[0].mxu0
    %93 = vdwg.mxu0
    %v94 = vmax.f32 %v89, 0.0
    %v95 = vpack.c.bf16 %v94, %v94
    %v96 = vld [vmem:[%s3] sm:$0xff]
    %v97 = vld [vmem:[%s3 + $0x8] sm:$0xff]
    %v98 = vld [vmem:[%s3 + $0x10] sm:$0xff]
    %v99 = vld [vmem:[%s3 + $0x18] sm:$0xff]
    %v100 = vld [vmem:[%s3 + $0x20] sm:$0xff]
    %v101 = vld [vmem:[%s3 + $0x28] sm:$0xff]
    %v102 = vld [vmem:[%s3 + $0x30] sm:$0xff]
    %v103 = vld [vmem:[%s3 + $0x38] sm:$0xff]
    %v104 = vld [vmem:[%s3 + $0x40] sm:$0xff]
    %v105 = vld [vmem:[%s3 + $0x48] sm:$0xff]
    %v106 = vld [vmem:[%s3 + $0x50] sm:$0xff]
    %v107 = vld [vmem:[%s3 + $0x58] sm:$0xff]
    %v108 = vld [vmem:[%s3 + $0x60] sm:$0xff]
    %v109 = vld [vmem:[%s3 + $0x68] sm:$0xff]
    %v110 = vld [vmem:[%s3 + $0x70] sm:$0xff]
    %v111 = vld [vmem:[%s3 + $0x78] sm:$0xff]
    %v112 = vld [vmem:[%s3 + $0x80] sm:$0xff]
    %v113 = vld [vmem:[%s3 + $0x88] sm:$0xff]
    %v114 = vld [vmem:[%s3 + $0x90] sm:$0xff]
    %v115 = vld [vmem:[%s3 + $0x98] sm:$0xff]
    %v116 = vld [vmem:[%s3 + $0xa0] sm:$0xff]
    %v117 = vld [vmem:[%s3 + $0xa8] sm:$0xff]
    %v118 = vld [vmem:[%s3 + $0xb0] sm:$0xff]
    %v119 = vld [vmem:[%s3 + $0xb8] sm:$0xff]
    %v120 = vld [vmem:[%s3 + $0xc0] sm:$0xff]
    %v121 = vld [vmem:[%s3 + $0xc8] sm:$0xff]
    %v122 = vld [vmem:[%s3 + $0xd0] sm:$0xff]
    %v123 = vld [vmem:[%s3 + $0xd8] sm:$0xff]
    %v124 = vld [vmem:[%s3 + $0xe0] sm:$0xff]
    %v125 = vld [vmem:[%s3 + $0xe8] sm:$0xff]
    %v126 = vld [vmem:[%s3 + $0xf0] sm:$0xff]
    %v127 = vld [vmem:[%s3 + $0xf8] sm:$0xff]
    %v128 = vld [vmem:[%s3 + $0x100] sm:$0xff]
    %v129 = vld [vmem:[%s3 + $0x108] sm:$0xff]
    %v130 = vld [vmem:[%s3 + $0x110] sm:$0xff]
    %v131 = vld [vmem:[%s3 + $0x118] sm:$0xff]
    %v132 = vld [vmem:[%s3 + $0x120] sm:$0xff]
    %v133 = vld [vmem:[%s3 + $0x128] sm:$0xff]
    %v134 = vld [vmem:[%s3 + $0x130] sm:$0xff]
    %v135 = vld [vmem:[%s3 + $0x138] sm:$0xff]
    %v136 = vld [vmem:[%s3 + $0x140] sm:$0xff]
    %v137 = vld [vmem:[%s3 + $0x148] sm:$0xff]
    %v138 = vld [vmem:[%s3 + $0x150] sm:$0xff]
    %v139 = vld [vmem:[%s3 + $0x158] sm:$0xff]
    %v140 = vld [vmem:[%s3 + $0x160] sm:$0xff]
    %v141 = vld [vmem:[%s3 + $0x168] sm:$0xff]
    %v142 = vld [vmem:[%s3 + $0x170] sm:$0xff]
    %v143 = vld [vmem:[%s3 + $0x178] sm:$0xff]
    %v144 = vld [vmem:[%s4] sm:$0x3f]
    %v146 = vlaneseq
    %v147 = vshrl.u32 %v146, 7
    %v148 = vsub.s32 0, %v147
    %v149 = vrot.slane %v144, %v148
    %v150 = vlaneseq
    %v151 = vshrl.u32 %v150, 7
    %v152 = vsub.s32 1, %v151
    %v153 = vrot.slane %v144, %v152
    %v154 = vlaneseq
    %v155 = vshrl.u32 %v154, 7
    %v156 = vsub.s32 2, %v155
    %v157 = vrot.slane %v144, %v156
    %v158 = vlaneseq
    %v159 = vshrl.u32 %v158, 7
    %v160 = vsub.s32 3, %v159
    %v161 = vrot.slane %v144, %v160
    %v162 = vlaneseq
    %v163 = vshrl.u32 %v162, 7
    %v164 = vsub.s32 4, %v163
    %v165 = vrot.slane %v144, %v164
    %v166 = vlaneseq
    %v167 = vshrl.u32 %v166, 7
    %v168 = vsub.s32 5, %v167
    %v169 = vrot.slane %v144, %v168
    %v224 = vunpack.c.l.b16 %v96
    %v225 = vunpack.c.h.b16 %v96
    %v226 = vunpack.c.l.b16 %v97
    %v227 = vunpack.c.h.b16 %v97
    %v228 = vunpack.c.l.b16 %v98
    %v229 = vunpack.c.h.b16 %v98
    %v230 = vunpack.c.l.b16 %v99
    %v231 = vunpack.c.h.b16 %v99
    %v232 = vunpack.c.l.b16 %v100
    %v233 = vunpack.c.h.b16 %v100
    %v234 = vunpack.c.l.b16 %v101
    %v235 = vunpack.c.h.b16 %v101
    %v236 = vunpack.c.l.b16 %v102
    %v237 = vunpack.c.h.b16 %v102
    %v238 = vunpack.c.l.b16 %v103
    %v239 = vunpack.c.h.b16 %v103
    %v240 = vunpack.c.l.b16 %v104
    %v241 = vunpack.c.h.b16 %v104
    %v242 = vunpack.c.l.b16 %v105
    %v243 = vunpack.c.h.b16 %v105
    %v244 = vunpack.c.l.b16 %v106
    %v245 = vunpack.c.h.b16 %v106
    %v246 = vunpack.c.l.b16 %v107
    %v247 = vunpack.c.h.b16 %v107
    %v248 = vunpack.c.l.b16 %v108
    %v249 = vunpack.c.h.b16 %v108
    %v250 = vunpack.c.l.b16 %v109
    %v251 = vunpack.c.h.b16 %v109
    %v252 = vunpack.c.l.b16 %v110
    %v253 = vunpack.c.h.b16 %v110
    %v254 = vunpack.c.l.b16 %v111
    %v255 = vunpack.c.h.b16 %v111
    %v256 = vunpack.c.l.b16 %v112
    %v257 = vunpack.c.h.b16 %v112
    %v258 = vunpack.c.l.b16 %v113
    %v259 = vunpack.c.h.b16 %v113
    %v260 = vunpack.c.l.b16 %v114
    %v261 = vunpack.c.h.b16 %v114
    %v262 = vunpack.c.l.b16 %v115
    %v263 = vunpack.c.h.b16 %v115
    %v264 = vunpack.c.l.b16 %v116
    %v265 = vunpack.c.h.b16 %v116
    %v266 = vunpack.c.l.b16 %v117
    %v267 = vunpack.c.h.b16 %v117
    %v268 = vunpack.c.l.b16 %v118
    %v269 = vunpack.c.h.b16 %v118
    %v270 = vunpack.c.l.b16 %v119
    %v271 = vunpack.c.h.b16 %v119
    %v272 = vunpack.c.l.b16 %v120
    %v273 = vunpack.c.h.b16 %v120
    %v274 = vunpack.c.l.b16 %v121
    %v275 = vunpack.c.h.b16 %v121
    %v276 = vunpack.c.l.b16 %v122
    %v277 = vunpack.c.h.b16 %v122
    %v278 = vunpack.c.l.b16 %v123
    %v279 = vunpack.c.h.b16 %v123
    %v280 = vunpack.c.l.b16 %v124
    %v281 = vunpack.c.h.b16 %v124
    %v282 = vunpack.c.l.b16 %v125
    %v283 = vunpack.c.h.b16 %v125
    %v284 = vunpack.c.l.b16 %v126
    %v285 = vunpack.c.h.b16 %v126
    %v286 = vunpack.c.l.b16 %v127
    %v287 = vunpack.c.h.b16 %v127
    %v288 = vunpack.c.l.b16 %v128
    %v289 = vunpack.c.h.b16 %v128
    %v290 = vunpack.c.l.b16 %v129
    %v291 = vunpack.c.h.b16 %v129
    %v292 = vunpack.c.l.b16 %v130
    %v293 = vunpack.c.h.b16 %v130
    %v294 = vunpack.c.l.b16 %v131
    %v295 = vunpack.c.h.b16 %v131
    %v296 = vunpack.c.l.b16 %v132
    %v297 = vunpack.c.h.b16 %v132
    %v298 = vunpack.c.l.b16 %v133
    %v299 = vunpack.c.h.b16 %v133
    %v300 = vunpack.c.l.b16 %v134
    %v301 = vunpack.c.h.b16 %v134
    %v302 = vunpack.c.l.b16 %v135
    %v303 = vunpack.c.h.b16 %v135
    %v304 = vunpack.c.l.b16 %v136
    %v305 = vunpack.c.h.b16 %v136
    %v306 = vunpack.c.l.b16 %v137
    %v307 = vunpack.c.h.b16 %v137
    %v308 = vunpack.c.l.b16 %v138
    %v309 = vunpack.c.h.b16 %v138
    %v310 = vunpack.c.l.b16 %v139
    %v311 = vunpack.c.h.b16 %v139
    %v312 = vunpack.c.l.b16 %v140
    %v313 = vunpack.c.h.b16 %v140
    %v314 = vunpack.c.l.b16 %v141
    %v315 = vunpack.c.h.b16 %v141
    %v316 = vunpack.c.l.b16 %v142
    %v317 = vunpack.c.h.b16 %v142
    %v318 = vunpack.c.l.b16 %v143
    %v319 = vunpack.c.h.b16 %v143
    %v320 = vpack.c.b16 %v230, %v224
    %v321 = vpack.c.b16 %v231, %v225
    %v322 = vpack.c.b16 %v232, %v226
    %v323 = vpack.c.b16 %v233, %v227
    %v324 = vpack.c.b16 %v234, %v228
    %v325 = vpack.c.b16 %v235, %v229
    %v326 = vpack.c.b16 %v242, %v236
    %v327 = vpack.c.b16 %v243, %v237
    %v328 = vpack.c.b16 %v244, %v238
    %v329 = vpack.c.b16 %v245, %v239
    %v330 = vpack.c.b16 %v246, %v240
    %v331 = vpack.c.b16 %v247, %v241
    %v332 = vpack.c.b16 %v254, %v248
    %v333 = vpack.c.b16 %v255, %v249
    %v334 = vpack.c.b16 %v256, %v250
    %v335 = vpack.c.b16 %v257, %v251
    %v336 = vpack.c.b16 %v258, %v252
    %v337 = vpack.c.b16 %v259, %v253
    %v338 = vpack.c.b16 %v266, %v260
    %v339 = vpack.c.b16 %v267, %v261
    %v340 = vpack.c.b16 %v268, %v262
    %v341 = vpack.c.b16 %v269, %v263
    %v342 = vpack.c.b16 %v270, %v264
    %v343 = vpack.c.b16 %v271, %v265
    %v344 = vpack.c.b16 %v278, %v272
    %v345 = vpack.c.b16 %v279, %v273
    %v346 = vpack.c.b16 %v280, %v274
    %v347 = vpack.c.b16 %v281, %v275
    %v348 = vpack.c.b16 %v282, %v276
    %v349 = vpack.c.b16 %v283, %v277
    %v350 = vpack.c.b16 %v290, %v284
    %v351 = vpack.c.b16 %v291, %v285
    %v352 = vpack.c.b16 %v292, %v286
    %v353 = vpack.c.b16 %v293, %v287
    %v354 = vpack.c.b16 %v294, %v288
    %v355 = vpack.c.b16 %v295, %v289
    %v356 = vpack.c.b16 %v302, %v296
    %v357 = vpack.c.b16 %v303, %v297
    %v358 = vpack.c.b16 %v304, %v298
    %v359 = vpack.c.b16 %v305, %v299
    %v360 = vpack.c.b16 %v306, %v300
    %v361 = vpack.c.b16 %v307, %v301
    %v362 = vpack.c.b16 %v314, %v308
    %v363 = vpack.c.b16 %v315, %v309
    %v364 = vpack.c.b16 %v316, %v310
    %v365 = vpack.c.b16 %v317, %v311
    %v366 = vpack.c.b16 %v318, %v312
    %v367 = vpack.c.b16 %v319, %v313
    %416 = vmatprep.subr.bf16.mxu0 %v321
    %417 = vmatpush1.bf16.msra.mxu0 %v320
    %418 = vmatprep.subr.bf16.mxu0 %v327
    %419 = vmatpush1.bf16.msra.mxu0 %v326
    %420 = vmatprep.subr.bf16.mxu0 %v333
    %421 = vmatpush1.bf16.msra.mxu0 %v332
    %422 = vmatprep.subr.bf16.mxu0 %v339
    %423 = vmatpush1.bf16.msra.mxu0 %v338
    %424 = vmatprep.subr.bf16.mxu0 %v345
    %425 = vmatpush1.bf16.msra.mxu0 %v344
    %426 = vmatprep.subr.bf16.mxu0 %v351
    %427 = vmatpush1.bf16.msra.mxu0 %v350
    %428 = vmatprep.subr.bf16.mxu0 %v357
    %429 = vmatpush1.bf16.msra.mxu0 %v356
    %430 = vmatprep.subr.bf16.mxu0 %v363
    %431 = vmatpush1.bf16.msra.mxu0 %v362
    %432 = vmatprep.subr.bf16.mxu0 0
    %433 = vmatpush1.bf16.msra.mxu0 0
    %434 = vmatprep.subr.bf16.mxu0 0
    %435 = vmatpush1.bf16.msra.mxu0 0
    %436 = vmatprep.subr.bf16.mxu0 0
    %437 = vmatpush1.bf16.msra.mxu0 0
    %438 = vmatprep.subr.bf16.mxu0 0
    %439 = vmatpush1.bf16.msra.mxu0 0
    %440 = vmatprep.subr.bf16.mxu0 0
    %441 = vmatpush1.bf16.msra.mxu0 0
    %442 = vmatprep.subr.bf16.mxu0 0
    %443 = vmatpush1.bf16.msra.mxu0 0
    %444 = vmatprep.subr.bf16.mxu0 0
    %445 = vmatpush1.bf16.msra.mxu0 0
    %446 = vmatprep.subr.bf16.mxu0 0
    %447 = vmatpush1.bf16.msra.mxu0 0
    %448 = vmatprep.mubr.bf16.mxu0 0
    %449 = vmatmul.mubr.bf16.gmra.mrb[0].mxu0 %v95
    %v450 = vpop.f32.mrb[0].mxu0
    %v451 = vadd.f32 %v149, %v450
    %v452 = vpop.f32.mrb[0].mxu0
    %v453 = vadd.f32 %v153, %v452
    %v454 = vpop.f32.mrb[0].mxu0
    %v455 = vpop.f32.mrb[0].mxu0
    %456 = vdwg.mxu0
    %457 = vmatprep.subr.bf16.mxu0 %v323
    %458 = vmatpush1.bf16.msra.mxu0 %v322
    %459 = vmatprep.subr.bf16.mxu0 %v329
    %460 = vmatpush1.bf16.msra.mxu0 %v328
    %461 = vmatprep.subr.bf16.mxu0 %v335
    %462 = vmatpush1.bf16.msra.mxu0 %v334
    %463 = vmatprep.subr.bf16.mxu0 %v341
    %464 = vmatpush1.bf16.msra.mxu0 %v340
    %465 = vmatprep.subr.bf16.mxu0 %v347
    %466 = vmatpush1.bf16.msra.mxu0 %v346
    %467 = vmatprep.subr.bf16.mxu0 %v353
    %468 = vmatpush1.bf16.msra.mxu0 %v352
    %469 = vmatprep.subr.bf16.mxu0 %v359
    %470 = vmatpush1.bf16.msra.mxu0 %v358
    %471 = vmatprep.subr.bf16.mxu0 %v365
    %472 = vmatpush1.bf16.msra.mxu0 %v364
    %473 = vmatprep.subr.bf16.mxu0 0
    %474 = vmatpush1.bf16.msra.mxu0 0
    %475 = vmatprep.subr.bf16.mxu0 0
    %476 = vmatpush1.bf16.msra.mxu0 0
    %477 = vmatprep.subr.bf16.mxu0 0
    %478 = vmatpush1.bf16.msra.mxu0 0
    %479 = vmatprep.subr.bf16.mxu0 0
    %480 = vmatpush1.bf16.msra.mxu0 0
    %481 = vmatprep.subr.bf16.mxu0 0
    %482 = vmatpush1.bf16.msra.mxu0 0
    %483 = vmatprep.subr.bf16.mxu0 0
    %484 = vmatpush1.bf16.msra.mxu0 0
    %485 = vmatprep.subr.bf16.mxu0 0
    %486 = vmatpush1.bf16.msra.mxu0 0
    %487 = vmatprep.subr.bf16.mxu0 0
    %488 = vmatpush1.bf16.msra.mxu0 0
    %489 = vmatprep.mubr.bf16.mxu0 0
    %490 = vmatmul.mubr.bf16.gmra.mrb[0].mxu0 %v95
    %v491 = vpop.f32.mrb[0].mxu0
    %v492 = vadd.f32 %v157, %v491
    %v493 = vpop.f32.mrb[0].mxu0
    %v494 = vadd.f32 %v161, %v493
    %v495 = vpop.f32.mrb[0].mxu0
    %v496 = vpop.f32.mrb[0].mxu0
    %497 = vdwg.mxu0
    %498 = vmatprep.subr.bf16.mxu0 %v325
    %499 = vmatpush1.bf16.msra.mxu0 %v324
    %500 = vmatprep.subr.bf16.mxu0 %v331
    %501 = vmatpush1.bf16.msra.mxu0 %v330
    %502 = vmatprep.subr.bf16.mxu0 %v337
    %503 = vmatpush1.bf16.msra.mxu0 %v336
    %504 = vmatprep.subr.bf16.mxu0 %v343
    %505 = vmatpush1.bf16.msra.mxu0 %v342
    %506 = vmatprep.subr.bf16.mxu0 %v349
    %507 = vmatpush1.bf16.msra.mxu0 %v348
    %508 = vmatprep.subr.bf16.mxu0 %v355
    %509 = vmatpush1.bf16.msra.mxu0 %v354
    %510 = vmatprep.subr.bf16.mxu0 %v361
    %511 = vmatpush1.bf16.msra.mxu0 %v360
    %512 = vmatprep.subr.bf16.mxu0 %v367
    %513 = vmatpush1.bf16.msra.mxu0 %v366
    %514 = vmatprep.subr.bf16.mxu0 0
    %515 = vmatpush1.bf16.msra.mxu0 0
    %516 = vmatprep.subr.bf16.mxu0 0
    %517 = vmatpush1.bf16.msra.mxu0 0
    %518 = vmatprep.subr.bf16.mxu0 0
    %519 = vmatpush1.bf16.msra.mxu0 0
    %520 = vmatprep.subr.bf16.mxu0 0
    %521 = vmatpush1.bf16.msra.mxu0 0
    %522 = vmatprep.subr.bf16.mxu0 0
    %523 = vmatpush1.bf16.msra.mxu0 0
    %524 = vmatprep.subr.bf16.mxu0 0
    %525 = vmatpush1.bf16.msra.mxu0 0
    %526 = vmatprep.subr.bf16.mxu0 0
    %527 = vmatpush1.bf16.msra.mxu0 0
    %528 = vmatprep.subr.bf16.mxu0 0
    %529 = vmatpush1.bf16.msra.mxu0 0
    %530 = vmatprep.mubr.bf16.mxu0 0
    %531 = vmatmul.mubr.bf16.gmra.mrb[0].mxu0 %v95
    %v532 = vpop.f32.mrb[0].mxu0
    %v533 = vadd.f32 %v165, %v532
    %v534 = vpop.f32.mrb[0].mxu0
    %v535 = vadd.f32 %v169, %v534
    %v536 = vpop.f32.mrb[0].mxu0
    %v537 = vpop.f32.mrb[0].mxu0
    %538 = vdwg.mxu0
    %v539 = vld [vmem:[%s5] sm:$0xff]
    %v540 = vld [vmem:[%s5 + $0x8] sm:$0xff]
    %v541 = vld [vmem:[%s5 + $0x10] sm:$0xff]
    %v542 = vld [vmem:[%s5 + $0x18] sm:$0xff]
    %v543 = vld [vmem:[%s5 + $0x20] sm:$0xff]
    %v544 = vld [vmem:[%s5 + $0x28] sm:$0xff]
    %v545 = vsub.f32 %v451, %v539
    %v546 = vsub.f32 %v453, %v540
    %v547 = vsub.f32 %v492, %v541
    %v548 = vsub.f32 %v494, %v542
    %v549 = vsub.f32 %v533, %v543
    %v550 = vsub.f32 %v535, %v544
    %v551 = vmul.f32 %v545, %v545
    %v552 = vmul.f32 %v546, %v546
    %v553 = vmul.f32 %v547, %v547
    %v554 = vmul.f32 %v548, %v548
    %v555 = vmul.f32 %v549, %v549
    %v556 = vmul.f32 %v550, %v550
    %v557 = vadd.f32 %v551, %v552
    %v558 = vadd.f32 %v557, %v553
    %v559 = vadd.f32 %v558, %v554
    %v560 = vadd.f32 %v559, %v555
    %v561 = vadd.f32 %v560, %v556
    %562 = vadd.xlane.f32.xlu0 %v561
    %v563 = vpop.xlane.xlu0 %562
    %v564 = vrot.slane %v563, 4
    %v565 = vadd.f32 %v563, %v564
    %v566 = vrot.slane %v565, 2
    %v567 = vadd.f32 %v565, %v566
    %v568 = vrot.slane %v567, 1
    %v569 = vadd.f32 %v567, %v568
    %vm570 = vcmask 0
    %571 = vst.msk [vmem:[#allocation2] sm:$0x1] %vm570, %v569
    // Predicated region
    $region26: #{forward.6} parent=1 // pred_check
      _
    $region27: #{forward.6} parent=1 // pred_check_branch
      %573 = sbr.rel (0) target = $region29
    $region28: #{forward.6} parent=1 // pred_region
      %s575 = ssub.s32 16, 16
      %576 = vsyncadd [#allocation3], %s575
      %s578 = sshll.u32 [#allocation2], 4
      %s579 = int_to_ptr.vmem [resolvable:$true] %s578
      %581 = dma.vmem_to_hbm [thread:$0]  %s579, 16, %s6, [#allocation3]
    $region29: #{forward.6} parent=1 // pred_fallthru
      _
    // Predicated region
    $region30: #{forward.6} parent=1 // pred_check
      _
    $region31: #{forward.6} parent=1 // pred_check_branch
      %583 = sbr.rel (0) target = $region33
    $region32: #{forward.6} parent=1 // pred_region
      %584 = dma.done [#allocation3], 16
    $region33: #{forward.6} parent=1 // pred_fallthru
      _
    %585 = vsyncpa [#allocation3], 1

// kernel: forward.7
$region0: #{forward.7}
  #allocation0 [shape = 'u32[]', space=smem, size = 0x4, offset = 0x4, fixed_abs, tag = 'smem constant byte address 0x4 - core index']
  #allocation1 [shape = 'u32[144,128]{1,0:T(1,128)}', space=vmem, size = 0x12000, scoped, tag = 'internal scratch']
  %s0 = inlined_call_operand.vmem [shape: f32[8,32], index: 0, kind: input, shape index: {}]
  %s1 = inlined_call_operand.vmem [shape: f32[8,32], index: 1, kind: input, shape index: {}]
  %s2 = inlined_call_operand.vmem [shape: f32[8,32], index: 2, kind: input, shape index: {}]
  %s3 = inlined_call_operand.vmem [shape: f32[15,32], index: 3, kind: input, shape index: {}]
  %s4 = inlined_call_operand.vmem [shape: f32[15,32], index: 4, kind: input, shape index: {}]
  %s5 = inlined_call_operand.vmem [shape: f32[15,64], index: 5, kind: input, shape index: {}]
  %s6 = inlined_call_operand.vmem [shape: f32[1,64], index: 6, kind: input, shape index: {}]
  %s7 = inlined_call_operand.hbm [shape: f32[8,15], index: 7, kind: output, shape index: {0}]
  %s8 = inlined_call_operand.hbm [shape: f32[8,64], index: 8, kind: output, shape index: {1}]
  %s9 = inlined_call_operand.hbm [shape: f32[1,1], index: 9, kind: output, shape index: {2}]
  %s10 = inlined_call_operand.hbm [shape: f32[1,1], index: 10, kind: output, shape index: {3}]
  %11 = xla_tuple %s7, %s8, %s9, %s10
  %s12 = sld [smem:[#allocation0]]
  $region62: #{forward.7} parent=0
    _
  %s14 = ssub.s32 1, %s12
  %s15 = scalar_select 0, %s14, %s12
  $region1: #{forward.7} parent=0
    #allocation2 [shape = 'u8[4096]{0}', space=vmem, size = 0x1000, scoped, tag = 'output window, operand 0, single buffered']
    #allocation3 [shape = 's32[1]{0}', space=sflag, size = 0x4, scoped, tag = 'scoped memory for forward.7']
    #allocation4 [shape = 'u8[4096]{0}', space=vmem, size = 0x1000, scoped, tag = 'output window, operand 1, single buffered']
    #allocation5 [shape = 's32[1]{0}', space=sflag, size = 0x4, scoped, tag = 'scoped memory for forward.7']
    #allocation6 [shape = 'u8[512]{0}', space=vmem, size = 0x400, scoped, tag = 'output window, operand 2, single buffered']
    #allocation7 [shape = 'u8[512]{0}', space=vmem, size = 0x400, scoped, tag = 'output window, operand 3, single buffered']
    #allocation8 [shape = 's32[1]{0}', space=sflag, size = 0x4, scoped, tag = 'scoped memory for forward.7']
    %16 = vsyncpa [#allocation3], 0
    %17 = vsyncpa [#allocation5], 0
    %18 = vsyncpa [#allocation8], 0
    // Predicated region
    $region2: #{forward.7} parent=1 // pred_check
      _
    $region3: #{forward.7} parent=1 // pred_check_branch
      %20 = sbr.rel (0) target = $region5
    $region4: #{forward.7} parent=1 // pred_region
      _
    $region5: #{forward.7} parent=1 // pred_fallthru
      _
    // Predicated region
    $region6: #{forward.7} parent=1 // pred_check
      _
    $region7: #{forward.7} parent=1 // pred_check_branch
      %22 = sbr.rel (0) target = $region9
    $region8: #{forward.7} parent=1 // pred_region
      _
    $region9: #{forward.7} parent=1 // pred_fallthru
      _
    // Predicated region
    $region10: #{forward.7} parent=1 // pred_check
      _
    $region11: #{forward.7} parent=1 // pred_check_branch
      %24 = sbr.rel (0) target = $region13
    $region12: #{forward.7} parent=1 // pred_region
      _
    $region13: #{forward.7} parent=1 // pred_fallthru
      _
    // Predicated region
    $region14: #{forward.7} parent=1 // pred_check
      _
    $region15: #{forward.7} parent=1 // pred_check_branch
      %26 = sbr.rel (0) target = $region17
    $region16: #{forward.7} parent=1 // pred_region
      _
    $region17: #{forward.7} parent=1 // pred_fallthru
      _
    // Predicated region
    $region18: #{forward.7} parent=1 // pred_check
      _
    $region19: #{forward.7} parent=1 // pred_check_branch
      %28 = sbr.rel (0) target = $region21
    $region20: #{forward.7} parent=1 // pred_region
      _
    $region21: #{forward.7} parent=1 // pred_fallthru
      _
    // Predicated region
    $region22: #{forward.7} parent=1 // pred_check
      _
    $region23: #{forward.7} parent=1 // pred_check_branch
      %30 = sbr.rel (0) target = $region25
    $region24: #{forward.7} parent=1 // pred_region
      _
    $region25: #{forward.7} parent=1 // pred_fallthru
      _
    // Predicated region
    $region26: #{forward.7} parent=1 // pred_check
      _
    $region27: #{forward.7} parent=1 // pred_check_branch
      %32 = sbr.rel (0) target = $region29
    $region28: #{forward.7} parent=1 // pred_region
      _
    $region29: #{forward.7} parent=1 // pred_fallthru
      _
    %v33 = vld [vmem:[%s0] sm:$0xff]
    %v34 = vld [vmem:[%s1] sm:$0xff]
    %v35 = vld [vmem:[%s2] sm:$0xff]
    %v36 = vld [vmem:[%s3] sm:$0xff]
    %v37 = vld [vmem:[%s3 + $0x8] sm:$0x7f]
    %v38 = vld [vmem:[%s4] sm:$0xff]
    %v39 = vld [vmem:[%s4 + $0x8] sm:$0x7f]
    %v40 = vsub.f32 0.0, %v38
    %v41 = vsub.f32 0.0, %v39
    %v42 = vmul.f32 %v40, 1.442695
    %v43 = vpow.pop %v42
    %v44 = vmul.f32 %v41, 1.442695
    %v45 = vpow.pop %v44
    %v47 = vcombine.high %v33, %v33
    %v49 = vunpack.c.l.s4 1966171168
    %v50 = vunpack.c.0.s8 %v49
    %v51 = vlaneseq
    %v52 = vshrl.u32 %v51, 7
    %v53 = vsub.s32 %v50, %v52
    %v54 = vrot.slane %v33, %v53
    %v56 = vunpack.c.l.s4 1966171168
    %v57 = vunpack.c.0.s8 %v56
    %v58 = vlaneseq
    %v59 = vshrl.u32 %v58, 7
    %v60 = vsub.s32 %v57, %v59
    %v61 = vrot.slane %v47, %v60
    %v62 = vcombine.high %v54, %v54
    %v63 = vcombine.high %v61, %v61
    %v65 = vunpack.c.l.s4 1966171168
    %v66 = vunpack.c.0.s8 %v65
    %v67 = vlaneseq
    %v68 = vshrl.u32 %v67, 7
    %v69 = vsub.s32 %v66, %v68
    %v70 = vrot.slane %v54, %v69
    %v72 = vunpack.c.l.s4 1966171168
    %v73 = vunpack.c.0.s8 %v72
    %v74 = vlaneseq
    %v75 = vshrl.u32 %v74, 7
    %v76 = vsub.s32 %v73, %v75
    %v77 = vrot.slane %v61, %v76
    %v79 = vunpack.c.l.s4 1966171168
    %v80 = vunpack.c.0.s8 %v79
    %v81 = vlaneseq
    %v82 = vshrl.u32 %v81, 7
    %v83 = vsub.s32 %v80, %v82
    %v84 = vrot.slane %v62, %v83
    %v86 = vunpack.c.l.s4 1966171168
    %v87 = vunpack.c.0.s8 %v86
    %v88 = vlaneseq
    %v89 = vshrl.u32 %v88, 7
    %v90 = vsub.s32 %v87, %v89
    %v91 = vrot.slane %v63, %v90
    %v92 = vcombine.high %v70, %v70
    %v93 = vcombine.high %v77, %v77
    %v94 = vcombine.high %v84, %v84
    %v95 = vcombine.high %v91, %v91
    %v96 = vlaneseq
    %v97 = vshrl.u32 %v96, 7
    %v98 = vsub.s32 0, %v97
    %v99 = vrot.slane %v70, %v98
    %v100 = vlaneseq
    %v101 = vshrl.u32 %v100, 7
    %v102 = vsub.s32 0, %v101
    %v103 = vrot.slane %v84, %v102
    %v104 = vlaneseq
    %v105 = vshrl.u32 %v104, 7
    %v106 = vsub.s32 0, %v105
    %v107 = vrot.slane %v92, %v106
    %v108 = vlaneseq
    %v109 = vshrl.u32 %v108, 7
    %v110 = vsub.s32 0, %v109
    %v111 = vrot.slane %v94, %v110
    %v112 = vlaneseq
    %v113 = vshrl.u32 %v112, 7
    %v114 = vsub.s32 0, %v113
    %v115 = vrot.slane %v77, %v114
    %v116 = vlaneseq
    %v117 = vshrl.u32 %v116, 7
    %v118 = vsub.s32 0, %v117
    %v119 = vrot.slane %v91, %v118
    %v120 = vlaneseq
    %v121 = vshrl.u32 %v120, 7
    %v122 = vsub.s32 0, %v121
    %v123 = vrot.slane %v93, %v122
    %v124 = vlaneseq
    %v125 = vshrl.u32 %v124, 7
    %v126 = vsub.s32 0, %v125
    %v127 = vrot.slane %v95, %v126
    %v136 = vsub.f32 %v99, %v36
    %v137 = vsub.f32 %v99, %v37
    %v138 = vsub.f32 %v103, %v36
    %v139 = vsub.f32 %v103, %v37
    %v140 = vsub.f32 %v107, %v36
    %v141 = vsub.f32 %v107, %v37
    %v142 = vsub.f32 %v111, %v36
    %v143 = vsub.f32 %v111, %v37
    %v144 = vsub.f32 %v115, %v36
    %v145 = vsub.f32 %v115, %v37
    %v146 = vsub.f32 %v119, %v36
    %v147 = vsub.f32 %v119, %v37
    %v148 = vsub.f32 %v123, %v36
    %v149 = vsub.f32 %v123, %v37
    %v150 = vsub.f32 %v127, %v36
    %v151 = vsub.f32 %v127, %v37
    %v152 = vmul.f32 %v136, %v136
    %v153 = vmul.f32 %v137, %v137
    %v154 = vmul.f32 %v138, %v138
    %v155 = vmul.f32 %v139, %v139
    %v156 = vmul.f32 %v140, %v140
    %v157 = vmul.f32 %v141, %v141
    %v158 = vmul.f32 %v142, %v142
    %v159 = vmul.f32 %v143, %v143
    %v160 = vmul.f32 %v144, %v144
    %v161 = vmul.f32 %v145, %v145
    %v162 = vmul.f32 %v146, %v146
    %v163 = vmul.f32 %v147, %v147
    %v164 = vmul.f32 %v148, %v148
    %v165 = vmul.f32 %v149, %v149
    %v166 = vmul.f32 %v150, %v150
    %v167 = vmul.f32 %v151, %v151
    %v168 = vmul.f32 %v152, %v43
    %v169 = vmul.f32 %v153, %v45
    %v170 = vmul.f32 %v154, %v43
    %v171 = vmul.f32 %v155, %v45
    %v172 = vmul.f32 %v156, %v43
    %v173 = vmul.f32 %v157, %v45
    %v174 = vmul.f32 %v158, %v43
    %v175 = vmul.f32 %v159, %v45
    %v176 = vmul.f32 %v160, %v43
    %v177 = vmul.f32 %v161, %v45
    %v178 = vmul.f32 %v162, %v43
    %v179 = vmul.f32 %v163, %v45
    %v180 = vmul.f32 %v164, %v43
    %v181 = vmul.f32 %v165, %v45
    %v182 = vmul.f32 %v166, %v43
    %v183 = vmul.f32 %v167, %v45
    %v184 = vadd.f32 %v38, %v168
    %v185 = vadd.f32 %v39, %v169
    %v186 = vadd.f32 %v38, %v170
    %v187 = vadd.f32 %v39, %v171
    %v188 = vadd.f32 %v38, %v172
    %v189 = vadd.f32 %v39, %v173
    %v190 = vadd.f32 %v38, %v174
    %v191 = vadd.f32 %v39, %v175
    %v192 = vadd.f32 %v38, %v176
    %v193 = vadd.f32 %v39, %v177
    %v194 = vadd.f32 %v38, %v178
    %v195 = vadd.f32 %v39, %v179
    %v196 = vadd.f32 %v38, %v180
    %v197 = vadd.f32 %v39, %v181
    %v198 = vadd.f32 %v38, %v182
    %v199 = vadd.f32 %v39, %v183
    %vm200 = vcmask 261120
    %v201 = vsel %vm200, %v184, 0.0
    %202 = vadd.xlane.f32.xlu0 %v201
    %v203 = vpop.xlane.xlu0 %202
    %vm204 = vcmask 260096
    %v205 = vsel %vm204, %v185, 0.0
    %206 = vadd.xlane.f32.xlu0 %v205
    %v207 = vpop.xlane.xlu0 %206
    %v208 = vsel %vm200, %v186, 0.0
    %209 = vadd.xlane.f32.xlu0 %v208
    %v210 = vpop.xlane.xlu0 %209
    %v211 = vsel %vm204, %v187, 0.0
    %212 = vadd.xlane.f32.xlu0 %v211
    %v213 = vpop.xlane.xlu0 %212
    %v214 = vsel %vm200, %v188, 0.0
    %215 = vadd.xlane.f32.xlu0 %v214
    %v216 = vpop.xlane.xlu0 %215
    %v217 = vsel %vm204, %v189, 0.0
    %218 = vadd.xlane.f32.xlu0 %v217
    %v219 = vpop.xlane.xlu0 %218
    %v220 = vsel %vm200, %v190, 0.0
    %221 = vadd.xlane.f32.xlu0 %v220
    %v222 = vpop.xlane.xlu0 %221
    %v223 = vsel %vm204, %v191, 0.0
    %224 = vadd.xlane.f32.xlu0 %v223
    %v225 = vpop.xlane.xlu0 %224
    %v226 = vsel %vm200, %v192, 0.0
    %227 = vadd.xlane.f32.xlu0 %v226
    %v228 = vpop.xlane.xlu0 %227
    %v229 = vsel %vm204, %v193, 0.0
    %230 = vadd.xlane.f32.xlu0 %v229
    %v231 = vpop.xlane.xlu0 %230
    %v232 = vsel %vm200, %v194, 0.0
    %233 = vadd.xlane.f32.xlu0 %v232
    %v234 = vpop.xlane.xlu0 %233
    %v235 = vsel %vm204, %v195, 0.0
    %236 = vadd.xlane.f32.xlu0 %v235
    %v237 = vpop.xlane.xlu0 %236
    %v238 = vsel %vm200, %v196, 0.0
    %239 = vadd.xlane.f32.xlu0 %v238
    %v240 = vpop.xlane.xlu0 %239
    %v241 = vsel %vm204, %v197, 0.0
    %242 = vadd.xlane.f32.xlu0 %v241
    %v243 = vpop.xlane.xlu0 %242
    %v244 = vsel %vm200, %v198, 0.0
    %245 = vadd.xlane.f32.xlu0 %v244
    %v246 = vpop.xlane.xlu0 %245
    %v247 = vsel %vm204, %v199, 0.0
    %248 = vadd.xlane.f32.xlu0 %v247
    %v249 = vpop.xlane.xlu0 %248
    %v250 = vadd.f32 %v203, 58.812065
    %v251 = vadd.f32 %v207, 58.812065
    %v252 = vadd.f32 %v210, 58.812065
    %v253 = vadd.f32 %v213, 58.812065
    %v254 = vadd.f32 %v216, 58.812065
    %v255 = vadd.f32 %v219, 58.812065
    %v256 = vadd.f32 %v222, 58.812065
    %v257 = vadd.f32 %v225, 58.812065
    %v258 = vadd.f32 %v228, 58.812065
    %v259 = vadd.f32 %v231, 58.812065
    %v260 = vadd.f32 %v234, 58.812065
    %v261 = vadd.f32 %v237, 58.812065
    %v262 = vadd.f32 %v240, 58.812065
    %v263 = vadd.f32 %v243, 58.812065
    %v264 = vadd.f32 %v246, 58.812065
    %v265 = vadd.f32 %v249, 58.812065
    %v266 = vmul.f32 %v250, -0.5
    %v267 = vmul.f32 %v251, -0.5
    %v268 = vmul.f32 %v252, -0.5
    %v269 = vmul.f32 %v253, -0.5
    %v270 = vmul.f32 %v254, -0.5
    %v271 = vmul.f32 %v255, -0.5
    %v272 = vmul.f32 %v256, -0.5
    %v273 = vmul.f32 %v257, -0.5
    %v274 = vmul.f32 %v258, -0.5
    %v275 = vmul.f32 %v259, -0.5
    %v276 = vmul.f32 %v260, -0.5
    %v277 = vmul.f32 %v261, -0.5
    %v278 = vmul.f32 %v262, -0.5
    %v279 = vmul.f32 %v263, -0.5
    %v280 = vmul.f32 %v264, -0.5
    %v281 = vmul.f32 %v265, -0.5
    %v282 = vadd.f32 %v266, -2.7080503
    %v283 = vadd.f32 %v267, -2.7080503
    %v284 = vadd.f32 %v268, -2.7080503
    %v285 = vadd.f32 %v269, -2.7080503
    %v286 = vadd.f32 %v270, -2.7080503
    %v287 = vadd.f32 %v271, -2.7080503
    %v288 = vadd.f32 %v272, -2.7080503
    %v289 = vadd.f32 %v273, -2.7080503
    %v290 = vadd.f32 %v274, -2.7080503
    %v291 = vadd.f32 %v275, -2.7080503
    %v292 = vadd.f32 %v276, -2.7080503
    %v293 = vadd.f32 %v277, -2.7080503
    %v294 = vadd.f32 %v278, -2.7080503
    %v295 = vadd.f32 %v279, -2.7080503
    %v296 = vadd.f32 %v280, -2.7080503
    %v297 = vadd.f32 %v281, -2.7080503
    %v314 = vlaneseq
    %v315 = vand.u32 %v314, 127
    %v316 = vlaneseq
    %v317 = vshrl.u32 %v316, 7
    %v318 = vsub.s32 %v315, %v317
    %v319 = vrot.slane %v282, %v318
    %v320 = vadd.s32 %v315, 4294967288
    %v321 = vlaneseq
    %v322 = vshrl.u32 %v321, 7
    %v323 = vsub.s32 %v320, %v322
    %v324 = vrot.slane %v283, %v323
    %vm325 = vcmask 130112
    %v326 = vsel %vm325, %v324, %v319
    %v327 = vlaneseq
    %v328 = vshrl.u32 %v327, 7
    %v329 = vsub.s32 %v315, %v328
    %v330 = vrot.slane %v284, %v329
    %v331 = vlaneseq
    %v332 = vshrl.u32 %v331, 7
    %v333 = vsub.s32 %v320, %v332
    %v334 = vrot.slane %v285, %v333
    %v335 = vsel %vm325, %v334, %v330
    %v336 = vlaneseq
    %v337 = vshrl.u32 %v336, 7
    %v338 = vsub.s32 %v315, %v337
    %v339 = vrot.slane %v286, %v338
    %v340 = vlaneseq
    %v341 = vshrl.u32 %v340, 7
    %v342 = vsub.s32 %v320, %v341
    %v343 = vrot.slane %v287, %v342
    %v344 = vsel %vm325, %v343, %v339
    %v345 = vlaneseq
    %v346 = vshrl.u32 %v345, 7
    %v347 = vsub.s32 %v315, %v346
    %v348 = vrot.slane %v288, %v347
    %v349 = vlaneseq
    %v350 = vshrl.u32 %v349, 7
    %v351 = vsub.s32 %v320, %v350
    %v352 = vrot.slane %v289, %v351
    %v353 = vsel %vm325, %v352, %v348
    %v354 = vlaneseq
    %v355 = vshrl.u32 %v354, 7
    %v356 = vsub.s32 %v315, %v355
    %v357 = vrot.slane %v290, %v356
    %v358 = vlaneseq
    %v359 = vshrl.u32 %v358, 7
    %v360 = vsub.s32 %v320, %v359
    %v361 = vrot.slane %v291, %v360
    %v362 = vsel %vm325, %v361, %v357
    %v363 = vlaneseq
    %v364 = vshrl.u32 %v363, 7
    %v365 = vsub.s32 %v315, %v364
    %v366 = vrot.slane %v292, %v365
    %v367 = vlaneseq
    %v368 = vshrl.u32 %v367, 7
    %v369 = vsub.s32 %v320, %v368
    %v370 = vrot.slane %v293, %v369
    %v371 = vsel %vm325, %v370, %v366
    %v372 = vlaneseq
    %v373 = vshrl.u32 %v372, 7
    %v374 = vsub.s32 %v315, %v373
    %v375 = vrot.slane %v294, %v374
    %v376 = vlaneseq
    %v377 = vshrl.u32 %v376, 7
    %v378 = vsub.s32 %v320, %v377
    %v379 = vrot.slane %v295, %v378
    %v380 = vsel %vm325, %v379, %v375
    %v381 = vlaneseq
    %v382 = vshrl.u32 %v381, 7
    %v383 = vsub.s32 %v315, %v382
    %v384 = vrot.slane %v296, %v383
    %v385 = vlaneseq
    %v386 = vshrl.u32 %v385, 7
    %v387 = vsub.s32 %v320, %v386
    %v388 = vrot.slane %v297, %v387
    %v389 = vsel %vm325, %v388, %v384
    %vm390 = vcmask 1041409
    %v391 = vsel %vm390, %v335, %v326
    %vm392 = vcmask 1042434
    %v393 = vsel %vm392, %v344, %v391
    %vm394 = vcmask 1043459
    %v395 = vsel %vm394, %v353, %v393
    %vm396 = vcmask 1044484
    %v397 = vsel %vm396, %v362, %v395
    %vm398 = vcmask 1045509
    %v399 = vsel %vm398, %v371, %v397
    %vm400 = vcmask 1046534
    %v401 = vsel %vm400, %v380, %v399
    %vm402 = vcmask 1047559
    %v403 = vsel %vm402, %v389, %v401
    %vm405 = vcmask 121856
    %v406 = vsel %vm405, %v403, -inf
    %407 = vmax.xlane.f32.xlu0 %v406
    %v408 = vpop.xlane.xlu0 %407
    %v410 = vlaneseq
    %v411 = vshrl.u32 %v410, 7
    %v412 = vsub.s32 0, %v411
    %v413 = vrot.slane %v408, %v412
    %v414 = vlaneseq
    %v415 = vshrl.u32 %v414, 7
    %v416 = vsub.s32 1, %v415
    %v417 = vrot.slane %v408, %v416
    %v418 = vlaneseq
    %v419 = vshrl.u32 %v418, 7
    %v420 = vsub.s32 2, %v419
    %v421 = vrot.slane %v408, %v420
    %v422 = vlaneseq
    %v423 = vshrl.u32 %v422, 7
    %v424 = vsub.s32 3, %v423
    %v425 = vrot.slane %v408, %v424
    %v426 = vlaneseq
    %v427 = vshrl.u32 %v426, 7
    %v428 = vsub.s32 4, %v427
    %v429 = vrot.slane %v408, %v428
    %v430 = vlaneseq
    %v431 = vshrl.u32 %v430, 7
    %v432 = vsub.s32 5, %v431
    %v433 = vrot.slane %v408, %v432
    %v434 = vlaneseq
    %v435 = vshrl.u32 %v434, 7
    %v436 = vsub.s32 6, %v435
    %v437 = vrot.slane %v408, %v436
    %v438 = vlaneseq
    %v439 = vshrl.u32 %v438, 7
    %v440 = vsub.s32 7, %v439
    %v441 = vrot.slane %v408, %v440
    %v450 = vsub.f32 %v282, %v413
    %v451 = vsub.f32 %v283, %v413
    %v452 = vsub.f32 %v284, %v417
    %v453 = vsub.f32 %v285, %v417
    %v454 = vsub.f32 %v286, %v421
    %v455 = vsub.f32 %v287, %v421
    %v456 = vsub.f32 %v288, %v425
    %v457 = vsub.f32 %v289, %v425
    %v458 = vsub.f32 %v290, %v429
    %v459 = vsub.f32 %v291, %v429
    %v460 = vsub.f32 %v292, %v433
    %v461 = vsub.f32 %v293, %v433
    %v462 = vsub.f32 %v294, %v437
    %v463 = vsub.f32 %v295, %v437
    %v464 = vsub.f32 %v296, %v441
    %v465 = vsub.f32 %v297, %v441
    %v466 = vmul.f32 %v450, 1.442695
    %v467 = vpow.pop %v466
    %v468 = vmul.f32 %v451, 1.442695
    %v469 = vpow.pop %v468
    %v470 = vmul.f32 %v452, 1.442695
    %v471 = vpow.pop %v470
    %v472 = vmul.f32 %v453, 1.442695
    %v473 = vpow.pop %v472
    %v474 = vmul.f32 %v454, 1.442695
    %v475 = vpow.pop %v474
    %v476 = vmul.f32 %v455, 1.442695
    %v477 = vpow.pop %v476
    %v478 = vmul.f32 %v456, 1.442695
    %v479 = vpow.pop %v478
    %v480 = vmul.f32 %v457, 1.442695
    %v481 = vpow.pop %v480
    %v482 = vmul.f32 %v458, 1.442695
    %v483 = vpow.pop %v482
    %v484 = vmul.f32 %v459, 1.442695
    %v485 = vpow.pop %v484
    %v486 = vmul.f32 %v460, 1.442695
    %v487 = vpow.pop %v486
    %v488 = vmul.f32 %v461, 1.442695
    %v489 = vpow.pop %v488
    %v490 = vmul.f32 %v462, 1.442695
    %v491 = vpow.pop %v490
    %v492 = vmul.f32 %v463, 1.442695
    %v493 = vpow.pop %v492
    %v494 = vmul.f32 %v464, 1.442695
    %v495 = vpow.pop %v494
    %v496 = vmul.f32 %v465, 1.442695
    %v497 = vpow.pop %v496
    %514 = vset.pattern.permute.xlu0 0
    %515 = vperm.xlu0 %514, %v467
    %v516 = vpop.permute.xlu0 %515
    %517 = vset.pattern.permute.xlu0 0
    %518 = vperm.xlu0 %517, %v469
    %v519 = vpop.permute.xlu0 %518
    %520 = vset.pattern.permute.xlu0 0
    %521 = vperm.xlu0 %520, %v471
    %v522 = vpop.permute.xlu0 %521
    %523 = vset.pattern.permute.xlu0 0
    %524 = vperm.xlu0 %523, %v473
    %v525 = vpop.permute.xlu0 %524
    %526 = vset.pattern.permute.xlu0 0
    %527 = vperm.xlu0 %526, %v475
    %v528 = vpop.permute.xlu0 %527
    %529 = vset.pattern.permute.xlu0 0
    %530 = vperm.xlu0 %529, %v477
    %v531 = vpop.permute.xlu0 %530
    %532 = vset.pattern.permute.xlu0 0
    %533 = vperm.xlu0 %532, %v479
    %v534 = vpop.permute.xlu0 %533
    %535 = vset.pattern.permute.xlu0 0
    %536 = vperm.xlu0 %535, %v481
    %v537 = vpop.permute.xlu0 %536
    %538 = vset.pattern.permute.xlu0 0
    %539 = vperm.xlu0 %538, %v483
    %v540 = vpop.permute.xlu0 %539
    %541 = vset.pattern.permute.xlu0 0
    %542 = vperm.xlu0 %541, %v485
    %v543 = vpop.permute.xlu0 %542
    %544 = vset.pattern.permute.xlu0 0
    %545 = vperm.xlu0 %544, %v487
    %v546 = vpop.permute.xlu0 %545
    %547 = vset.pattern.permute.xlu0 0
    %548 = vperm.xlu0 %547, %v489
    %v549 = vpop.permute.xlu0 %548
    %550 = vset.pattern.permute.xlu0 0
    %551 = vperm.xlu0 %550, %v491
    %v552 = vpop.permute.xlu0 %551
    %553 = vset.pattern.permute.xlu0 0
    %554 = vperm.xlu0 %553, %v493
    %v555 = vpop.permute.xlu0 %554
    %556 = vset.pattern.permute.xlu0 0
    %557 = vperm.xlu0 %556, %v495
    %v558 = vpop.permute.xlu0 %557
    %559 = vset.pattern.permute.xlu0 0
    %560 = vperm.xlu0 %559, %v497
    %v561 = vpop.permute.xlu0 %560
    %v562 = vlaneseq
    %v563 = vshrl.u32 %v562, 7
    %v564 = vsub.s32 %v315, %v563
    %v565 = vrot.slane %v516, %v564
    %v566 = vlaneseq
    %v567 = vshrl.u32 %v566, 7
    %v568 = vsub.s32 %v320, %v567
    %v569 = vrot.slane %v519, %v568
    %v570 = vsel %vm325, %v569, %v565
    %v571 = vlaneseq
    %v572 = vshrl.u32 %v571, 7
    %v573 = vsub.s32 %v315, %v572
    %v574 = vrot.slane %v522, %v573
    %v575 = vlaneseq
    %v576 = vshrl.u32 %v575, 7
    %v577 = vsub.s32 %v320, %v576
    %v578 = vrot.slane %v525, %v577
    %v579 = vsel %vm325, %v578, %v574
    %v580 = vlaneseq
    %v581 = vshrl.u32 %v580, 7
    %v582 = vsub.s32 %v315, %v581
    %v583 = vrot.slane %v528, %v582
    %v584 = vlaneseq
    %v585 = vshrl.u32 %v584, 7
    %v586 = vsub.s32 %v320, %v585
    %v587 = vrot.slane %v531, %v586
    %v588 = vsel %vm325, %v587, %v583
    %v589 = vlaneseq
    %v590 = vshrl.u32 %v589, 7
    %v591 = vsub.s32 %v315, %v590
    %v592 = vrot.slane %v534, %v591
    %v593 = vlaneseq
    %v594 = vshrl.u32 %v593, 7
    %v595 = vsub.s32 %v320, %v594
    %v596 = vrot.slane %v537, %v595
    %v597 = vsel %vm325, %v596, %v592
    %v598 = vlaneseq
    %v599 = vshrl.u32 %v598, 7
    %v600 = vsub.s32 %v315, %v599
    %v601 = vrot.slane %v540, %v600
    %v602 = vlaneseq
    %v603 = vshrl.u32 %v602, 7
    %v604 = vsub.s32 %v320, %v603
    %v605 = vrot.slane %v543, %v604
    %v606 = vsel %vm325, %v605, %v601
    %v607 = vlaneseq
    %v608 = vshrl.u32 %v607, 7
    %v609 = vsub.s32 %v315, %v608
    %v610 = vrot.slane %v546, %v609
    %v611 = vlaneseq
    %v612 = vshrl.u32 %v611, 7
    %v613 = vsub.s32 %v320, %v612
    %v614 = vrot.slane %v549, %v613
    %v615 = vsel %vm325, %v614, %v610
    %v616 = vlaneseq
    %v617 = vshrl.u32 %v616, 7
    %v618 = vsub.s32 %v315, %v617
    %v619 = vrot.slane %v552, %v618
    %v620 = vlaneseq
    %v621 = vshrl.u32 %v620, 7
    %v622 = vsub.s32 %v320, %v621
    %v623 = vrot.slane %v555, %v622
    %v624 = vsel %vm325, %v623, %v619
    %v625 = vlaneseq
    %v626 = vshrl.u32 %v625, 7
    %v627 = vsub.s32 %v315, %v626
    %v628 = vrot.slane %v558, %v627
    %v629 = vlaneseq
    %v630 = vshrl.u32 %v629, 7
    %v631 = vsub.s32 %v320, %v630
    %v632 = vrot.slane %v561, %v631
    %v633 = vsel %vm325, %v632, %v628
    %v634 = vsel %vm390, %v579, %v570
    %v635 = vsel %vm392, %v588, %v634
    %v636 = vsel %vm394, %v597, %v635
    %v637 = vsel %vm396, %v606, %v636
    %v638 = vsel %vm398, %v615, %v637
    %v639 = vsel %vm400, %v624, %v638
    %v640 = vsel %vm402, %v633, %v639
    %v642 = vsel %vm405, %v640, 0.0
    %643 = vadd.xlane.f32.xlu0 %v642
    %v644 = vpop.xlane.xlu0 %643
    %v645 = vlog2.pop %v644
    %v646 = vmul.f32 %v645, 0.6931472
    %v648 = vlaneseq
    %v649 = vshrl.u32 %v648, 7
    %v650 = vsub.s32 0, %v649
    %v651 = vrot.slane %v646, %v650
    %v652 = vlaneseq
    %v653 = vshrl.u32 %v652, 7
    %v654 = vsub.s32 1, %v653
    %v655 = vrot.slane %v646, %v654
    %v656 = vlaneseq
    %v657 = vshrl.u32 %v656, 7
    %v658 = vsub.s32 2, %v657
    %v659 = vrot.slane %v646, %v658
    %v660 = vlaneseq
    %v661 = vshrl.u32 %v660, 7
    %v662 = vsub.s32 3, %v661
    %v663 = vrot.slane %v646, %v662
    %v664 = vlaneseq
    %v665 = vshrl.u32 %v664, 7
    %v666 = vsub.s32 4, %v665
    %v667 = vrot.slane %v646, %v666
    %v668 = vlaneseq
    %v669 = vshrl.u32 %v668, 7
    %v670 = vsub.s32 5, %v669
    %v671 = vrot.slane %v646, %v670
    %v672 = vlaneseq
    %v673 = vshrl.u32 %v672, 7
    %v674 = vsub.s32 6, %v673
    %v675 = vrot.slane %v646, %v674
    %v676 = vlaneseq
    %v677 = vshrl.u32 %v676, 7
    %v678 = vsub.s32 7, %v677
    %v679 = vrot.slane %v646, %v678
    %v688 = vsub.f32 %v450, %v651
    %v689 = vsub.f32 %v451, %v651
    %v690 = vsub.f32 %v452, %v655
    %v691 = vsub.f32 %v453, %v655
    %v692 = vsub.f32 %v454, %v659
    %v693 = vsub.f32 %v455, %v659
    %v694 = vsub.f32 %v456, %v663
    %v695 = vsub.f32 %v457, %v663
    %v696 = vsub.f32 %v458, %v667
    %v697 = vsub.f32 %v459, %v667
    %v698 = vsub.f32 %v460, %v671
    %v699 = vsub.f32 %v461, %v671
    %v700 = vsub.f32 %v462, %v675
    %v701 = vsub.f32 %v463, %v675
    %v702 = vsub.f32 %v464, %v679
    %v703 = vsub.f32 %v465, %v679
    %v704 = vmul.f32 %v688, 1.442695
    %v705 = vpow.pop %v704
    %v706 = vmul.f32 %v689, 1.442695
    %v707 = vpow.pop %v706
    %v708 = vmul.f32 %v690, 1.442695
    %v709 = vpow.pop %v708
    %v710 = vmul.f32 %v691, 1.442695
    %v711 = vpow.pop %v710
    %v712 = vmul.f32 %v692, 1.442695
    %v713 = vpow.pop %v712
    %v714 = vmul.f32 %v693, 1.442695
    %v715 = vpow.pop %v714
    %v716 = vmul.f32 %v694, 1.442695
    %v717 = vpow.pop %v716
    %v718 = vmul.f32 %v695, 1.442695
    %v719 = vpow.pop %v718
    %v720 = vmul.f32 %v696, 1.442695
    %v721 = vpow.pop %v720
    %v722 = vmul.f32 %v697, 1.442695
    %v723 = vpow.pop %v722
    %v724 = vmul.f32 %v698, 1.442695
    %v725 = vpow.pop %v724
    %v726 = vmul.f32 %v699, 1.442695
    %v727 = vpow.pop %v726
    %v728 = vmul.f32 %v700, 1.442695
    %v729 = vpow.pop %v728
    %v730 = vmul.f32 %v701, 1.442695
    %v731 = vpow.pop %v730
    %v732 = vmul.f32 %v702, 1.442695
    %v733 = vpow.pop %v732
    %v734 = vmul.f32 %v703, 1.442695
    %v735 = vpow.pop %v734
    %v737 = vcombine.high %v34, %v34
    %v739 = vunpack.c.l.s4 1966171168
    %v740 = vunpack.c.0.s8 %v739
    %v741 = vlaneseq
    %v742 = vshrl.u32 %v741, 7
    %v743 = vsub.s32 %v740, %v742
    %v744 = vrot.slane %v34, %v743
    %v746 = vunpack.c.l.s4 1966171168
    %v747 = vunpack.c.0.s8 %v746
    %v748 = vlaneseq
    %v749 = vshrl.u32 %v748, 7
    %v750 = vsub.s32 %v747, %v749
    %v751 = vrot.slane %v737, %v750
    %v752 = vcombine.high %v744, %v744
    %v753 = vcombine.high %v751, %v751
    %v755 = vunpack.c.l.s4 1966171168
    %v756 = vunpack.c.0.s8 %v755
    %v757 = vlaneseq
    %v758 = vshrl.u32 %v757, 7
    %v759 = vsub.s32 %v756, %v758
    %v760 = vrot.slane %v744, %v759
    %v762 = vunpack.c.l.s4 1966171168
    %v763 = vunpack.c.0.s8 %v762
    %v764 = vlaneseq
    %v765 = vshrl.u32 %v764, 7
    %v766 = vsub.s32 %v763, %v765
    %v767 = vrot.slane %v751, %v766
    %v769 = vunpack.c.l.s4 1966171168
    %v770 = vunpack.c.0.s8 %v769
    %v771 = vlaneseq
    %v772 = vshrl.u32 %v771, 7
    %v773 = vsub.s32 %v770, %v772
    %v774 = vrot.slane %v752, %v773
    %v776 = vunpack.c.l.s4 1966171168
    %v777 = vunpack.c.0.s8 %v776
    %v778 = vlaneseq
    %v779 = vshrl.u32 %v778, 7
    %v780 = vsub.s32 %v777, %v779
    %v781 = vrot.slane %v753, %v780
    %v782 = vcombine.high %v760, %v760
    %v783 = vcombine.high %v767, %v767
    %v784 = vcombine.high %v774, %v774
    %v785 = vcombine.high %v781, %v781
    %v786 = vlaneseq
    %v787 = vshrl.u32 %v786, 7
    %v788 = vsub.s32 0, %v787
    %v789 = vrot.slane %v760, %v788
    %v790 = vlaneseq
    %v791 = vshrl.u32 %v790, 7
    %v792 = vsub.s32 0, %v791
    %v793 = vrot.slane %v774, %v792
    %v794 = vlaneseq
    %v795 = vshrl.u32 %v794, 7
    %v796 = vsub.s32 0, %v795
    %v797 = vrot.slane %v782, %v796
    %v798 = vlaneseq
    %v799 = vshrl.u32 %v798, 7
    %v800 = vsub.s32 0, %v799
    %v801 = vrot.slane %v784, %v800
    %v802 = vlaneseq
    %v803 = vshrl.u32 %v802, 7
    %v804 = vsub.s32 0, %v803
    %v805 = vrot.slane %v767, %v804
    %v806 = vlaneseq
    %v807 = vshrl.u32 %v806, 7
    %v808 = vsub.s32 0, %v807
    %v809 = vrot.slane %v781, %v808
    %v810 = vlaneseq
    %v811 = vshrl.u32 %v810, 7
    %v812 = vsub.s32 0, %v811
    %v813 = vrot.slane %v783, %v812
    %v814 = vlaneseq
    %v815 = vshrl.u32 %v814, 7
    %v816 = vsub.s32 0, %v815
    %v817 = vrot.slane %v785, %v816
    %v826 = vsub.f32 %v789, %v36
    %v827 = vsub.f32 %v789, %v37
    %v828 = vsub.f32 %v793, %v36
    %v829 = vsub.f32 %v793, %v37
    %v830 = vsub.f32 %v797, %v36
    %v831 = vsub.f32 %v797, %v37
    %v832 = vsub.f32 %v801, %v36
    %v833 = vsub.f32 %v801, %v37
    %v834 = vsub.f32 %v805, %v36
    %v835 = vsub.f32 %v805, %v37
    %v836 = vsub.f32 %v809, %v36
    %v837 = vsub.f32 %v809, %v37
    %v838 = vsub.f32 %v813, %v36
    %v839 = vsub.f32 %v813, %v37
    %v840 = vsub.f32 %v817, %v36
    %v841 = vsub.f32 %v817, %v37
    %v843 = vcombine.high %v35, %v35
    %v845 = vunpack.c.l.s4 1966171168
    %v846 = vunpack.c.0.s8 %v845
    %v847 = vlaneseq
    %v848 = vshrl.u32 %v847, 7
    %v849 = vsub.s32 %v846, %v848
    %v850 = vrot.slane %v35, %v849
    %v852 = vunpack.c.l.s4 1966171168
    %v853 = vunpack.c.0.s8 %v852
    %v854 = vlaneseq
    %v855 = vshrl.u32 %v854, 7
    %v856 = vsub.s32 %v853, %v855
    %v857 = vrot.slane %v843, %v856
    %v858 = vcombine.high %v850, %v850
    %v859 = vcombine.high %v857, %v857
    %v861 = vunpack.c.l.s4 1966171168
    %v862 = vunpack.c.0.s8 %v861
    %v863 = vlaneseq
    %v864 = vshrl.u32 %v863, 7
    %v865 = vsub.s32 %v862, %v864
    %v866 = vrot.slane %v850, %v865
    %v868 = vunpack.c.l.s4 1966171168
    %v869 = vunpack.c.0.s8 %v868
    %v870 = vlaneseq
    %v871 = vshrl.u32 %v870, 7
    %v872 = vsub.s32 %v869, %v871
    %v873 = vrot.slane %v857, %v872
    %v875 = vunpack.c.l.s4 1966171168
    %v876 = vunpack.c.0.s8 %v875
    %v877 = vlaneseq
    %v878 = vshrl.u32 %v877, 7
    %v879 = vsub.s32 %v876, %v878
    %v880 = vrot.slane %v858, %v879
    %v882 = vunpack.c.l.s4 1966171168
    %v883 = vunpack.c.0.s8 %v882
    %v884 = vlaneseq
    %v885 = vshrl.u32 %v884, 7
    %v886 = vsub.s32 %v883, %v885
    %v887 = vrot.slane %v859, %v886
    %v888 = vcombine.high %v866, %v866
    %v889 = vcombine.high %v873, %v873
    %v890 = vcombine.high %v880, %v880
    %v891 = vcombine.high %v887, %v887
    %v892 = vlaneseq
    %v893 = vshrl.u32 %v892, 7
    %v894 = vsub.s32 0, %v893
    %v895 = vrot.slane %v866, %v894
    %v896 = vlaneseq
    %v897 = vshrl.u32 %v896, 7
    %v898 = vsub.s32 0, %v897
    %v899 = vrot.slane %v880, %v898
    %v900 = vlaneseq
    %v901 = vshrl.u32 %v900, 7
    %v902 = vsub.s32 0, %v901
    %v903 = vrot.slane %v888, %v902
    %v904 = vlaneseq
    %v905 = vshrl.u32 %v904, 7
    %v906 = vsub.s32 0, %v905
    %v907 = vrot.slane %v890, %v906
    %v908 = vlaneseq
    %v909 = vshrl.u32 %v908, 7
    %v910 = vsub.s32 0, %v909
    %v911 = vrot.slane %v873, %v910
    %v912 = vlaneseq
    %v913 = vshrl.u32 %v912, 7
    %v914 = vsub.s32 0, %v913
    %v915 = vrot.slane %v887, %v914
    %v916 = vlaneseq
    %v917 = vshrl.u32 %v916, 7
    %v918 = vsub.s32 0, %v917
    %v919 = vrot.slane %v889, %v918
    %v920 = vlaneseq
    %v921 = vshrl.u32 %v920, 7
    %v922 = vsub.s32 0, %v921
    %v923 = vrot.slane %v891, %v922
    %v932 = vsub.f32 %v895, %v38
    %v933 = vsub.f32 %v895, %v39
    %v934 = vsub.f32 %v899, %v38
    %v935 = vsub.f32 %v899, %v39
    %v936 = vsub.f32 %v903, %v38
    %v937 = vsub.f32 %v903, %v39
    %v938 = vsub.f32 %v907, %v38
    %v939 = vsub.f32 %v907, %v39
    %v940 = vsub.f32 %v911, %v38
    %v941 = vsub.f32 %v911, %v39
    %v942 = vsub.f32 %v915, %v38
    %v943 = vsub.f32 %v915, %v39
    %v944 = vsub.f32 %v919, %v38
    %v945 = vsub.f32 %v919, %v39
    %v946 = vsub.f32 %v923, %v38
    %v947 = vsub.f32 %v923, %v39
    %v948 = vmul.f32 %v932, 1.442695
    %v949 = vpow.pop %v948
    %v950 = vmul.f32 %v933, 1.442695
    %v951 = vpow.pop %v950
    %v952 = vmul.f32 %v934, 1.442695
    %v953 = vpow.pop %v952
    %v954 = vmul.f32 %v935, 1.442695
    %v955 = vpow.pop %v954
    %v956 = vmul.f32 %v936, 1.442695
    %v957 = vpow.pop %v956
    %v958 = vmul.f32 %v937, 1.442695
    %v959 = vpow.pop %v958
    %v960 = vmul.f32 %v938, 1.442695
    %v961 = vpow.pop %v960
    %v962 = vmul.f32 %v939, 1.442695
    %v963 = vpow.pop %v962
    %v964 = vmul.f32 %v940, 1.442695
    %v965 = vpow.pop %v964
    %v966 = vmul.f32 %v941, 1.442695
    %v967 = vpow.pop %v966
    %v968 = vmul.f32 %v942, 1.442695
    %v969 = vpow.pop %v968
    %v970 = vmul.f32 %v943, 1.442695
    %v971 = vpow.pop %v970
    %v972 = vmul.f32 %v944, 1.442695
    %v973 = vpow.pop %v972
    %v974 = vmul.f32 %v945, 1.442695
    %v975 = vpow.pop %v974
    %v976 = vmul.f32 %v946, 1.442695
    %v977 = vpow.pop %v976
    %v978 = vmul.f32 %v947, 1.442695
    %v979 = vpow.pop %v978
    %v980 = vadd.f32 %v38, %v949
    %v981 = vadd.f32 %v39, %v951
    %v982 = vadd.f32 %v38, %v953
    %v983 = vadd.f32 %v39, %v955
    %v984 = vadd.f32 %v38, %v957
    %v985 = vadd.f32 %v39, %v959
    %v986 = vadd.f32 %v38, %v961
    %v987 = vadd.f32 %v39, %v963
    %v988 = vadd.f32 %v38, %v965
    %v989 = vadd.f32 %v39, %v967
    %v990 = vadd.f32 %v38, %v969
    %v991 = vadd.f32 %v39, %v971
    %v992 = vadd.f32 %v38, %v973
    %v993 = vadd.f32 %v39, %v975
    %v994 = vadd.f32 %v38, %v977
    %v995 = vadd.f32 %v39, %v979
    %v996 = vmul.f32 %v826, %v826
    %v997 = vmul.f32 %v827, %v827
    %v998 = vmul.f32 %v828, %v828
    %v999 = vmul.f32 %v829, %v829
    %v1000 = vmul.f32 %v830, %v830
    %v1001 = vmul.f32 %v831, %v831
    %v1002 = vmul.f32 %v832, %v832
    %v1003 = vmul.f32 %v833, %v833
    %v1004 = vmul.f32 %v834, %v834
    %v1005 = vmul.f32 %v835, %v835
    %v1006 = vmul.f32 %v836, %v836
    %v1007 = vmul.f32 %v837, %v837
    %v1008 = vmul.f32 %v838, %v838
    %v1009 = vmul.f32 %v839, %v839
    %v1010 = vmul.f32 %v840, %v840
    %v1011 = vmul.f32 %v841, %v841
    %v1012 = vmul.f32 %v996, %v43
    %v1013 = vmul.f32 %v997, %v45
    %v1014 = vmul.f32 %v998, %v43
    %v1015 = vmul.f32 %v999, %v45
    %v1016 = vmul.f32 %v1000, %v43
    %v1017 = vmul.f32 %v1001, %v45
    %v1018 = vmul.f32 %v1002, %v43
    %v1019 = vmul.f32 %v1003, %v45
    %v1020 = vmul.f32 %v1004, %v43
    %v1021 = vmul.f32 %v1005, %v45
    %v1022 = vmul.f32 %v1006, %v43
    %v1023 = vmul.f32 %v1007, %v45
    %v1024 = vmul.f32 %v1008, %v43
    %v1025 = vmul.f32 %v1009, %v45
    %v1026 = vmul.f32 %v1010, %v43
    %v1027 = vmul.f32 %v1011, %v45
    %v1028 = vadd.f32 %v980, %v1012
    %v1029 = vadd.f32 %v981, %v1013
    %v1030 = vadd.f32 %v982, %v1014
    %v1031 = vadd.f32 %v983, %v1015
    %v1032 = vadd.f32 %v984, %v1016
    %v1033 = vadd.f32 %v985, %v1017
    %v1034 = vadd.f32 %v986, %v1018
    %v1035 = vadd.f32 %v987, %v1019
    %v1036 = vadd.f32 %v988, %v1020
    %v1037 = vadd.f32 %v989, %v1021
    %v1038 = vadd.f32 %v990, %v1022
    %v1039 = vadd.f32 %v991, %v1023
    %v1040 = vadd.f32 %v992, %v1024
    %v1041 = vadd.f32 %v993, %v1025
    %v1042 = vadd.f32 %v994, %v1026
    %v1043 = vadd.f32 %v995, %v1027
    %v1044 = vsel %vm200, %v1028, 0.0
    %1045 = vadd.xlane.f32.xlu0 %v1044
    %v1046 = vpop.xlane.xlu0 %1045
    %v1047 = vsel %vm204, %v1029, 0.0
    %1048 = vadd.xlane.f32.xlu0 %v1047
    %v1049 = vpop.xlane.xlu0 %1048
    %v1050 = vsel %vm200, %v1030, 0.0
    %1051 = vadd.xlane.f32.xlu0 %v1050
    %v1052 = vpop.xlane.xlu0 %1051
    %v1053 = vsel %vm204, %v1031, 0.0
    %1054 = vadd.xlane.f32.xlu0 %v1053
    %v1055 = vpop.xlane.xlu0 %1054
    %v1056 = vsel %vm200, %v1032, 0.0
    %1057 = vadd.xlane.f32.xlu0 %v1056
    %v1058 = vpop.xlane.xlu0 %1057
    %v1059 = vsel %vm204, %v1033, 0.0
    %1060 = vadd.xlane.f32.xlu0 %v1059
    %v1061 = vpop.xlane.xlu0 %1060
    %v1062 = vsel %vm200, %v1034, 0.0
    %1063 = vadd.xlane.f32.xlu0 %v1062
    %v1064 = vpop.xlane.xlu0 %1063
    %v1065 = vsel %vm204, %v1035, 0.0
    %1066 = vadd.xlane.f32.xlu0 %v1065
    %v1067 = vpop.xlane.xlu0 %1066
    %v1068 = vsel %vm200, %v1036, 0.0
    %1069 = vadd.xlane.f32.xlu0 %v1068
    %v1070 = vpop.xlane.xlu0 %1069
    %v1071 = vsel %vm204, %v1037, 0.0
    %1072 = vadd.xlane.f32.xlu0 %v1071
    %v1073 = vpop.xlane.xlu0 %1072
    %v1074 = vsel %vm200, %v1038, 0.0
    %1075 = vadd.xlane.f32.xlu0 %v1074
    %v1076 = vpop.xlane.xlu0 %1075
    %v1077 = vsel %vm204, %v1039, 0.0
    %1078 = vadd.xlane.f32.xlu0 %v1077
    %v1079 = vpop.xlane.xlu0 %1078
    %v1080 = vsel %vm200, %v1040, 0.0
    %1081 = vadd.xlane.f32.xlu0 %v1080
    %v1082 = vpop.xlane.xlu0 %1081
    %v1083 = vsel %vm204, %v1041, 0.0
    %1084 = vadd.xlane.f32.xlu0 %v1083
    %v1085 = vpop.xlane.xlu0 %1084
    %v1086 = vsel %vm200, %v1042, 0.0
    %1087 = vadd.xlane.f32.xlu0 %v1086
    %v1088 = vpop.xlane.xlu0 %1087
    %v1089 = vsel %vm204, %v1043, 0.0
    %1090 = vadd.xlane.f32.xlu0 %v1089
    %v1091 = vpop.xlane.xlu0 %1090
    %v1092 = vmul.f32 %v1046, %v705
    %v1093 = vmul.f32 %v1049, %v707
    %v1094 = vmul.f32 %v1052, %v709
    %v1095 = vmul.f32 %v1055, %v711
    %v1096 = vmul.f32 %v1058, %v713
    %v1097 = vmul.f32 %v1061, %v715
    %v1098 = vmul.f32 %v1064, %v717
    %v1099 = vmul.f32 %v1067, %v719
    %v1100 = vmul.f32 %v1070, %v721
    %v1101 = vmul.f32 %v1073, %v723
    %v1102 = vmul.f32 %v1076, %v725
    %v1103 = vmul.f32 %v1079, %v727
    %v1104 = vmul.f32 %v1082, %v729
    %v1105 = vmul.f32 %v1085, %v731
    %v1106 = vmul.f32 %v1088, %v733
    %v1107 = vmul.f32 %v1091, %v735
    %1124 = vset.pattern.permute.xlu0 0
    %1125 = vperm.xlu0 %1124, %v1092
    %v1126 = vpop.permute.xlu0 %1125
    %1127 = vset.pattern.permute.xlu0 0
    %1128 = vperm.xlu0 %1127, %v1093
    %v1129 = vpop.permute.xlu0 %1128
    %1130 = vset.pattern.permute.xlu0 0
    %1131 = vperm.xlu0 %1130, %v1094
    %v1132 = vpop.permute.xlu0 %1131
    %1133 = vset.pattern.permute.xlu0 0
    %1134 = vperm.xlu0 %1133, %v1095
    %v1135 = vpop.permute.xlu0 %1134
    %1136 = vset.pattern.permute.xlu0 0
    %1137 = vperm.xlu0 %1136, %v1096
    %v1138 = vpop.permute.xlu0 %1137
    %1139 = vset.pattern.permute.xlu0 0
    %1140 = vperm.xlu0 %1139, %v1097
    %v1141 = vpop.permute.xlu0 %1140
    %1142 = vset.pattern.permute.xlu0 0
    %1143 = vperm.xlu0 %1142, %v1098
    %v1144 = vpop.permute.xlu0 %1143
    %1145 = vset.pattern.permute.xlu0 0
    %1146 = vperm.xlu0 %1145, %v1099
    %v1147 = vpop.permute.xlu0 %1146
    %1148 = vset.pattern.permute.xlu0 0
    %1149 = vperm.xlu0 %1148, %v1100
    %v1150 = vpop.permute.xlu0 %1149
    %1151 = vset.pattern.permute.xlu0 0
    %1152 = vperm.xlu0 %1151, %v1101
    %v1153 = vpop.permute.xlu0 %1152
    %1154 = vset.pattern.permute.xlu0 0
    %1155 = vperm.xlu0 %1154, %v1102
    %v1156 = vpop.permute.xlu0 %1155
    %1157 = vset.pattern.permute.xlu0 0
    %1158 = vperm.xlu0 %1157, %v1103
    %v1159 = vpop.permute.xlu0 %1158
    %1160 = vset.pattern.permute.xlu0 0
    %1161 = vperm.xlu0 %1160, %v1104
    %v1162 = vpop.permute.xlu0 %1161
    %1163 = vset.pattern.permute.xlu0 0
    %1164 = vperm.xlu0 %1163, %v1105
    %v1165 = vpop.permute.xlu0 %1164
    %1166 = vset.pattern.permute.xlu0 0
    %1167 = vperm.xlu0 %1166, %v1106
    %v1168 = vpop.permute.xlu0 %1167
    %1169 = vset.pattern.permute.xlu0 0
    %1170 = vperm.xlu0 %1169, %v1107
    %v1171 = vpop.permute.xlu0 %1170
    %v1172 = vlaneseq
    %v1173 = vshrl.u32 %v1172, 7
    %v1174 = vsub.s32 %v315, %v1173
    %v1175 = vrot.slane %v1126, %v1174
    %v1176 = vlaneseq
    %v1177 = vshrl.u32 %v1176, 7
    %v1178 = vsub.s32 %v320, %v1177
    %v1179 = vrot.slane %v1129, %v1178
    %v1180 = vsel %vm325, %v1179, %v1175
    %v1181 = vlaneseq
    %v1182 = vshrl.u32 %v1181, 7
    %v1183 = vsub.s32 %v315, %v1182
    %v1184 = vrot.slane %v1132, %v1183
    %v1185 = vlaneseq
    %v1186 = vshrl.u32 %v1185, 7
    %v1187 = vsub.s32 %v320, %v1186
    %v1188 = vrot.slane %v1135, %v1187
    %v1189 = vsel %vm325, %v1188, %v1184
    %v1190 = vlaneseq
    %v1191 = vshrl.u32 %v1190, 7
    %v1192 = vsub.s32 %v315, %v1191
    %v1193 = vrot.slane %v1138, %v1192
    %v1194 = vlaneseq
    %v1195 = vshrl.u32 %v1194, 7
    %v1196 = vsub.s32 %v320, %v1195
    %v1197 = vrot.slane %v1141, %v1196
    %v1198 = vsel %vm325, %v1197, %v1193
    %v1199 = vlaneseq
    %v1200 = vshrl.u32 %v1199, 7
    %v1201 = vsub.s32 %v315, %v1200
    %v1202 = vrot.slane %v1144, %v1201
    %v1203 = vlaneseq
    %v1204 = vshrl.u32 %v1203, 7
    %v1205 = vsub.s32 %v320, %v1204
    %v1206 = vrot.slane %v1147, %v1205
    %v1207 = vsel %vm325, %v1206, %v1202
    %v1208 = vlaneseq
    %v1209 = vshrl.u32 %v1208, 7
    %v1210 = vsub.s32 %v315, %v1209
    %v1211 = vrot.slane %v1150, %v1210
    %v1212 = vlaneseq
    %v1213 = vshrl.u32 %v1212, 7
    %v1214 = vsub.s32 %v320, %v1213
    %v1215 = vrot.slane %v1153, %v1214
    %v1216 = vsel %vm325, %v1215, %v1211
    %v1217 = vlaneseq
    %v1218 = vshrl.u32 %v1217, 7
    %v1219 = vsub.s32 %v315, %v1218
    %v1220 = vrot.slane %v1156, %v1219
    %v1221 = vlaneseq
    %v1222 = vshrl.u32 %v1221, 7
    %v1223 = vsub.s32 %v320, %v1222
    %v1224 = vrot.slane %v1159, %v1223
    %v1225 = vsel %vm325, %v1224, %v1220
    %v1226 = vlaneseq
    %v1227 = vshrl.u32 %v1226, 7
    %v1228 = vsub.s32 %v315, %v1227
    %v1229 = vrot.slane %v1162, %v1228
    %v1230 = vlaneseq
    %v1231 = vshrl.u32 %v1230, 7
    %v1232 = vsub.s32 %v320, %v1231
    %v1233 = vrot.slane %v1165, %v1232
    %v1234 = vsel %vm325, %v1233, %v1229
    %v1235 = vlaneseq
    %v1236 = vshrl.u32 %v1235, 7
    %v1237 = vsub.s32 %v315, %v1236
    %v1238 = vrot.slane %v1168, %v1237
    %v1239 = vlaneseq
    %v1240 = vshrl.u32 %v1239, 7
    %v1241 = vsub.s32 %v320, %v1240
    %v1242 = vrot.slane %v1171, %v1241
    %v1243 = vsel %vm325, %v1242, %v1238
    %v1244 = vsel %vm390, %v1189, %v1180
    %v1245 = vsel %vm392, %v1198, %v1244
    %v1246 = vsel %vm394, %v1207, %v1245
    %v1247 = vsel %vm396, %v1216, %v1246
    %v1248 = vsel %vm398, %v1225, %v1247
    %v1249 = vsel %vm400, %v1234, %v1248
    %v1250 = vsel %vm402, %v1243, %v1249
    %v1252 = vsel %vm405, %v1250, 0.0
    %1253 = vadd.xlane.f32.xlu0 %v1252
    %v1254 = vpop.xlane.xlu0 %1253
    %v1255 = vmul.f32 %v1254, -0.5
    %v1256 = vadd.f32 %v35, 1.0
    %v1257 = vmul.f32 %v1256, 0.5
    %v1258 = vsel %vm200, %v1257, 0.0
    %1259 = vadd.xlane.f32.xlu0 %v1258
    %v1260 = vpop.xlane.xlu0 %1259
    %v1261 = vsub.f32 0.0, %v1260
    %v1262 = vsub.f32 %v1255, %v1261
    %v1263 = vrot.slane %v1262, 4
    %v1264 = vadd.f32 %v1262, %v1263
    %v1265 = vrot.slane %v1264, 2
    %v1266 = vadd.f32 %v1264, %v1265
    %v1267 = vrot.slane %v1266, 1
    %v1268 = vadd.f32 %v1266, %v1267
    %v1269 = vrcp.pop 8.0
    %v1270 = vmul.f32 %v1268, %v1269
    %vm1271 = vcmask 0
    %1272 = vst.msk [vmem:[#allocation6] sm:$0x1] %vm1271, %v1270
    %v1273 = vsub.f32 -2.7080503, %v688
    %v1274 = vsub.f32 -2.7080503, %v689
    %v1275 = vsub.f32 -2.7080503, %v690
    %v1276 = vsub.f32 -2.7080503, %v691
    %v1277 = vsub.f32 -2.7080503, %v692
    %v1278 = vsub.f32 -2.7080503, %v693
    %v1279 = vsub.f32 -2.7080503, %v694
    %v1280 = vsub.f32 -2.7080503, %v695
    %v1281 = vsub.f32 -2.7080503, %v696
    %v1282 = vsub.f32 -2.7080503, %v697
    %v1283 = vsub.f32 -2.7080503, %v698
    %v1284 = vsub.f32 -2.7080503, %v699
    %v1285 = vsub.f32 -2.7080503, %v700
    %v1286 = vsub.f32 -2.7080503, %v701
    %v1287 = vsub.f32 -2.7080503, %v702
    %v1288 = vsub.f32 -2.7080503, %v703
    %v1289 = vmul.f32 %v705, %v1273
    %v1290 = vmul.f32 %v707, %v1274
    %v1291 = vmul.f32 %v709, %v1275
    %v1292 = vmul.f32 %v711, %v1276
    %v1293 = vmul.f32 %v713, %v1277
    %v1294 = vmul.f32 %v715, %v1278
    %v1295 = vmul.f32 %v717, %v1279
    %v1296 = vmul.f32 %v719, %v1280
    %v1297 = vmul.f32 %v721, %v1281
    %v1298 = vmul.f32 %v723, %v1282
    %v1299 = vmul.f32 %v725, %v1283
    %v1300 = vmul.f32 %v727, %v1284
    %v1301 = vmul.f32 %v729, %v1285
    %v1302 = vmul.f32 %v731, %v1286
    %v1303 = vmul.f32 %v733, %v1287
    %v1304 = vmul.f32 %v735, %v1288
    %1321 = vset.pattern.permute.xlu0 0
    %1322 = vperm.xlu0 %1321, %v1289
    %v1323 = vpop.permute.xlu0 %1322
    %1324 = vset.pattern.permute.xlu0 0
    %1325 = vperm.xlu0 %1324, %v1290
    %v1326 = vpop.permute.xlu0 %1325
    %1327 = vset.pattern.permute.xlu0 0
    %1328 = vperm.xlu0 %1327, %v1291
    %v1329 = vpop.permute.xlu0 %1328
    %1330 = vset.pattern.permute.xlu0 0
    %1331 = vperm.xlu0 %1330, %v1292
    %v1332 = vpop.permute.xlu0 %1331
    %1333 = vset.pattern.permute.xlu0 0
    %1334 = vperm.xlu0 %1333, %v1293
    %v1335 = vpop.permute.xlu0 %1334
    %1336 = vset.pattern.permute.xlu0 0
    %1337 = vperm.xlu0 %1336, %v1294
    %v1338 = vpop.permute.xlu0 %1337
    %1339 = vset.pattern.permute.xlu0 0
    %1340 = vperm.xlu0 %1339, %v1295
    %v1341 = vpop.permute.xlu0 %1340
    %1342 = vset.pattern.permute.xlu0 0
    %1343 = vperm.xlu0 %1342, %v1296
    %v1344 = vpop.permute.xlu0 %1343
    %1345 = vset.pattern.permute.xlu0 0
    %1346 = vperm.xlu0 %1345, %v1297
    %v1347 = vpop.permute.xlu0 %1346
    %1348 = vset.pattern.permute.xlu0 0
    %1349 = vperm.xlu0 %1348, %v1298
    %v1350 = vpop.permute.xlu0 %1349
    %1351 = vset.pattern.permute.xlu0 0
    %1352 = vperm.xlu0 %1351, %v1299
    %v1353 = vpop.permute.xlu0 %1352
    %1354 = vset.pattern.permute.xlu0 0
    %1355 = vperm.xlu0 %1354, %v1300
    %v1356 = vpop.permute.xlu0 %1355
    %1357 = vset.pattern.permute.xlu0 0
    %1358 = vperm.xlu0 %1357, %v1301
    %v1359 = vpop.permute.xlu0 %1358
    %1360 = vset.pattern.permute.xlu0 0
    %1361 = vperm.xlu0 %1360, %v1302
    %v1362 = vpop.permute.xlu0 %1361
    %1363 = vset.pattern.permute.xlu0 0
    %1364 = vperm.xlu0 %1363, %v1303
    %v1365 = vpop.permute.xlu0 %1364
    %1366 = vset.pattern.permute.xlu0 0
    %1367 = vperm.xlu0 %1366, %v1304
    %v1368 = vpop.permute.xlu0 %1367
    %v1369 = vlaneseq
    %v1370 = vshrl.u32 %v1369, 7
    %v1371 = vsub.s32 %v315, %v1370
    %v1372 = vrot.slane %v1323, %v1371
    %v1373 = vlaneseq
    %v1374 = vshrl.u32 %v1373, 7
    %v1375 = vsub.s32 %v320, %v1374
    %v1376 = vrot.slane %v1326, %v1375
    %v1377 = vsel %vm325, %v1376, %v1372
    %v1378 = vlaneseq
    %v1379 = vshrl.u32 %v1378, 7
    %v1380 = vsub.s32 %v315, %v1379
    %v1381 = vrot.slane %v1329, %v1380
    %v1382 = vlaneseq
    %v1383 = vshrl.u32 %v1382, 7
    %v1384 = vsub.s32 %v320, %v1383
    %v1385 = vrot.slane %v1332, %v1384
    %v1386 = vsel %vm325, %v1385, %v1381
    %v1387 = vlaneseq
    %v1388 = vshrl.u32 %v1387, 7
    %v1389 = vsub.s32 %v315, %v1388
    %v1390 = vrot.slane %v1335, %v1389
    %v1391 = vlaneseq
    %v1392 = vshrl.u32 %v1391, 7
    %v1393 = vsub.s32 %v320, %v1392
    %v1394 = vrot.slane %v1338, %v1393
    %v1395 = vsel %vm325, %v1394, %v1390
    %v1396 = vlaneseq
    %v1397 = vshrl.u32 %v1396, 7
    %v1398 = vsub.s32 %v315, %v1397
    %v1399 = vrot.slane %v1341, %v1398
    %v1400 = vlaneseq
    %v1401 = vshrl.u32 %v1400, 7
    %v1402 = vsub.s32 %v320, %v1401
    %v1403 = vrot.slane %v1344, %v1402
    %v1404 = vsel %vm325, %v1403, %v1399
    %v1405 = vlaneseq
    %v1406 = vshrl.u32 %v1405, 7
    %v1407 = vsub.s32 %v315, %v1406
    %v1408 = vrot.slane %v1347, %v1407
    %v1409 = vlaneseq
    %v1410 = vshrl.u32 %v1409, 7
    %v1411 = vsub.s32 %v320, %v1410
    %v1412 = vrot.slane %v1350, %v1411
    %v1413 = vsel %vm325, %v1412, %v1408
    %v1414 = vlaneseq
    %v1415 = vshrl.u32 %v1414, 7
    %v1416 = vsub.s32 %v315, %v1415
    %v1417 = vrot.slane %v1353, %v1416
    %v1418 = vlaneseq
    %v1419 = vshrl.u32 %v1418, 7
    %v1420 = vsub.s32 %v320, %v1419
    %v1421 = vrot.slane %v1356, %v1420
    %v1422 = vsel %vm325, %v1421, %v1417
    %v1423 = vlaneseq
    %v1424 = vshrl.u32 %v1423, 7
    %v1425 = vsub.s32 %v315, %v1424
    %v1426 = vrot.slane %v1359, %v1425
    %v1427 = vlaneseq
    %v1428 = vshrl.u32 %v1427, 7
    %v1429 = vsub.s32 %v320, %v1428
    %v1430 = vrot.slane %v1362, %v1429
    %v1431 = vsel %vm325, %v1430, %v1426
    %v1432 = vlaneseq
    %v1433 = vshrl.u32 %v1432, 7
    %v1434 = vsub.s32 %v315, %v1433
    %v1435 = vrot.slane %v1365, %v1434
    %v1436 = vlaneseq
    %v1437 = vshrl.u32 %v1436, 7
    %v1438 = vsub.s32 %v320, %v1437
    %v1439 = vrot.slane %v1368, %v1438
    %v1440 = vsel %vm325, %v1439, %v1435
    %v1441 = vsel %vm390, %v1386, %v1377
    %v1442 = vsel %vm392, %v1395, %v1441
    %v1443 = vsel %vm394, %v1404, %v1442
    %v1444 = vsel %vm396, %v1413, %v1443
    %v1445 = vsel %vm398, %v1422, %v1444
    %v1446 = vsel %vm400, %v1431, %v1445
    %v1447 = vsel %vm402, %v1440, %v1446
    %v1449 = vsel %vm405, %v1447, 0.0
    %1450 = vadd.xlane.f32.xlu0 %v1449
    %v1451 = vpop.xlane.xlu0 %1450
    %v1452 = vrot.slane %v1451, 4
    %v1453 = vadd.f32 %v1451, %v1452
    %v1454 = vrot.slane %v1453, 2
    %v1455 = vadd.f32 %v1453, %v1454
    %v1456 = vrot.slane %v1455, 1
    %v1457 = vadd.f32 %v1455, %v1456
    %v1458 = vmul.f32 %v1457, %v1269
    %1459 = vst.msk [vmem:[#allocation7] sm:$0x1] %vm1271, %v1458
    %1476 = vset.pattern.permute.xlu0 0
    %1477 = vperm.xlu0 %1476, %v705
    %v1478 = vpop.permute.xlu0 %1477
    %1479 = vset.pattern.permute.xlu0 0
    %1480 = vperm.xlu0 %1479, %v707
    %v1481 = vpop.permute.xlu0 %1480
    %1482 = vset.pattern.permute.xlu0 0
    %1483 = vperm.xlu0 %1482, %v709
    %v1484 = vpop.permute.xlu0 %1483
    %1485 = vset.pattern.permute.xlu0 0
    %1486 = vperm.xlu0 %1485, %v711
    %v1487 = vpop.permute.xlu0 %1486
    %1488 = vset.pattern.permute.xlu0 0
    %1489 = vperm.xlu0 %1488, %v713
    %v1490 = vpop.permute.xlu0 %1489
    %1491 = vset.pattern.permute.xlu0 0
    %1492 = vperm.xlu0 %1491, %v715
    %v1493 = vpop.permute.xlu0 %1492
    %1494 = vset.pattern.permute.xlu0 0
    %1495 = vperm.xlu0 %1494, %v717
    %v1496 = vpop.permute.xlu0 %1495
    %1497 = vset.pattern.permute.xlu0 0
    %1498 = vperm.xlu0 %1497, %v719
    %v1499 = vpop.permute.xlu0 %1498
    %1500 = vset.pattern.permute.xlu0 0
    %1501 = vperm.xlu0 %1500, %v721
    %v1502 = vpop.permute.xlu0 %1501
    %1503 = vset.pattern.permute.xlu0 0
    %1504 = vperm.xlu0 %1503, %v723
    %v1505 = vpop.permute.xlu0 %1504
    %1506 = vset.pattern.permute.xlu0 0
    %1507 = vperm.xlu0 %1506, %v725
    %v1508 = vpop.permute.xlu0 %1507
    %1509 = vset.pattern.permute.xlu0 0
    %1510 = vperm.xlu0 %1509, %v727
    %v1511 = vpop.permute.xlu0 %1510
    %1512 = vset.pattern.permute.xlu0 0
    %1513 = vperm.xlu0 %1512, %v729
    %v1514 = vpop.permute.xlu0 %1513
    %1515 = vset.pattern.permute.xlu0 0
    %1516 = vperm.xlu0 %1515, %v731
    %v1517 = vpop.permute.xlu0 %1516
    %1518 = vset.pattern.permute.xlu0 0
    %1519 = vperm.xlu0 %1518, %v733
    %v1520 = vpop.permute.xlu0 %1519
    %1521 = vset.pattern.permute.xlu0 0
    %1522 = vperm.xlu0 %1521, %v735
    %v1523 = vpop.permute.xlu0 %1522
    %v1524 = vlaneseq
    %v1525 = vshrl.u32 %v1524, 7
    %v1526 = vsub.s32 %v315, %v1525
    %v1527 = vrot.slane %v1478, %v1526
    %v1528 = vlaneseq
    %v1529 = vshrl.u32 %v1528, 7
    %v1530 = vsub.s32 %v320, %v1529
    %v1531 = vrot.slane %v1481, %v1530
    %v1532 = vsel %vm325, %v1531, %v1527
    %v1533 = vlaneseq
    %v1534 = vshrl.u32 %v1533, 7
    %v1535 = vsub.s32 %v315, %v1534
    %v1536 = vrot.slane %v1484, %v1535
    %v1537 = vlaneseq
    %v1538 = vshrl.u32 %v1537, 7
    %v1539 = vsub.s32 %v320, %v1538
    %v1540 = vrot.slane %v1487, %v1539
    %v1541 = vsel %vm325, %v1540, %v1536
    %v1542 = vlaneseq
    %v1543 = vshrl.u32 %v1542, 7
    %v1544 = vsub.s32 %v315, %v1543
    %v1545 = vrot.slane %v1490, %v1544
    %v1546 = vlaneseq
    %v1547 = vshrl.u32 %v1546, 7
    %v1548 = vsub.s32 %v320, %v1547
    %v1549 = vrot.slane %v1493, %v1548
    %v1550 = vsel %vm325, %v1549, %v1545
    %v1551 = vlaneseq
    %v1552 = vshrl.u32 %v1551, 7
    %v1553 = vsub.s32 %v315, %v1552
    %v1554 = vrot.slane %v1496, %v1553
    %v1555 = vlaneseq
    %v1556 = vshrl.u32 %v1555, 7
    %v1557 = vsub.s32 %v320, %v1556
    %v1558 = vrot.slane %v1499, %v1557
    %v1559 = vsel %vm325, %v1558, %v1554
    %v1560 = vlaneseq
    %v1561 = vshrl.u32 %v1560, 7
    %v1562 = vsub.s32 %v315, %v1561
    %v1563 = vrot.slane %v1502, %v1562
    %v1564 = vlaneseq
    %v1565 = vshrl.u32 %v1564, 7
    %v1566 = vsub.s32 %v320, %v1565
    %v1567 = vrot.slane %v1505, %v1566
    %v1568 = vsel %vm325, %v1567, %v1563
    %v1569 = vlaneseq
    %v1570 = vshrl.u32 %v1569, 7
    %v1571 = vsub.s32 %v315, %v1570
    %v1572 = vrot.slane %v1508, %v1571
    %v1573 = vlaneseq
    %v1574 = vshrl.u32 %v1573, 7
    %v1575 = vsub.s32 %v320, %v1574
    %v1576 = vrot.slane %v1511, %v1575
    %v1577 = vsel %vm325, %v1576, %v1572
    %v1578 = vlaneseq
    %v1579 = vshrl.u32 %v1578, 7
    %v1580 = vsub.s32 %v315, %v1579
    %v1581 = vrot.slane %v1514, %v1580
    %v1582 = vlaneseq
    %v1583 = vshrl.u32 %v1582, 7
    %v1584 = vsub.s32 %v320, %v1583
    %v1585 = vrot.slane %v1517, %v1584
    %v1586 = vsel %vm325, %v1585, %v1581
    %v1587 = vlaneseq
    %v1588 = vshrl.u32 %v1587, 7
    %v1589 = vsub.s32 %v315, %v1588
    %v1590 = vrot.slane %v1520, %v1589
    %v1591 = vlaneseq
    %v1592 = vshrl.u32 %v1591, 7
    %v1593 = vsub.s32 %v320, %v1592
    %v1594 = vrot.slane %v1523, %v1593
    %v1595 = vsel %vm325, %v1594, %v1590
    %v1596 = vsel %vm390, %v1541, %v1532
    %v1597 = vsel %vm392, %v1550, %v1596
    %v1598 = vsel %vm394, %v1559, %v1597
    %v1599 = vsel %vm396, %v1568, %v1598
    %v1600 = vsel %vm398, %v1577, %v1599
    %v1601 = vsel %vm400, %v1586, %v1600
    %v1602 = vsel %vm402, %v1595, %v1601
    %1604 = vst.msk [vmem:[#allocation2] sm:$0xff] %vm405, %v1602
    %v1605 = vld [vmem:[%s5] sm:$0xff]
    %v1606 = vld [vmem:[%s5 + $0x8] sm:$0x7f]
    %v1607 = vld [vmem:[%s6] sm:$0x1]
    %v1609 = vlaneseq
    %v1610 = vshrl.u32 %v1609, 7
    %v1611 = vsub.s32 0, %v1610
    %v1612 = vrot.slane %v1607, %v1611
    %v1614 = vsel %vm405, %v1602, 0
    %vm1616 = vcmask 1046528
    %v1618 = vsel %vm1616, %v1606, 0
    %1620 = vmatprep.subr.mxu0 0.0
    %1621 = vmatpush1.msra.mxu0 %v1605
    %1622 = vmatprep.subr.mxu0 0.0
    %1623 = vmatpush1.msra.mxu0 %v1618
    %1624 = vmatprep.subr.mxu0 0.0
    %1625 = vmatpush1.msra.mxu0 0.0
    %1626 = vmatprep.subr.mxu0 0.0
    %1627 = vmatpush1.msra.mxu0 0.0
    %1628 = vmatprep.subr.mxu0 0.0
    %1629 = vmatpush1.msra.mxu0 0.0
    %1630 = vmatprep.subr.mxu0 0.0
    %1631 = vmatpush1.msra.mxu0 0.0
    %1632 = vmatprep.subr.mxu0 0.0
    %1633 = vmatpush1.msra.mxu0 0.0
    %1634 = vmatprep.subr.mxu0 0.0
    %1635 = vmatpush1.msra.mxu0 0.0
    %1636 = vmatprep.subr.mxu0 0.0
    %1637 = vmatpush1.msra.mxu0 0.0
    %1638 = vmatprep.subr.mxu0 0.0
    %1639 = vmatpush1.msra.mxu0 0.0
    %1640 = vmatprep.subr.mxu0 0.0
    %1641 = vmatpush1.msra.mxu0 0.0
    %1642 = vmatprep.subr.mxu0 0.0
    %1643 = vmatpush1.msra.mxu0 0.0
    %1644 = vmatprep.subr.mxu0 0.0
    %1645 = vmatpush1.msra.mxu0 0.0
    %1646 = vmatprep.subr.mxu0 0.0
    %1647 = vmatpush1.msra.mxu0 0.0
    %1648 = vmatprep.subr.mxu0 0.0
    %1649 = vmatpush1.msra.mxu0 0.0
    %1650 = vmatprep.subr.mxu0 0.0
    %1651 = vmatpush1.msra.mxu0 0.0
    %1652 = vmatprep.subr.mxu0 0.0
    %1653 = vmatpush1.msra.mxu0 0.0
    %1654 = vmatprep.subr.mxu0 0.0
    %1655 = vmatpush1.msra.mxu0 0.0
    %1656 = vmatprep.subr.mxu0 0.0
    %1657 = vmatpush1.msra.mxu0 0.0
    %1658 = vmatprep.subr.mxu0 0.0
    %1659 = vmatpush1.msra.mxu0 0.0
    %1660 = vmatprep.subr.mxu0 0.0
    %1661 = vmatpush1.msra.mxu0 0.0
    %1662 = vmatprep.subr.mxu0 0.0
    %1663 = vmatpush1.msra.mxu0 0.0
    %1664 = vmatprep.subr.mxu0 0.0
    %1665 = vmatpush1.msra.mxu0 0.0
    %1666 = vmatprep.subr.mxu0 0.0
    %1667 = vmatpush1.msra.mxu0 0.0
    %1668 = vmatprep.subr.mxu0 0.0
    %1669 = vmatpush1.msra.mxu0 0.0
    %1670 = vmatprep.subr.mxu0 0.0
    %1671 = vmatpush1.msra.mxu0 0.0
    %1672 = vmatprep.subr.mxu0 0.0
    %1673 = vmatpush1.msra.mxu0 0.0
    %1674 = vmatprep.subr.mxu0 0.0
    %1675 = vmatpush1.msra.mxu0 0.0
    %1676 = vmatprep.subr.mxu0 0.0
    %1677 = vmatpush1.msra.mxu0 0.0
    %1678 = vmatprep.subr.mxu0 0.0
    %1679 = vmatpush1.msra.mxu0 0.0
    %1680 = vmatprep.subr.mxu0 0.0
    %1681 = vmatpush1.msra.mxu0 0.0
    %1682 = vmatprep.subr.mxu0 0.0
    %1683 = vmatpush1.msra.mxu0 0.0
    %1684 = vmatprep.mubr.f32.mxu0 0.0
    %1685 = vmatmul.mubr.f32.gmra.mrb[0].mxu0 %v1614
    %v1686 = vpop.f32.mrb[0].mxu0
    %v1687 = vadd.f32 %v1612, %v1686
    %v1688 = vpop.f32.mrb[0].mxu0
    %1689 = vdwg.mxu0
    %vm1690 = vcmask 523264
    %1691 = vst.msk [vmem:[#allocation4] sm:$0xff] %vm1690, %v1687
    // Predicated region
    $region30: #{forward.7} parent=1 // pred_check
      _
    $region31: #{forward.7} parent=1 // pred_check_branch
      %1693 = sbr.rel (0) target = $region33
    $region32: #{forward.7} parent=1 // pred_region
      %s1695 = ssub.s32 128, 128
      %1696 = vsyncadd [#allocation3], %s1695
      %s1698 = sshll.u32 [#allocation2], 4
      %s1699 = int_to_ptr.vmem [resolvable:$true] %s1698
      %1701 = dma.vmem_to_hbm [thread:$0]  %s1699, 128, %s7, [#allocation3]
    $region33: #{forward.7} parent=1 // pred_fallthru
      _
    // Predicated region
    $region34: #{forward.7} parent=1 // pred_check
      _
    $region35: #{forward.7} parent=1 // pred_check_branch
      %1703 = sbr.rel (0) target = $region37
    $region36: #{forward.7} parent=1 // pred_region
      %s1705 = ssub.s32 128, 128
      %1706 = vsyncadd [#allocation5], %s1705
      %s1708 = sshll.u32 [#allocation4], 4
      %s1709 = int_to_ptr.vmem [resolvable:$true] %s1708
      %1711 = dma.vmem_to_hbm [thread:$0]  %s1709, 128, %s8, [#allocation5]
    $region37: #{forward.7} parent=1 // pred_fallthru
      _
    // Predicated region
    $region38: #{forward.7} parent=1 // pred_check
      _
    $region39: #{forward.7} parent=1 // pred_check_branch
      %1713 = sbr.rel (0) target = $region41
    $region40: #{forward.7} parent=1 // pred_region
      %s1715 = ssub.s32 16, 16
      %1716 = vsyncadd [#allocation5], %s1715
      %s1718 = sshll.u32 [#allocation6], 4
      %s1719 = int_to_ptr.vmem [resolvable:$true] %s1718
      %1721 = dma.vmem_to_hbm [thread:$0]  %s1719, 16, %s9, [#allocation5]
    $region41: #{forward.7} parent=1 // pred_fallthru
      _
    // Predicated region
    $region42: #{forward.7} parent=1 // pred_check
      _
    $region43: #{forward.7} parent=1 // pred_check_branch
      %1723 = sbr.rel (0) target = $region45
    $region44: #{forward.7} parent=1 // pred_region
      %s1725 = ssub.s32 16, 16
      %1726 = vsyncadd [#allocation8], %s1725
      %s1728 = sshll.u32 [#allocation7], 4
      %s1729 = int_to_ptr.vmem [resolvable:$true] %s1728
      %1731 = dma.vmem_to_hbm [thread:$0]  %s1729, 16, %s10, [#allocation8]
    $region45: #{forward.7} parent=1 // pred_fallthru
      _
    // Predicated region
    $region46: #{forward.7} parent=1 // pred_check
      _
    $region47: #{forward.7} parent=1 // pred_check_branch
      %1733 = sbr.rel (0) target = $region49
    $region48: #{forward.7} parent=1 // pred_region
      %1734 = dma.done [#allocation3], 128
    $region49: #{forward.7} parent=1 // pred_fallthru
      _
    // Predicated region
    $region50: #{forward.7} parent=1 // pred_check
      _
    $region51: #{forward.7} parent=1 // pred_check_branch
      %1736 = sbr.rel (0) target = $region53
    $region52: #{forward.7} parent=1 // pred_region
      %1737 = dma.done [#allocation5], 128
    $region53: #{forward.7} parent=1 // pred_fallthru
      _
    // Predicated region
    $region54: #{forward.7} parent=1 // pred_check
      _
    $region55: #{forward.7} parent=1 // pred_check_branch
      %1739 = sbr.rel (0) target = $region57
    $region56: #{forward.7} parent=1 // pred_region
      %1740 = dma.done [#allocation5], 16
    $region57: #{forward.7} parent=1 // pred_fallthru
      _
    // Predicated region
    $region58: #{forward.7} parent=1 // pred_check
      _
    $region59: #{forward.7} parent=1 // pred_check_branch
      %1742 = sbr.rel (0) target = $region61
    $region60: #{forward.7} parent=1 // pred_region
      %1743 = dma.done [#allocation8], 16
    $region61: #{forward.7} parent=1 // pred_fallthru
      _
    %1744 = vsyncpa [#allocation3], 1
    %1745 = vsyncpa [#allocation5], 1
    %1746 = vsyncpa [#allocation8], 1

// kernel: forward.5
$region0: #{forward.5}
  #allocation0 [shape = 'u32[]', space=smem, size = 0x4, offset = 0x4, fixed_abs, tag = 'smem constant byte address 0x4 - core index']
  #allocation1 [shape = 'u32[144,128]{1,0:T(1,128)}', space=vmem, size = 0x12000, scoped, tag = 'internal scratch']
  %s0 = inlined_call_operand.vmem [shape: f32[8,768], index: 0, kind: input, shape index: {}]
  %s1 = inlined_call_operand.vmem [shape: bf16[768,128], index: 1, kind: input, shape index: {}]
  %s2 = inlined_call_operand.vmem [shape: f32[1,128], index: 2, kind: input, shape index: {}]
  %s3 = inlined_call_operand.vmem [shape: bf16[128,512], index: 3, kind: input, shape index: {}]
  %s4 = inlined_call_operand.vmem [shape: f32[1,512], index: 4, kind: input, shape index: {}]
  %s5 = inlined_call_operand.vmem [shape: f32[1,512], index: 5, kind: input, shape index: {}]
  %s6 = inlined_call_operand.vmem [shape: f32[1,512], index: 6, kind: input, shape index: {}]
  %s7 = inlined_call_operand.vmem [shape: bf16[512,64], index: 7, kind: input, shape index: {}]
  %s8 = inlined_call_operand.vmem [shape: f32[1,64], index: 8, kind: input, shape index: {}]
  %s9 = inlined_call_operand.vmem [shape: f32[128,64], index: 9, kind: input, shape index: {}]
  %s10 = inlined_call_operand.vmem [shape: f32[1,64], index: 10, kind: input, shape index: {}]
  %s11 = inlined_call_operand.vmem [shape: f32[8,128], index: 11, kind: output, shape index: {}]
  %s12 = sld [smem:[#allocation0]]
  $region54: #{forward.5} parent=0
    _
  %s14 = ssub.s32 1, %s12
  %s15 = scalar_select 0, %s14, %s12
  // Predicated region
  $region2: #{forward.5} parent=0 // pred_check
    _
  $region3: #{forward.5} parent=0 // pred_check_branch
    %17 = sbr.rel (0) target = $region5
  $region4: #{forward.5} parent=0 // pred_region
    _
  $region5: #{forward.5} parent=0 // pred_fallthru
    _
  // Predicated region
  $region6: #{forward.5} parent=0 // pred_check
    _
  $region7: #{forward.5} parent=0 // pred_check_branch
    %19 = sbr.rel (0) target = $region9
  $region8: #{forward.5} parent=0 // pred_region
    _
  $region9: #{forward.5} parent=0 // pred_fallthru
    _
  // Predicated region
  $region10: #{forward.5} parent=0 // pred_check
    _
  $region11: #{forward.5} parent=0 // pred_check_branch
    %21 = sbr.rel (0) target = $region13
  $region12: #{forward.5} parent=0 // pred_region
    _
  $region13: #{forward.5} parent=0 // pred_fallthru
    _
  // Predicated region
  $region14: #{forward.5} parent=0 // pred_check
    _
  $region15: #{forward.5} parent=0 // pred_check_branch
    %23 = sbr.rel (0) target = $region17
  $region16: #{forward.5} parent=0 // pred_region
    _
  $region17: #{forward.5} parent=0 // pred_fallthru
    _
  // Predicated region
  $region18: #{forward.5} parent=0 // pred_check
    _
  $region19: #{forward.5} parent=0 // pred_check_branch
    %25 = sbr.rel (0) target = $region21
  $region20: #{forward.5} parent=0 // pred_region
    _
  $region21: #{forward.5} parent=0 // pred_fallthru
    _
  // Predicated region
  $region22: #{forward.5} parent=0 // pred_check
    _
  $region23: #{forward.5} parent=0 // pred_check_branch
    %27 = sbr.rel (0) target = $region25
  $region24: #{forward.5} parent=0 // pred_region
    _
  $region25: #{forward.5} parent=0 // pred_fallthru
    _
  // Predicated region
  $region26: #{forward.5} parent=0 // pred_check
    _
  $region27: #{forward.5} parent=0 // pred_check_branch
    %29 = sbr.rel (0) target = $region29
  $region28: #{forward.5} parent=0 // pred_region
    _
  $region29: #{forward.5} parent=0 // pred_fallthru
    _
  // Predicated region
  $region30: #{forward.5} parent=0 // pred_check
    _
  $region31: #{forward.5} parent=0 // pred_check_branch
    %31 = sbr.rel (0) target = $region33
  $region32: #{forward.5} parent=0 // pred_region
    _
  $region33: #{forward.5} parent=0 // pred_fallthru
    _
  // Predicated region
  $region34: #{forward.5} parent=0 // pred_check
    _
  $region35: #{forward.5} parent=0 // pred_check_branch
    %33 = sbr.rel (0) target = $region37
  $region36: #{forward.5} parent=0 // pred_region
    _
  $region37: #{forward.5} parent=0 // pred_fallthru
    _
  // Predicated region
  $region38: #{forward.5} parent=0 // pred_check
    _
  $region39: #{forward.5} parent=0 // pred_check_branch
    %35 = sbr.rel (0) target = $region41
  $region40: #{forward.5} parent=0 // pred_region
    _
  $region41: #{forward.5} parent=0 // pred_fallthru
    _
  // Predicated region
  $region42: #{forward.5} parent=0 // pred_check
    _
  $region43: #{forward.5} parent=0 // pred_check_branch
    %37 = sbr.rel (0) target = $region45
  $region44: #{forward.5} parent=0 // pred_region
    _
  $region45: #{forward.5} parent=0 // pred_fallthru
    _
  %v39 = vld [vmem:[%s0] sm:$0xff]
  %v40 = vld [vmem:[%s0 + $0x8] sm:$0xff]
  %v41 = vld [vmem:[%s0 + $0x10] sm:$0xff]
  %v42 = vld [vmem:[%s0 + $0x18] sm:$0xff]
  %v43 = vld [vmem:[%s0 + $0x20] sm:$0xff]
  %v44 = vld [vmem:[%s0 + $0x28] sm:$0xff]
  %v45 = vpack.c.bf16 %v39, %v39
  %v46 = vpack.c.bf16 %v40, %v40
  %v47 = vpack.c.bf16 %v41, %v41
  %v48 = vpack.c.bf16 %v42, %v42
  %v49 = vpack.c.bf16 %v43, %v43
  %v50 = vpack.c.bf16 %v44, %v44
  %v51 = vld [vmem:[%s1] sm:$0xf]
  %v52 = vld [vmem:[%s1 + $0x4] sm:$0xf]
  %v53 = vld [vmem:[%s1 + $0x8] sm:$0xf]
  %v54 = vld [vmem:[%s1 + $0xc] sm:$0xf]
  %v55 = vld [vmem:[%s1 + $0x10] sm:$0xf]
  %v56 = vld [vmem:[%s1 + $0x14] sm:$0xf]
  %v57 = vld [vmem:[%s1 + $0x18] sm:$0xf]
  %v58 = vld [vmem:[%s1 + $0x1c] sm:$0xf]
  %v59 = vld [vmem:[%s1 + $0x20] sm:$0xf]
  %v60 = vld [vmem:[%s1 + $0x24] sm:$0xf]
  %v61 = vld [vmem:[%s1 + $0x28] sm:$0xf]
  %v62 = vld [vmem:[%s1 + $0x2c] sm:$0xf]
  %v63 = vld [vmem:[%s1 + $0x30] sm:$0xf]
  %v64 = vld [vmem:[%s1 + $0x34] sm:$0xf]
  %v65 = vld [vmem:[%s1 + $0x38] sm:$0xf]
  %v66 = vld [vmem:[%s1 + $0x3c] sm:$0xf]
  %v67 = vld [vmem:[%s1 + $0x40] sm:$0xf]
  %v68 = vld [vmem:[%s1 + $0x44] sm:$0xf]
  %v69 = vld [vmem:[%s1 + $0x48] sm:$0xf]
  %v70 = vld [vmem:[%s1 + $0x4c] sm:$0xf]
  %v71 = vld [vmem:[%s1 + $0x50] sm:$0xf]
  %v72 = vld [vmem:[%s1 + $0x54] sm:$0xf]
  %v73 = vld [vmem:[%s1 + $0x58] sm:$0xf]
  %v74 = vld [vmem:[%s1 + $0x5c] sm:$0xf]
  %v75 = vld [vmem:[%s1 + $0x60] sm:$0xf]
  %v76 = vld [vmem:[%s1 + $0x64] sm:$0xf]
  %v77 = vld [vmem:[%s1 + $0x68] sm:$0xf]
  %v78 = vld [vmem:[%s1 + $0x6c] sm:$0xf]
  %v79 = vld [vmem:[%s1 + $0x70] sm:$0xf]
  %v80 = vld [vmem:[%s1 + $0x74] sm:$0xf]
  %v81 = vld [vmem:[%s1 + $0x78] sm:$0xf]
  %v82 = vld [vmem:[%s1 + $0x7c] sm:$0xf]
  %v83 = vld [vmem:[%s1 + $0x80] sm:$0xf]
  %v84 = vld [vmem:[%s1 + $0x84] sm:$0xf]
  %v85 = vld [vmem:[%s1 + $0x88] sm:$0xf]
  %v86 = vld [vmem:[%s1 + $0x8c] sm:$0xf]
  %v87 = vld [vmem:[%s1 + $0x90] sm:$0xf]
  %v88 = vld [vmem:[%s1 + $0x94] sm:$0xf]
  %v89 = vld [vmem:[%s1 + $0x98] sm:$0xf]
  %v90 = vld [vmem:[%s1 + $0x9c] sm:$0xf]
  %v91 = vld [vmem:[%s1 + $0xa0] sm:$0xf]
  %v92 = vld [vmem:[%s1 + $0xa4] sm:$0xf]
  %v93 = vld [vmem:[%s1 + $0xa8] sm:$0xf]
  %v94 = vld [vmem:[%s1 + $0xac] sm:$0xf]
  %v95 = vld [vmem:[%s1 + $0xb0] sm:$0xf]
  %v96 = vld [vmem:[%s1 + $0xb4] sm:$0xf]
  %v97 = vld [vmem:[%s1 + $0xb8] sm:$0xf]
  %v98 = vld [vmem:[%s1 + $0xbc] sm:$0xf]
  %v99 = vld [vmem:[%s1 + $0xc0] sm:$0xf]
  %v100 = vld [vmem:[%s1 + $0xc4] sm:$0xf]
  %v101 = vld [vmem:[%s1 + $0xc8] sm:$0xf]
  %v102 = vld [vmem:[%s1 + $0xcc] sm:$0xf]
  %v103 = vld [vmem:[%s1 + $0xd0] sm:$0xf]
  %v104 = vld [vmem:[%s1 + $0xd4] sm:$0xf]
  %v105 = vld [vmem:[%s1 + $0xd8] sm:$0xf]
  %v106 = vld [vmem:[%s1 + $0xdc] sm:$0xf]
  %v107 = vld [vmem:[%s1 + $0xe0] sm:$0xf]
  %v108 = vld [vmem:[%s1 + $0xe4] sm:$0xf]
  %v109 = vld [vmem:[%s1 + $0xe8] sm:$0xf]
  %v110 = vld [vmem:[%s1 + $0xec] sm:$0xf]
  %v111 = vld [vmem:[%s1 + $0xf0] sm:$0xf]
  %v112 = vld [vmem:[%s1 + $0xf4] sm:$0xf]
  %v113 = vld [vmem:[%s1 + $0xf8] sm:$0xf]
  %v114 = vld [vmem:[%s1 + $0xfc] sm:$0xf]
  %v115 = vld [vmem:[%s1 + $0x100] sm:$0xf]
  %v116 = vld [vmem:[%s1 + $0x104] sm:$0xf]
  %v117 = vld [vmem:[%s1 + $0x108] sm:$0xf]
  %v118 = vld [vmem:[%s1 + $0x10c] sm:$0xf]
  %v119 = vld [vmem:[%s1 + $0x110] sm:$0xf]
  %v120 = vld [vmem:[%s1 + $0x114] sm:$0xf]
  %v121 = vld [vmem:[%s1 + $0x118] sm:$0xf]
  %v122 = vld [vmem:[%s1 + $0x11c] sm:$0xf]
  %v123 = vld [vmem:[%s1 + $0x120] sm:$0xf]
  %v124 = vld [vmem:[%s1 + $0x124] sm:$0xf]
  %v125 = vld [vmem:[%s1 + $0x128] sm:$0xf]
  %v126 = vld [vmem:[%s1 + $0x12c] sm:$0xf]
  %v127 = vld [vmem:[%s1 + $0x130] sm:$0xf]
  %v128 = vld [vmem:[%s1 + $0x134] sm:$0xf]
  %v129 = vld [vmem:[%s1 + $0x138] sm:$0xf]
  %v130 = vld [vmem:[%s1 + $0x13c] sm:$0xf]
  %v131 = vld [vmem:[%s1 + $0x140] sm:$0xf]
  %v132 = vld [vmem:[%s1 + $0x144] sm:$0xf]
  %v133 = vld [vmem:[%s1 + $0x148] sm:$0xf]
  %v134 = vld [vmem:[%s1 + $0x14c] sm:$0xf]
  %v135 = vld [vmem:[%s1 + $0x150] sm:$0xf]
  %v136 = vld [vmem:[%s1 + $0x154] sm:$0xf]
  %v137 = vld [vmem:[%s1 + $0x158] sm:$0xf]
  %v138 = vld [vmem:[%s1 + $0x15c] sm:$0xf]
  %v139 = vld [vmem:[%s1 + $0x160] sm:$0xf]
  %v140 = vld [vmem:[%s1 + $0x164] sm:$0xf]
  %v141 = vld [vmem:[%s1 + $0x168] sm:$0xf]
  %v142 = vld [vmem:[%s1 + $0x16c] sm:$0xf]
  %v143 = vld [vmem:[%s1 + $0x170] sm:$0xf]
  %v144 = vld [vmem:[%s1 + $0x174] sm:$0xf]
  %v145 = vld [vmem:[%s1 + $0x178] sm:$0xf]
  %v146 = vld [vmem:[%s1 + $0x17c] sm:$0xf]
  %v147 = vld [vmem:[%s2] sm:$0x1]
  %v149 = vlaneseq
  %v150 = vshrl.u32 %v149, 7
  %v151 = vsub.s32 0, %v150
  %v152 = vrot.slane %v147, %v151
  %v250 = vunpack.c.l.b16 %v51
  %v251 = vunpack.c.l.b16 %v52
  %v252 = vunpack.c.l.b16 %v53
  %v253 = vunpack.c.l.b16 %v54
  %v254 = vunpack.c.l.b16 %v55
  %v255 = vunpack.c.l.b16 %v56
  %v256 = vunpack.c.l.b16 %v57
  %v257 = vunpack.c.l.b16 %v58
  %v258 = vunpack.c.l.b16 %v59
  %v259 = vunpack.c.l.b16 %v60
  %v260 = vunpack.c.l.b16 %v61
  %v261 = vunpack.c.l.b16 %v62
  %v262 = vunpack.c.l.b16 %v63
  %v263 = vunpack.c.l.b16 %v64
  %v264 = vunpack.c.l.b16 %v65
  %v265 = vunpack.c.l.b16 %v66
  %v266 = vunpack.c.l.b16 %v67
  %v267 = vunpack.c.l.b16 %v68
  %v268 = vunpack.c.l.b16 %v69
  %v269 = vunpack.c.l.b16 %v70
  %v270 = vunpack.c.l.b16 %v71
  %v271 = vunpack.c.l.b16 %v72
  %v272 = vunpack.c.l.b16 %v73
  %v273 = vunpack.c.l.b16 %v74
  %v274 = vunpack.c.l.b16 %v75
  %v275 = vunpack.c.l.b16 %v76
  %v276 = vunpack.c.l.b16 %v77
  %v277 = vunpack.c.l.b16 %v78
  %v278 = vunpack.c.l.b16 %v79
  %v279 = vunpack.c.l.b16 %v80
  %v280 = vunpack.c.l.b16 %v81
  %v281 = vunpack.c.l.b16 %v82
  %v282 = vunpack.c.l.b16 %v83
  %v283 = vunpack.c.l.b16 %v84
  %v284 = vunpack.c.l.b16 %v85
  %v285 = vunpack.c.l.b16 %v86
  %v286 = vunpack.c.l.b16 %v87
  %v287 = vunpack.c.l.b16 %v88
  %v288 = vunpack.c.l.b16 %v89
  %v289 = vunpack.c.l.b16 %v90
  %v290 = vunpack.c.l.b16 %v91
  %v291 = vunpack.c.l.b16 %v92
  %v292 = vunpack.c.l.b16 %v93
  %v293 = vunpack.c.l.b16 %v94
  %v294 = vunpack.c.l.b16 %v95
  %v295 = vunpack.c.l.b16 %v96
  %v296 = vunpack.c.l.b16 %v97
  %v297 = vunpack.c.l.b16 %v98
  %v298 = vunpack.c.l.b16 %v99
  %v299 = vunpack.c.l.b16 %v100
  %v300 = vunpack.c.l.b16 %v101
  %v301 = vunpack.c.l.b16 %v102
  %v302 = vunpack.c.l.b16 %v103
  %v303 = vunpack.c.l.b16 %v104
  %v304 = vunpack.c.l.b16 %v105
  %v305 = vunpack.c.l.b16 %v106
  %v306 = vunpack.c.l.b16 %v107
  %v307 = vunpack.c.l.b16 %v108
  %v308 = vunpack.c.l.b16 %v109
  %v309 = vunpack.c.l.b16 %v110
  %v310 = vunpack.c.l.b16 %v111
  %v311 = vunpack.c.l.b16 %v112
  %v312 = vunpack.c.l.b16 %v113
  %v313 = vunpack.c.l.b16 %v114
  %v314 = vunpack.c.l.b16 %v115
  %v315 = vunpack.c.l.b16 %v116
  %v316 = vunpack.c.l.b16 %v117
  %v317 = vunpack.c.l.b16 %v118
  %v318 = vunpack.c.l.b16 %v119
  %v319 = vunpack.c.l.b16 %v120
  %v320 = vunpack.c.l.b16 %v121
  %v321 = vunpack.c.l.b16 %v122
  %v322 = vunpack.c.l.b16 %v123
  %v323 = vunpack.c.l.b16 %v124
  %v324 = vunpack.c.l.b16 %v125
  %v325 = vunpack.c.l.b16 %v126
  %v326 = vunpack.c.l.b16 %v127
  %v327 = vunpack.c.l.b16 %v128
  %v328 = vunpack.c.l.b16 %v129
  %v329 = vunpack.c.l.b16 %v130
  %v330 = vunpack.c.l.b16 %v131
  %v331 = vunpack.c.l.b16 %v132
  %v332 = vunpack.c.l.b16 %v133
  %v333 = vunpack.c.l.b16 %v134
  %v334 = vunpack.c.l.b16 %v135
  %v335 = vunpack.c.l.b16 %v136
  %v336 = vunpack.c.l.b16 %v137
  %v337 = vunpack.c.l.b16 %v138
  %v338 = vunpack.c.l.b16 %v139
  %v339 = vunpack.c.l.b16 %v140
  %v340 = vunpack.c.l.b16 %v141
  %v341 = vunpack.c.l.b16 %v142
  %v342 = vunpack.c.l.b16 %v143
  %v343 = vunpack.c.l.b16 %v144
  %v344 = vunpack.c.l.b16 %v145
  %v345 = vunpack.c.l.b16 %v146
  %v346 = vpack.c.b16 %v251, %v250
  %v347 = vpack.c.b16 %v253, %v252
  %v348 = vpack.c.b16 %v255, %v254
  %v349 = vpack.c.b16 %v257, %v256
  %v350 = vpack.c.b16 %v259, %v258
  %v351 = vpack.c.b16 %v261, %v260
  %v352 = vpack.c.b16 %v263, %v262
  %v353 = vpack.c.b16 %v265, %v264
  %v354 = vpack.c.b16 %v267, %v266
  %v355 = vpack.c.b16 %v269, %v268
  %v356 = vpack.c.b16 %v271, %v270
  %v357 = vpack.c.b16 %v273, %v272
  %v358 = vpack.c.b16 %v275, %v274
  %v359 = vpack.c.b16 %v277, %v276
  %v360 = vpack.c.b16 %v279, %v278
  %v361 = vpack.c.b16 %v281, %v280
  %v362 = vpack.c.b16 %v283, %v282
  %v363 = vpack.c.b16 %v285, %v284
  %v364 = vpack.c.b16 %v287, %v286
  %v365 = vpack.c.b16 %v289, %v288
  %v366 = vpack.c.b16 %v291, %v290
  %v367 = vpack.c.b16 %v293, %v292
  %v368 = vpack.c.b16 %v295, %v294
  %v369 = vpack.c.b16 %v297, %v296
  %v370 = vpack.c.b16 %v299, %v298
  %v371 = vpack.c.b16 %v301, %v300
  %v372 = vpack.c.b16 %v303, %v302
  %v373 = vpack.c.b16 %v305, %v304
  %v374 = vpack.c.b16 %v307, %v306
  %v375 = vpack.c.b16 %v309, %v308
  %v376 = vpack.c.b16 %v311, %v310
  %v377 = vpack.c.b16 %v313, %v312
  %v378 = vpack.c.b16 %v315, %v314
  %v379 = vpack.c.b16 %v317, %v316
  %v380 = vpack.c.b16 %v319, %v318
  %v381 = vpack.c.b16 %v321, %v320
  %v382 = vpack.c.b16 %v323, %v322
  %v383 = vpack.c.b16 %v325, %v324
  %v384 = vpack.c.b16 %v327, %v326
  %v385 = vpack.c.b16 %v329, %v328
  %v386 = vpack.c.b16 %v331, %v330
  %v387 = vpack.c.b16 %v333, %v332
  %v388 = vpack.c.b16 %v335, %v334
  %v389 = vpack.c.b16 %v337, %v336
  %v390 = vpack.c.b16 %v339, %v338
  %v391 = vpack.c.b16 %v341, %v340
  %v392 = vpack.c.b16 %v343, %v342
  %v393 = vpack.c.b16 %v345, %v344
  %442 = vmatprep.subr.bf16.mxu0 0
  %443 = vmatpush1.bf16.msra.mxu0 %v346
  %444 = vmatprep.subr.bf16.mxu0 0
  %445 = vmatpush1.bf16.msra.mxu0 %v347
  %446 = vmatprep.subr.bf16.mxu0 0
  %447 = vmatpush1.bf16.msra.mxu0 %v348
  %448 = vmatprep.subr.bf16.mxu0 0
  %449 = vmatpush1.bf16.msra.mxu0 %v349
  %450 = vmatprep.subr.bf16.mxu0 0
  %451 = vmatpush1.bf16.msra.mxu0 %v350
  %452 = vmatprep.subr.bf16.mxu0 0
  %453 = vmatpush1.bf16.msra.mxu0 %v351
  %454 = vmatprep.subr.bf16.mxu0 0
  %455 = vmatpush1.bf16.msra.mxu0 %v352
  %456 = vmatprep.subr.bf16.mxu0 0
  %457 = vmatpush1.bf16.msra.mxu0 %v353
  %458 = vmatprep.subr.bf16.mxu0 0
  %459 = vmatpush1.bf16.msra.mxu0 %v354
  %460 = vmatprep.subr.bf16.mxu0 0
  %461 = vmatpush1.bf16.msra.mxu0 %v355
  %462 = vmatprep.subr.bf16.mxu0 0
  %463 = vmatpush1.bf16.msra.mxu0 %v356
  %464 = vmatprep.subr.bf16.mxu0 0
  %465 = vmatpush1.bf16.msra.mxu0 %v357
  %466 = vmatprep.subr.bf16.mxu0 0
  %467 = vmatpush1.bf16.msra.mxu0 %v358
  %468 = vmatprep.subr.bf16.mxu0 0
  %469 = vmatpush1.bf16.msra.mxu0 %v359
  %470 = vmatprep.subr.bf16.mxu0 0
  %471 = vmatpush1.bf16.msra.mxu0 %v360
  %472 = vmatprep.subr.bf16.mxu0 0
  %473 = vmatpush1.bf16.msra.mxu0 %v361
  %474 = vmatprep.mubr.bf16.mxu0 %v46
  %475 = vmatmul.mubr.bf16.gmra.mrb[0].mxu0 %v45
  %v476 = vpop.f32.mrb[0].mxu0
  %v477 = vadd.f32 %v152, %v476
  %v478 = vpop.f32.mrb[0].mxu0
  %v479 = vpop.f32.mrb[0].mxu0
  %v480 = vpop.f32.mrb[0].mxu0
  %481 = vdwg.mxu0
  %482 = vmatprep.subr.bf16.mxu0 0
  %483 = vmatpush1.bf16.msra.mxu0 %v362
  %484 = vmatprep.subr.bf16.mxu0 0
  %485 = vmatpush1.bf16.msra.mxu0 %v363
  %486 = vmatprep.subr.bf16.mxu0 0
  %487 = vmatpush1.bf16.msra.mxu0 %v364
  %488 = vmatprep.subr.bf16.mxu0 0
  %489 = vmatpush1.bf16.msra.mxu0 %v365
  %490 = vmatprep.subr.bf16.mxu0 0
  %491 = vmatpush1.bf16.msra.mxu0 %v366
  %492 = vmatprep.subr.bf16.mxu0 0
  %493 = vmatpush1.bf16.msra.mxu0 %v367
  %494 = vmatprep.subr.bf16.mxu0 0
  %495 = vmatpush1.bf16.msra.mxu0 %v368
  %496 = vmatprep.subr.bf16.mxu0 0
  %497 = vmatpush1.bf16.msra.mxu0 %v369
  %498 = vmatprep.subr.bf16.mxu0 0
  %499 = vmatpush1.bf16.msra.mxu0 %v370
  %500 = vmatprep.subr.bf16.mxu0 0
  %501 = vmatpush1.bf16.msra.mxu0 %v371
  %502 = vmatprep.subr.bf16.mxu0 0
  %503 = vmatpush1.bf16.msra.mxu0 %v372
  %504 = vmatprep.subr.bf16.mxu0 0
  %505 = vmatpush1.bf16.msra.mxu0 %v373
  %506 = vmatprep.subr.bf16.mxu0 0
  %507 = vmatpush1.bf16.msra.mxu0 %v374
  %508 = vmatprep.subr.bf16.mxu0 0
  %509 = vmatpush1.bf16.msra.mxu0 %v375
  %510 = vmatprep.subr.bf16.mxu0 0
  %511 = vmatpush1.bf16.msra.mxu0 %v376
  %512 = vmatprep.subr.bf16.mxu0 0
  %513 = vmatpush1.bf16.msra.mxu0 %v377
  %514 = vmatprep.mubr.bf16.mxu0 %v48
  %515 = vmatmul.mubr.bf16.gmra.mrb[0].mxu0 %v47
  %v516 = vpop.f32.mrb[0].mxu0
  %v517 = vadd.f32 %v477, %v516
  %v518 = vpop.f32.mrb[0].mxu0
  %v519 = vpop.f32.mrb[0].mxu0
  %v520 = vpop.f32.mrb[0].mxu0
  %521 = vdwg.mxu0
  %522 = vmatprep.subr.bf16.mxu0 0
  %523 = vmatpush1.bf16.msra.mxu0 %v378
  %524 = vmatprep.subr.bf16.mxu0 0
  %525 = vmatpush1.bf16.msra.mxu0 %v379
  %526 = vmatprep.subr.bf16.mxu0 0
  %527 = vmatpush1.bf16.msra.mxu0 %v380
  %528 = vmatprep.subr.bf16.mxu0 0
  %529 = vmatpush1.bf16.msra.mxu0 %v381
  %530 = vmatprep.subr.bf16.mxu0 0
  %531 = vmatpush1.bf16.msra.mxu0 %v382
  %532 = vmatprep.subr.bf16.mxu0 0
  %533 = vmatpush1.bf16.msra.mxu0 %v383
  %534 = vmatprep.subr.bf16.mxu0 0
  %535 = vmatpush1.bf16.msra.mxu0 %v384
  %536 = vmatprep.subr.bf16.mxu0 0
  %537 = vmatpush1.bf16.msra.mxu0 %v385
  %538 = vmatprep.subr.bf16.mxu0 0
  %539 = vmatpush1.bf16.msra.mxu0 %v386
  %540 = vmatprep.subr.bf16.mxu0 0
  %541 = vmatpush1.bf16.msra.mxu0 %v387
  %542 = vmatprep.subr.bf16.mxu0 0
  %543 = vmatpush1.bf16.msra.mxu0 %v388
  %544 = vmatprep.subr.bf16.mxu0 0
  %545 = vmatpush1.bf16.msra.mxu0 %v389
  %546 = vmatprep.subr.bf16.mxu0 0
  %547 = vmatpush1.bf16.msra.mxu0 %v390
  %548 = vmatprep.subr.bf16.mxu0 0
  %549 = vmatpush1.bf16.msra.mxu0 %v391
  %550 = vmatprep.subr.bf16.mxu0 0
  %551 = vmatpush1.bf16.msra.mxu0 %v392
  %552 = vmatprep.subr.bf16.mxu0 0
  %553 = vmatpush1.bf16.msra.mxu0 %v393
  %554 = vmatprep.mubr.bf16.mxu0 %v50
  %555 = vmatmul.mubr.bf16.gmra.mrb[0].mxu0 %v49
  %v556 = vpop.f32.mrb[0].mxu0
  %v557 = vadd.f32 %v517, %v556
  %v558 = vpop.f32.mrb[0].mxu0
  %v559 = vpop.f32.mrb[0].mxu0
  %v560 = vpop.f32.mrb[0].mxu0
  %561 = vdwg.mxu0
  %v562 = vmax.f32 %v557, 0.0
  %v563 = vpack.c.bf16 %v562, %v562
  %v564 = vld [vmem:[%s3] sm:$0xff]
  %v565 = vld [vmem:[%s3 + $0x8] sm:$0xff]
  %v566 = vld [vmem:[%s3 + $0x10] sm:$0xff]
  %v567 = vld [vmem:[%s3 + $0x18] sm:$0xff]
  %v568 = vld [vmem:[%s3 + $0x20] sm:$0xff]
  %v569 = vld [vmem:[%s3 + $0x28] sm:$0xff]
  %v570 = vld [vmem:[%s3 + $0x30] sm:$0xff]
  %v571 = vld [vmem:[%s3 + $0x38] sm:$0xff]
  %v572 = vld [vmem:[%s3 + $0x40] sm:$0xff]
  %v573 = vld [vmem:[%s3 + $0x48] sm:$0xff]
  %v574 = vld [vmem:[%s3 + $0x50] sm:$0xff]
  %v575 = vld [vmem:[%s3 + $0x58] sm:$0xff]
  %v576 = vld [vmem:[%s3 + $0x60] sm:$0xff]
  %v577 = vld [vmem:[%s3 + $0x68] sm:$0xff]
  %v578 = vld [vmem:[%s3 + $0x70] sm:$0xff]
  %v579 = vld [vmem:[%s3 + $0x78] sm:$0xff]
  %v580 = vld [vmem:[%s3 + $0x80] sm:$0xff]
  %v581 = vld [vmem:[%s3 + $0x88] sm:$0xff]
  %v582 = vld [vmem:[%s3 + $0x90] sm:$0xff]
  %v583 = vld [vmem:[%s3 + $0x98] sm:$0xff]
  %v584 = vld [vmem:[%s3 + $0xa0] sm:$0xff]
  %v585 = vld [vmem:[%s3 + $0xa8] sm:$0xff]
  %v586 = vld [vmem:[%s3 + $0xb0] sm:$0xff]
  %v587 = vld [vmem:[%s3 + $0xb8] sm:$0xff]
  %v588 = vld [vmem:[%s3 + $0xc0] sm:$0xff]
  %v589 = vld [vmem:[%s3 + $0xc8] sm:$0xff]
  %v590 = vld [vmem:[%s3 + $0xd0] sm:$0xff]
  %v591 = vld [vmem:[%s3 + $0xd8] sm:$0xff]
  %v592 = vld [vmem:[%s3 + $0xe0] sm:$0xff]
  %v593 = vld [vmem:[%s3 + $0xe8] sm:$0xff]
  %v594 = vld [vmem:[%s3 + $0xf0] sm:$0xff]
  %v595 = vld [vmem:[%s3 + $0xf8] sm:$0xff]
  %v596 = vld [vmem:[%s4] sm:$0xf]
  %v598 = vlaneseq
  %v599 = vshrl.u32 %v598, 7
  %v600 = vsub.s32 0, %v599
  %v601 = vrot.slane %v596, %v600
  %v602 = vlaneseq
  %v603 = vshrl.u32 %v602, 7
  %v604 = vsub.s32 1, %v603
  %v605 = vrot.slane %v596, %v604
  %v606 = vlaneseq
  %v607 = vshrl.u32 %v606, 7
  %v608 = vsub.s32 2, %v607
  %v609 = vrot.slane %v596, %v608
  %v610 = vlaneseq
  %v611 = vshrl.u32 %v610, 7
  %v612 = vsub.s32 3, %v611
  %v613 = vrot.slane %v596, %v612
  %v650 = vunpack.c.l.b16 %v564
  %v651 = vunpack.c.h.b16 %v564
  %v652 = vunpack.c.l.b16 %v565
  %v653 = vunpack.c.h.b16 %v565
  %v654 = vunpack.c.l.b16 %v566
  %v655 = vunpack.c.h.b16 %v566
  %v656 = vunpack.c.l.b16 %v567
  %v657 = vunpack.c.h.b16 %v567
  %v658 = vunpack.c.l.b16 %v568
  %v659 = vunpack.c.h.b16 %v568
  %v660 = vunpack.c.l.b16 %v569
  %v661 = vunpack.c.h.b16 %v569
  %v662 = vunpack.c.l.b16 %v570
  %v663 = vunpack.c.h.b16 %v570
  %v664 = vunpack.c.l.b16 %v571
  %v665 = vunpack.c.h.b16 %v571
  %v666 = vunpack.c.l.b16 %v572
  %v667 = vunpack.c.h.b16 %v572
  %v668 = vunpack.c.l.b16 %v573
  %v669 = vunpack.c.h.b16 %v573
  %v670 = vunpack.c.l.b16 %v574
  %v671 = vunpack.c.h.b16 %v574
  %v672 = vunpack.c.l.b16 %v575
  %v673 = vunpack.c.h.b16 %v575
  %v674 = vunpack.c.l.b16 %v576
  %v675 = vunpack.c.h.b16 %v576
  %v676 = vunpack.c.l.b16 %v577
  %v677 = vunpack.c.h.b16 %v577
  %v678 = vunpack.c.l.b16 %v578
  %v679 = vunpack.c.h.b16 %v578
  %v680 = vunpack.c.l.b16 %v579
  %v681 = vunpack.c.h.b16 %v579
  %v682 = vunpack.c.l.b16 %v580
  %v683 = vunpack.c.h.b16 %v580
  %v684 = vunpack.c.l.b16 %v581
  %v685 = vunpack.c.h.b16 %v581
  %v686 = vunpack.c.l.b16 %v582
  %v687 = vunpack.c.h.b16 %v582
  %v688 = vunpack.c.l.b16 %v583
  %v689 = vunpack.c.h.b16 %v583
  %v690 = vunpack.c.l.b16 %v584
  %v691 = vunpack.c.h.b16 %v584
  %v692 = vunpack.c.l.b16 %v585
  %v693 = vunpack.c.h.b16 %v585
  %v694 = vunpack.c.l.b16 %v586
  %v695 = vunpack.c.h.b16 %v586
  %v696 = vunpack.c.l.b16 %v587
  %v697 = vunpack.c.h.b16 %v587
  %v698 = vunpack.c.l.b16 %v588
  %v699 = vunpack.c.h.b16 %v588
  %v700 = vunpack.c.l.b16 %v589
  %v701 = vunpack.c.h.b16 %v589
  %v702 = vunpack.c.l.b16 %v590
  %v703 = vunpack.c.h.b16 %v590
  %v704 = vunpack.c.l.b16 %v591
  %v705 = vunpack.c.h.b16 %v591
  %v706 = vunpack.c.l.b16 %v592
  %v707 = vunpack.c.h.b16 %v592
  %v708 = vunpack.c.l.b16 %v593
  %v709 = vunpack.c.h.b16 %v593
  %v710 = vunpack.c.l.b16 %v594
  %v711 = vunpack.c.h.b16 %v594
  %v712 = vunpack.c.l.b16 %v595
  %v713 = vunpack.c.h.b16 %v595
  %v714 = vpack.c.b16 %v654, %v650
  %v715 = vpack.c.b16 %v655, %v651
  %v716 = vpack.c.b16 %v656, %v652
  %v717 = vpack.c.b16 %v657, %v653
  %v718 = vpack.c.b16 %v662, %v658
  %v719 = vpack.c.b16 %v663, %v659
  %v720 = vpack.c.b16 %v664, %v660
  %v721 = vpack.c.b16 %v665, %v661
  %v722 = vpack.c.b16 %v670, %v666
  %v723 = vpack.c.b16 %v671, %v667
  %v724 = vpack.c.b16 %v672, %v668
  %v725 = vpack.c.b16 %v673, %v669
  %v726 = vpack.c.b16 %v678, %v674
  %v727 = vpack.c.b16 %v679, %v675
  %v728 = vpack.c.b16 %v680, %v676
  %v729 = vpack.c.b16 %v681, %v677
  %v730 = vpack.c.b16 %v686, %v682
  %v731 = vpack.c.b16 %v687, %v683
  %v732 = vpack.c.b16 %v688, %v684
  %v733 = vpack.c.b16 %v689, %v685
  %v734 = vpack.c.b16 %v694, %v690
  %v735 = vpack.c.b16 %v695, %v691
  %v736 = vpack.c.b16 %v696, %v692
  %v737 = vpack.c.b16 %v697, %v693
  %v738 = vpack.c.b16 %v702, %v698
  %v739 = vpack.c.b16 %v703, %v699
  %v740 = vpack.c.b16 %v704, %v700
  %v741 = vpack.c.b16 %v705, %v701
  %v742 = vpack.c.b16 %v710, %v706
  %v743 = vpack.c.b16 %v711, %v707
  %v744 = vpack.c.b16 %v712, %v708
  %v745 = vpack.c.b16 %v713, %v709
  %778 = vmatprep.subr.bf16.mxu0 %v715
  %779 = vmatpush1.bf16.msra.mxu0 %v714
  %780 = vmatprep.subr.bf16.mxu0 %v719
  %781 = vmatpush1.bf16.msra.mxu0 %v718
  %782 = vmatprep.subr.bf16.mxu0 %v723
  %783 = vmatpush1.bf16.msra.mxu0 %v722
  %784 = vmatprep.subr.bf16.mxu0 %v727
  %785 = vmatpush1.bf16.msra.mxu0 %v726
  %786 = vmatprep.subr.bf16.mxu0 %v731
  %787 = vmatpush1.bf16.msra.mxu0 %v730
  %788 = vmatprep.subr.bf16.mxu0 %v735
  %789 = vmatpush1.bf16.msra.mxu0 %v734
  %790 = vmatprep.subr.bf16.mxu0 %v739
  %791 = vmatpush1.bf16.msra.mxu0 %v738
  %792 = vmatprep.subr.bf16.mxu0 %v743
  %793 = vmatpush1.bf16.msra.mxu0 %v742
  %794 = vmatprep.subr.bf16.mxu0 0
  %795 = vmatpush1.bf16.msra.mxu0 0
  %796 = vmatprep.subr.bf16.mxu0 0
  %797 = vmatpush1.bf16.msra.mxu0 0
  %798 = vmatprep.subr.bf16.mxu0 0
  %799 = vmatpush1.bf16.msra.mxu0 0
  %800 = vmatprep.subr.bf16.mxu0 0
  %801 = vmatpush1.bf16.msra.mxu0 0
  %802 = vmatprep.subr.bf16.mxu0 0
  %803 = vmatpush1.bf16.msra.mxu0 0
  %804 = vmatprep.subr.bf16.mxu0 0
  %805 = vmatpush1.bf16.msra.mxu0 0
  %806 = vmatprep.subr.bf16.mxu0 0
  %807 = vmatpush1.bf16.msra.mxu0 0
  %808 = vmatprep.subr.bf16.mxu0 0
  %809 = vmatpush1.bf16.msra.mxu0 0
  %810 = vmatprep.mubr.bf16.mxu0 0
  %811 = vmatmul.mubr.bf16.gmra.mrb[0].mxu0 %v563
  %v812 = vpop.f32.mrb[0].mxu0
  %v813 = vadd.f32 %v601, %v812
  %v814 = vpop.f32.mrb[0].mxu0
  %v815 = vadd.f32 %v605, %v814
  %v816 = vpop.f32.mrb[0].mxu0
  %v817 = vpop.f32.mrb[0].mxu0
  %818 = vdwg.mxu0
  %819 = vmatprep.subr.bf16.mxu0 %v717
  %820 = vmatpush1.bf16.msra.mxu0 %v716
  %821 = vmatprep.subr.bf16.mxu0 %v721
  %822 = vmatpush1.bf16.msra.mxu0 %v720
  %823 = vmatprep.subr.bf16.mxu0 %v725
  %824 = vmatpush1.bf16.msra.mxu0 %v724
  %825 = vmatprep.subr.bf16.mxu0 %v729
  %826 = vmatpush1.bf16.msra.mxu0 %v728
  %827 = vmatprep.subr.bf16.mxu0 %v733
  %828 = vmatpush1.bf16.msra.mxu0 %v732
  %829 = vmatprep.subr.bf16.mxu0 %v737
  %830 = vmatpush1.bf16.msra.mxu0 %v736
  %831 = vmatprep.subr.bf16.mxu0 %v741
  %832 = vmatpush1.bf16.msra.mxu0 %v740
  %833 = vmatprep.subr.bf16.mxu0 %v745
  %834 = vmatpush1.bf16.msra.mxu0 %v744
  %835 = vmatprep.subr.bf16.mxu0 0
  %836 = vmatpush1.bf16.msra.mxu0 0
  %837 = vmatprep.subr.bf16.mxu0 0
  %838 = vmatpush1.bf16.msra.mxu0 0
  %839 = vmatprep.subr.bf16.mxu0 0
  %840 = vmatpush1.bf16.msra.mxu0 0
  %841 = vmatprep.subr.bf16.mxu0 0
  %842 = vmatpush1.bf16.msra.mxu0 0
  %843 = vmatprep.subr.bf16.mxu0 0
  %844 = vmatpush1.bf16.msra.mxu0 0
  %845 = vmatprep.subr.bf16.mxu0 0
  %846 = vmatpush1.bf16.msra.mxu0 0
  %847 = vmatprep.subr.bf16.mxu0 0
  %848 = vmatpush1.bf16.msra.mxu0 0
  %849 = vmatprep.subr.bf16.mxu0 0
  %850 = vmatpush1.bf16.msra.mxu0 0
  %851 = vmatprep.mubr.bf16.mxu0 0
  %852 = vmatmul.mubr.bf16.gmra.mrb[0].mxu0 %v563
  %v853 = vpop.f32.mrb[0].mxu0
  %v854 = vadd.f32 %v609, %v853
  %v855 = vpop.f32.mrb[0].mxu0
  %v856 = vadd.f32 %v613, %v855
  %v857 = vpop.f32.mrb[0].mxu0
  %v858 = vpop.f32.mrb[0].mxu0
  %859 = vdwg.mxu0
  %v860 = vadd.f32 %v813, %v815
  %v861 = vadd.f32 %v860, %v854
  %v862 = vadd.f32 %v861, %v856
  %863 = vadd.xlane.f32.xlu0 %v862
  %v864 = vpop.xlane.xlu0 %863
  %v865 = vrcp.pop 512.0
  %v866 = vmul.f32 %v864, %v865
  %v867 = vsub.f32 %v813, %v866
  %v868 = vsub.f32 %v815, %v866
  %v869 = vsub.f32 %v854, %v866
  %v870 = vsub.f32 %v856, %v866
  %v871 = vmul.f32 %v867, %v867
  %v872 = vmul.f32 %v868, %v868
  %v873 = vmul.f32 %v869, %v869
  %v874 = vmul.f32 %v870, %v870
  %v875 = vadd.f32 %v871, %v872
  %v876 = vadd.f32 %v875, %v873
  %v877 = vadd.f32 %v876, %v874
  %878 = vadd.xlane.f32.xlu0 %v877
  %v879 = vpop.xlane.xlu0 %878
  %v880 = vmul.f32 %v879, %v865
  %v881 = vadd.f32 %v880, 1e-05
  %v882 = vrsqrt.pop %v881
  %v883 = vmul.f32 %v867, %v882
  %v884 = vmul.f32 %v868, %v882
  %v885 = vmul.f32 %v869, %v882
  %v886 = vmul.f32 %v870, %v882
  %v887 = vld [vmem:[%s5] sm:$0xf]
  %v889 = vlaneseq
  %v890 = vshrl.u32 %v889, 7
  %v891 = vsub.s32 0, %v890
  %v892 = vrot.slane %v887, %v891
  %v893 = vlaneseq
  %v894 = vshrl.u32 %v893, 7
  %v895 = vsub.s32 1, %v894
  %v896 = vrot.slane %v887, %v895
  %v897 = vlaneseq
  %v898 = vshrl.u32 %v897, 7
  %v899 = vsub.s32 2, %v898
  %v900 = vrot.slane %v887, %v899
  %v901 = vlaneseq
  %v902 = vshrl.u32 %v901, 7
  %v903 = vsub.s32 3, %v902
  %v904 = vrot.slane %v887, %v903
  %v909 = vmul.f32 %v883, %v892
  %v910 = vmul.f32 %v884, %v896
  %v911 = vmul.f32 %v885, %v900
  %v912 = vmul.f32 %v886, %v904
  %v913 = vld [vmem:[%s6] sm:$0xf]
  %v915 = vlaneseq
  %v916 = vshrl.u32 %v915, 7
  %v917 = vsub.s32 0, %v916
  %v918 = vrot.slane %v913, %v917
  %v919 = vlaneseq
  %v920 = vshrl.u32 %v919, 7
  %v921 = vsub.s32 1, %v920
  %v922 = vrot.slane %v913, %v921
  %v923 = vlaneseq
  %v924 = vshrl.u32 %v923, 7
  %v925 = vsub.s32 2, %v924
  %v926 = vrot.slane %v913, %v925
  %v927 = vlaneseq
  %v928 = vshrl.u32 %v927, 7
  %v929 = vsub.s32 3, %v928
  %v930 = vrot.slane %v913, %v929
  %v935 = vadd.f32 %v909, %v918
  %v936 = vadd.f32 %v910, %v922
  %v937 = vadd.f32 %v911, %v926
  %v938 = vadd.f32 %v912, %v930
  %v939 = vmax.f32 %v935, 0.0
  %v940 = vmax.f32 %v936, 0.0
  %v941 = vmax.f32 %v937, 0.0
  %v942 = vmax.f32 %v938, 0.0
  %v943 = vpack.c.bf16 %v939, %v939
  %v944 = vpack.c.bf16 %v940, %v940
  %v945 = vpack.c.bf16 %v941, %v941
  %v946 = vpack.c.bf16 %v942, %v942
  %v947 = vld [vmem:[%s7] sm:$0xf]
  %v948 = vld [vmem:[%s7 + $0x4] sm:$0xf]
  %v949 = vld [vmem:[%s7 + $0x8] sm:$0xf]
  %v950 = vld [vmem:[%s7 + $0xc] sm:$0xf]
  %v951 = vld [vmem:[%s7 + $0x10] sm:$0xf]
  %v952 = vld [vmem:[%s7 + $0x14] sm:$0xf]
  %v953 = vld [vmem:[%s7 + $0x18] sm:$0xf]
  %v954 = vld [vmem:[%s7 + $0x1c] sm:$0xf]
  %v955 = vld [vmem:[%s7 + $0x20] sm:$0xf]
  %v956 = vld [vmem:[%s7 + $0x24] sm:$0xf]
  %v957 = vld [vmem:[%s7 + $0x28] sm:$0xf]
  %v958 = vld [vmem:[%s7 + $0x2c] sm:$0xf]
  %v959 = vld [vmem:[%s7 + $0x30] sm:$0xf]
  %v960 = vld [vmem:[%s7 + $0x34] sm:$0xf]
  %v961 = vld [vmem:[%s7 + $0x38] sm:$0xf]
  %v962 = vld [vmem:[%s7 + $0x3c] sm:$0xf]
  %v963 = vld [vmem:[%s7 + $0x40] sm:$0xf]
  %v964 = vld [vmem:[%s7 + $0x44] sm:$0xf]
  %v965 = vld [vmem:[%s7 + $0x48] sm:$0xf]
  %v966 = vld [vmem:[%s7 + $0x4c] sm:$0xf]
  %v967 = vld [vmem:[%s7 + $0x50] sm:$0xf]
  %v968 = vld [vmem:[%s7 + $0x54] sm:$0xf]
  %v969 = vld [vmem:[%s7 + $0x58] sm:$0xf]
  %v970 = vld [vmem:[%s7 + $0x5c] sm:$0xf]
  %v971 = vld [vmem:[%s7 + $0x60] sm:$0xf]
  %v972 = vld [vmem:[%s7 + $0x64] sm:$0xf]
  %v973 = vld [vmem:[%s7 + $0x68] sm:$0xf]
  %v974 = vld [vmem:[%s7 + $0x6c] sm:$0xf]
  %v975 = vld [vmem:[%s7 + $0x70] sm:$0xf]
  %v976 = vld [vmem:[%s7 + $0x74] sm:$0xf]
  %v977 = vld [vmem:[%s7 + $0x78] sm:$0xf]
  %v978 = vld [vmem:[%s7 + $0x7c] sm:$0xf]
  %v979 = vld [vmem:[%s7 + $0x80] sm:$0xf]
  %v980 = vld [vmem:[%s7 + $0x84] sm:$0xf]
  %v981 = vld [vmem:[%s7 + $0x88] sm:$0xf]
  %v982 = vld [vmem:[%s7 + $0x8c] sm:$0xf]
  %v983 = vld [vmem:[%s7 + $0x90] sm:$0xf]
  %v984 = vld [vmem:[%s7 + $0x94] sm:$0xf]
  %v985 = vld [vmem:[%s7 + $0x98] sm:$0xf]
  %v986 = vld [vmem:[%s7 + $0x9c] sm:$0xf]
  %v987 = vld [vmem:[%s7 + $0xa0] sm:$0xf]
  %v988 = vld [vmem:[%s7 + $0xa4] sm:$0xf]
  %v989 = vld [vmem:[%s7 + $0xa8] sm:$0xf]
  %v990 = vld [vmem:[%s7 + $0xac] sm:$0xf]
  %v991 = vld [vmem:[%s7 + $0xb0] sm:$0xf]
  %v992 = vld [vmem:[%s7 + $0xb4] sm:$0xf]
  %v993 = vld [vmem:[%s7 + $0xb8] sm:$0xf]
  %v994 = vld [vmem:[%s7 + $0xbc] sm:$0xf]
  %v995 = vld [vmem:[%s7 + $0xc0] sm:$0xf]
  %v996 = vld [vmem:[%s7 + $0xc4] sm:$0xf]
  %v997 = vld [vmem:[%s7 + $0xc8] sm:$0xf]
  %v998 = vld [vmem:[%s7 + $0xcc] sm:$0xf]
  %v999 = vld [vmem:[%s7 + $0xd0] sm:$0xf]
  %v1000 = vld [vmem:[%s7 + $0xd4] sm:$0xf]
  %v1001 = vld [vmem:[%s7 + $0xd8] sm:$0xf]
  %v1002 = vld [vmem:[%s7 + $0xdc] sm:$0xf]
  %v1003 = vld [vmem:[%s7 + $0xe0] sm:$0xf]
  %v1004 = vld [vmem:[%s7 + $0xe4] sm:$0xf]
  %v1005 = vld [vmem:[%s7 + $0xe8] sm:$0xf]
  %v1006 = vld [vmem:[%s7 + $0xec] sm:$0xf]
  %v1007 = vld [vmem:[%s7 + $0xf0] sm:$0xf]
  %v1008 = vld [vmem:[%s7 + $0xf4] sm:$0xf]
  %v1009 = vld [vmem:[%s7 + $0xf8] sm:$0xf]
  %v1010 = vld [vmem:[%s7 + $0xfc] sm:$0xf]
  %v1011 = vld [vmem:[%s8] sm:$0x1]
  %v1013 = vlaneseq
  %v1014 = vshrl.u32 %v1013, 7
  %v1015 = vsub.s32 0, %v1014
  %v1016 = vrot.slane %v1011, %v1015
  %v1082 = vunpack.c.l.b16 %v947
  %v1083 = vunpack.c.l.b16 %v948
  %v1084 = vunpack.c.l.b16 %v949
  %v1085 = vunpack.c.l.b16 %v950
  %v1086 = vunpack.c.l.b16 %v951
  %v1087 = vunpack.c.l.b16 %v952
  %v1088 = vunpack.c.l.b16 %v953
  %v1089 = vunpack.c.l.b16 %v954
  %v1090 = vunpack.c.l.b16 %v955
  %v1091 = vunpack.c.l.b16 %v956
  %v1092 = vunpack.c.l.b16 %v957
  %v1093 = vunpack.c.l.b16 %v958
  %v1094 = vunpack.c.l.b16 %v959
  %v1095 = vunpack.c.l.b16 %v960
  %v1096 = vunpack.c.l.b16 %v961
  %v1097 = vunpack.c.l.b16 %v962
  %v1098 = vunpack.c.l.b16 %v963
  %v1099 = vunpack.c.l.b16 %v964
  %v1100 = vunpack.c.l.b16 %v965
  %v1101 = vunpack.c.l.b16 %v966
  %v1102 = vunpack.c.l.b16 %v967
  %v1103 = vunpack.c.l.b16 %v968
  %v1104 = vunpack.c.l.b16 %v969
  %v1105 = vunpack.c.l.b16 %v970
  %v1106 = vunpack.c.l.b16 %v971
  %v1107 = vunpack.c.l.b16 %v972
  %v1108 = vunpack.c.l.b16 %v973
  %v1109 = vunpack.c.l.b16 %v974
  %v1110 = vunpack.c.l.b16 %v975
  %v1111 = vunpack.c.l.b16 %v976
  %v1112 = vunpack.c.l.b16 %v977
  %v1113 = vunpack.c.l.b16 %v978
  %v1114 = vunpack.c.l.b16 %v979
  %v1115 = vunpack.c.l.b16 %v980
  %v1116 = vunpack.c.l.b16 %v981
  %v1117 = vunpack.c.l.b16 %v982
  %v1118 = vunpack.c.l.b16 %v983
  %v1119 = vunpack.c.l.b16 %v984
  %v1120 = vunpack.c.l.b16 %v985
  %v1121 = vunpack.c.l.b16 %v986
  %v1122 = vunpack.c.l.b16 %v987
  %v1123 = vunpack.c.l.b16 %v988
  %v1124 = vunpack.c.l.b16 %v989
  %v1125 = vunpack.c.l.b16 %v990
  %v1126 = vunpack.c.l.b16 %v991
  %v1127 = vunpack.c.l.b16 %v992
  %v1128 = vunpack.c.l.b16 %v993
  %v1129 = vunpack.c.l.b16 %v994
  %v1130 = vunpack.c.l.b16 %v995
  %v1131 = vunpack.c.l.b16 %v996
  %v1132 = vunpack.c.l.b16 %v997
  %v1133 = vunpack.c.l.b16 %v998
  %v1134 = vunpack.c.l.b16 %v999
  %v1135 = vunpack.c.l.b16 %v1000
  %v1136 = vunpack.c.l.b16 %v1001
  %v1137 = vunpack.c.l.b16 %v1002
  %v1138 = vunpack.c.l.b16 %v1003
  %v1139 = vunpack.c.l.b16 %v1004
  %v1140 = vunpack.c.l.b16 %v1005
  %v1141 = vunpack.c.l.b16 %v1006
  %v1142 = vunpack.c.l.b16 %v1007
  %v1143 = vunpack.c.l.b16 %v1008
  %v1144 = vunpack.c.l.b16 %v1009
  %v1145 = vunpack.c.l.b16 %v1010
  %v1146 = vpack.c.b16 %v1083, %v1082
  %v1147 = vpack.c.b16 %v1085, %v1084
  %v1148 = vpack.c.b16 %v1087, %v1086
  %v1149 = vpack.c.b16 %v1089, %v1088
  %v1150 = vpack.c.b16 %v1091, %v1090
  %v1151 = vpack.c.b16 %v1093, %v1092
  %v1152 = vpack.c.b16 %v1095, %v1094
  %v1153 = vpack.c.b16 %v1097, %v1096
  %v1154 = vpack.c.b16 %v1099, %v1098
  %v1155 = vpack.c.b16 %v1101, %v1100
  %v1156 = vpack.c.b16 %v1103, %v1102
  %v1157 = vpack.c.b16 %v1105, %v1104
  %v1158 = vpack.c.b16 %v1107, %v1106
  %v1159 = vpack.c.b16 %v1109, %v1108
  %v1160 = vpack.c.b16 %v1111, %v1110
  %v1161 = vpack.c.b16 %v1113, %v1112
  %v1162 = vpack.c.b16 %v1115, %v1114
  %v1163 = vpack.c.b16 %v1117, %v1116
  %v1164 = vpack.c.b16 %v1119, %v1118
  %v1165 = vpack.c.b16 %v1121, %v1120
  %v1166 = vpack.c.b16 %v1123, %v1122
  %v1167 = vpack.c.b16 %v1125, %v1124
  %v1168 = vpack.c.b16 %v1127, %v1126
  %v1169 = vpack.c.b16 %v1129, %v1128
  %v1170 = vpack.c.b16 %v1131, %v1130
  %v1171 = vpack.c.b16 %v1133, %v1132
  %v1172 = vpack.c.b16 %v1135, %v1134
  %v1173 = vpack.c.b16 %v1137, %v1136
  %v1174 = vpack.c.b16 %v1139, %v1138
  %v1175 = vpack.c.b16 %v1141, %v1140
  %v1176 = vpack.c.b16 %v1143, %v1142
  %v1177 = vpack.c.b16 %v1145, %v1144
  %1210 = vmatprep.subr.bf16.mxu0 0
  %1211 = vmatpush1.bf16.msra.mxu0 %v1146
  %1212 = vmatprep.subr.bf16.mxu0 0
  %1213 = vmatpush1.bf16.msra.mxu0 %v1147
  %1214 = vmatprep.subr.bf16.mxu0 0
  %1215 = vmatpush1.bf16.msra.mxu0 %v1148
  %1216 = vmatprep.subr.bf16.mxu0 0
  %1217 = vmatpush1.bf16.msra.mxu0 %v1149
  %1218 = vmatprep.subr.bf16.mxu0 0
  %1219 = vmatpush1.bf16.msra.mxu0 %v1150
  %1220 = vmatprep.subr.bf16.mxu0 0
  %1221 = vmatpush1.bf16.msra.mxu0 %v1151
  %1222 = vmatprep.subr.bf16.mxu0 0
  %1223 = vmatpush1.bf16.msra.mxu0 %v1152
  %1224 = vmatprep.subr.bf16.mxu0 0
  %1225 = vmatpush1.bf16.msra.mxu0 %v1153
  %1226 = vmatprep.subr.bf16.mxu0 0
  %1227 = vmatpush1.bf16.msra.mxu0 %v1154
  %1228 = vmatprep.subr.bf16.mxu0 0
  %1229 = vmatpush1.bf16.msra.mxu0 %v1155
  %1230 = vmatprep.subr.bf16.mxu0 0
  %1231 = vmatpush1.bf16.msra.mxu0 %v1156
  %1232 = vmatprep.subr.bf16.mxu0 0
  %1233 = vmatpush1.bf16.msra.mxu0 %v1157
  %1234 = vmatprep.subr.bf16.mxu0 0
  %1235 = vmatpush1.bf16.msra.mxu0 %v1158
  %1236 = vmatprep.subr.bf16.mxu0 0
  %1237 = vmatpush1.bf16.msra.mxu0 %v1159
  %1238 = vmatprep.subr.bf16.mxu0 0
  %1239 = vmatpush1.bf16.msra.mxu0 %v1160
  %1240 = vmatprep.subr.bf16.mxu0 0
  %1241 = vmatpush1.bf16.msra.mxu0 %v1161
  %1242 = vmatprep.mubr.bf16.mxu0 %v944
  %1243 = vmatmul.mubr.bf16.gmra.mrb[0].mxu0 %v943
  %v1244 = vpop.f32.mrb[0].mxu0
  %v1245 = vadd.f32 %v1016, %v1244
  %v1246 = vpop.f32.mrb[0].mxu0
  %v1247 = vpop.f32.mrb[0].mxu0
  %v1248 = vpop.f32.mrb[0].mxu0
  %1249 = vdwg.mxu0
  %1250 = vmatprep.subr.bf16.mxu0 0
  %1251 = vmatpush1.bf16.msra.mxu0 %v1162
  %1252 = vmatprep.subr.bf16.mxu0 0
  %1253 = vmatpush1.bf16.msra.mxu0 %v1163
  %1254 = vmatprep.subr.bf16.mxu0 0
  %1255 = vmatpush1.bf16.msra.mxu0 %v1164
  %1256 = vmatprep.subr.bf16.mxu0 0
  %1257 = vmatpush1.bf16.msra.mxu0 %v1165
  %1258 = vmatprep.subr.bf16.mxu0 0
  %1259 = vmatpush1.bf16.msra.mxu0 %v1166
  %1260 = vmatprep.subr.bf16.mxu0 0
  %1261 = vmatpush1.bf16.msra.mxu0 %v1167
  %1262 = vmatprep.subr.bf16.mxu0 0
  %1263 = vmatpush1.bf16.msra.mxu0 %v1168
  %1264 = vmatprep.subr.bf16.mxu0 0
  %1265 = vmatpush1.bf16.msra.mxu0 %v1169
  %1266 = vmatprep.subr.bf16.mxu0 0
  %1267 = vmatpush1.bf16.msra.mxu0 %v1170
  %1268 = vmatprep.subr.bf16.mxu0 0
  %1269 = vmatpush1.bf16.msra.mxu0 %v1171
  %1270 = vmatprep.subr.bf16.mxu0 0
  %1271 = vmatpush1.bf16.msra.mxu0 %v1172
  %1272 = vmatprep.subr.bf16.mxu0 0
  %1273 = vmatpush1.bf16.msra.mxu0 %v1173
  %1274 = vmatprep.subr.bf16.mxu0 0
  %1275 = vmatpush1.bf16.msra.mxu0 %v1174
  %1276 = vmatprep.subr.bf16.mxu0 0
  %1277 = vmatpush1.bf16.msra.mxu0 %v1175
  %1278 = vmatprep.subr.bf16.mxu0 0
  %1279 = vmatpush1.bf16.msra.mxu0 %v1176
  %1280 = vmatprep.subr.bf16.mxu0 0
  %1281 = vmatpush1.bf16.msra.mxu0 %v1177
  %1282 = vmatprep.mubr.bf16.mxu0 %v946
  %1283 = vmatmul.mubr.bf16.gmra.mrb[0].mxu0 %v945
  %v1284 = vpop.f32.mrb[0].mxu0
  %v1285 = vadd.f32 %v1245, %v1284
  %v1286 = vpop.f32.mrb[0].mxu0
  %v1287 = vpop.f32.mrb[0].mxu0
  %v1288 = vpop.f32.mrb[0].mxu0
  %1289 = vdwg.mxu0
  %1290 = vadd.xlane.f32.xlu0 %v562
  %v1291 = vpop.xlane.xlu0 %1290
  %v1292 = vrcp.pop 128.0
  %v1293 = vmul.f32 %v1291, %v1292
  %v1294 = vsub.f32 %v562, %v1293
  %v1295 = vmul.f32 %v1294, %v1294
  %1296 = vadd.xlane.f32.xlu0 %v1295
  %v1297 = vpop.xlane.xlu0 %1296
  %v1298 = vmul.f32 %v1297, %v1292
  %v1299 = vadd.f32 %v1298, 1e-05
  %v1300 = vrsqrt.pop %v1299
  %v1301 = vmul.f32 %v1294, %v1300
  %v1302 = vld [vmem:[%s9] sm:$0xff]
  %v1303 = vld [vmem:[%s9 + $0x8] sm:$0xff]
  %v1304 = vld [vmem:[%s9 + $0x10] sm:$0xff]
  %v1305 = vld [vmem:[%s9 + $0x18] sm:$0xff]
  %v1306 = vld [vmem:[%s9 + $0x20] sm:$0xff]
  %v1307 = vld [vmem:[%s9 + $0x28] sm:$0xff]
  %v1308 = vld [vmem:[%s9 + $0x30] sm:$0xff]
  %v1309 = vld [vmem:[%s9 + $0x38] sm:$0xff]
  %v1310 = vld [vmem:[%s9 + $0x40] sm:$0xff]
  %v1311 = vld [vmem:[%s9 + $0x48] sm:$0xff]
  %v1312 = vld [vmem:[%s9 + $0x50] sm:$0xff]
  %v1313 = vld [vmem:[%s9 + $0x58] sm:$0xff]
  %v1314 = vld [vmem:[%s9 + $0x60] sm:$0xff]
  %v1315 = vld [vmem:[%s9 + $0x68] sm:$0xff]
  %v1316 = vld [vmem:[%s9 + $0x70] sm:$0xff]
  %v1317 = vld [vmem:[%s9 + $0x78] sm:$0xff]
  %v1318 = vld [vmem:[%s10] sm:$0x1]
  %v1320 = vlaneseq
  %v1321 = vshrl.u32 %v1320, 7
  %v1322 = vsub.s32 0, %v1321
  %v1323 = vrot.slane %v1318, %v1322
  %1325 = vmatprep.subr.mxu0 0.0
  %1326 = vmatpush1.msra.mxu0 %v1302
  %1327 = vmatprep.subr.mxu0 0.0
  %1328 = vmatpush1.msra.mxu0 %v1303
  %1329 = vmatprep.subr.mxu0 0.0
  %1330 = vmatpush1.msra.mxu0 %v1304
  %1331 = vmatprep.subr.mxu0 0.0
  %1332 = vmatpush1.msra.mxu0 %v1305
  %1333 = vmatprep.subr.mxu0 0.0
  %1334 = vmatpush1.msra.mxu0 %v1306
  %1335 = vmatprep.subr.mxu0 0.0
  %1336 = vmatpush1.msra.mxu0 %v1307
  %1337 = vmatprep.subr.mxu0 0.0
  %1338 = vmatpush1.msra.mxu0 %v1308
  %1339 = vmatprep.subr.mxu0 0.0
  %1340 = vmatpush1.msra.mxu0 %v1309
  %1341 = vmatprep.subr.mxu0 0.0
  %1342 = vmatpush1.msra.mxu0 %v1310
  %1343 = vmatprep.subr.mxu0 0.0
  %1344 = vmatpush1.msra.mxu0 %v1311
  %1345 = vmatprep.subr.mxu0 0.0
  %1346 = vmatpush1.msra.mxu0 %v1312
  %1347 = vmatprep.subr.mxu0 0.0
  %1348 = vmatpush1.msra.mxu0 %v1313
  %1349 = vmatprep.subr.mxu0 0.0
  %1350 = vmatpush1.msra.mxu0 %v1314
  %1351 = vmatprep.subr.mxu0 0.0
  %1352 = vmatpush1.msra.mxu0 %v1315
  %1353 = vmatprep.subr.mxu0 0.0
  %1354 = vmatpush1.msra.mxu0 %v1316
  %1355 = vmatprep.subr.mxu0 0.0
  %1356 = vmatpush1.msra.mxu0 %v1317
  %1357 = vmatprep.subr.mxu0 0.0
  %1358 = vmatpush1.msra.mxu0 0.0
  %1359 = vmatprep.subr.mxu0 0.0
  %1360 = vmatpush1.msra.mxu0 0.0
  %1361 = vmatprep.subr.mxu0 0.0
  %1362 = vmatpush1.msra.mxu0 0.0
  %1363 = vmatprep.subr.mxu0 0.0
  %1364 = vmatpush1.msra.mxu0 0.0
  %1365 = vmatprep.subr.mxu0 0.0
  %1366 = vmatpush1.msra.mxu0 0.0
  %1367 = vmatprep.subr.mxu0 0.0
  %1368 = vmatpush1.msra.mxu0 0.0
  %1369 = vmatprep.subr.mxu0 0.0
  %1370 = vmatpush1.msra.mxu0 0.0
  %1371 = vmatprep.subr.mxu0 0.0
  %1372 = vmatpush1.msra.mxu0 0.0
  %1373 = vmatprep.subr.mxu0 0.0
  %1374 = vmatpush1.msra.mxu0 0.0
  %1375 = vmatprep.subr.mxu0 0.0
  %1376 = vmatpush1.msra.mxu0 0.0
  %1377 = vmatprep.subr.mxu0 0.0
  %1378 = vmatpush1.msra.mxu0 0.0
  %1379 = vmatprep.subr.mxu0 0.0
  %1380 = vmatpush1.msra.mxu0 0.0
  %1381 = vmatprep.subr.mxu0 0.0
  %1382 = vmatpush1.msra.mxu0 0.0
  %1383 = vmatprep.subr.mxu0 0.0
  %1384 = vmatpush1.msra.mxu0 0.0
  %1385 = vmatprep.subr.mxu0 0.0
  %1386 = vmatpush1.msra.mxu0 0.0
  %1387 = vmatprep.subr.mxu0 0.0
  %1388 = vmatpush1.msra.mxu0 0.0
  %1389 = vmatprep.mubr.f32.mxu0 0.0
  %1390 = vmatmul.mubr.f32.gmra.mrb[0].mxu0 %v1301
  %v1391 = vpop.f32.mrb[0].mxu0
  %v1392 = vadd.f32 %v1323, %v1391
  %v1393 = vpop.f32.mrb[0].mxu0
  %1394 = vdwg.mxu0
  %1396 = vrot.lane.b32.xlu0 %v1285, 64
  %v1397 = vpop.permute.xlu0 %1396
  %vm1399 = vcmask 523264
  %v1400 = vsel %vm1399, %v1392, %v1397
  %1401 = vst [vmem:[%s11] sm:$0xff] %v1400
  // Predicated region
  $region46: #{forward.5} parent=0 // pred_check
    _
  $region47: #{forward.5} parent=0 // pred_check_branch
    %1403 = sbr.rel (0) target = $region49
  $region48: #{forward.5} parent=0 // pred_region
    _
  $region49: #{forward.5} parent=0 // pred_fallthru
    _
  // Predicated region
  $region50: #{forward.5} parent=0 // pred_check
    _
  $region51: #{forward.5} parent=0 // pred_check_branch
    %1405 = sbr.rel (0) target = $region53
  $region52: #{forward.5} parent=0 // pred_region
    _
  $region53: #{forward.5} parent=0 // pred_fallthru
    _

</llo_original>
